<compile_context>
chip_gen: v7x
topology: tpu7x:2x2x1
jax: 0.10.0
libtpu: 0.0.40
codegen_flags: <defaults>
</compile_context>

<pallas_src>
import functools

import jax
import jax.numpy as jnp
from jax import lax
from jax.experimental import pallas as pl
from jax.experimental.pallas import tpu as pltpu


# ------------------------------ small helpers ------------------------------

def _pad_to(v, m):
    return ((v + m - 1) // m) * m


def _pad128(c):
    return max(128, _pad_to(c, 128))


def _pick_tile(d):
    """Largest of (512, 256, 128) dividing d (d is a multiple of 128)."""
    for t in (512, 256, 128):
        if d % t == 0:
            return t
    return d


def _pick_row_tile(ho, wo):
    """Row tile TH for the 3x3 conv: TH divides ho, TH*wo <= 512 rows (bounds
    the per-step VMEM block) and TH*wo is a multiple of 8.  Prefer a choice
    that yields >= 2 row tiles (keeps both v7x TensorCores busy at batch 1);
    fall back to the full image (full-extent block is always layout-legal)."""
    cands = [th for th in range(ho, 0, -1)
             if ho % th == 0 and th * wo <= 512 and (th * wo) % 8 == 0]
    for th in cands:
        if ho // th >= 2:
            return th
    return cands[0] if cands else ho


# ----------------------------- Pallas kernels -----------------------------

def _mm_bn_kernel(x_ref, w_ref, b_ref, o_ref, acc_ref, *, relu):
    """o = relu_opt(x @ w + bias); BN scale pre-folded into w; K-tiled."""
    @pl.when(pl.program_id(2) == 0)
    def _():
        acc_ref[...] = jnp.zeros_like(acc_ref)

    acc_ref[...] += jnp.dot(x_ref[...], w_ref[...],
                            preferred_element_type=jnp.float32)

    @pl.when(pl.program_id(2) == pl.num_programs(2) - 1)
    def _():
        y = acc_ref[...] + b_ref[...]
        if relu:
            y = jnp.maximum(y, 0.0)
        o_ref[...] = y.astype(o_ref.dtype)


def _mm_bn_res_kernel(x_ref, w_ref, b_ref, sc_ref, *refs, emit_pre):
    """conv3 + bn3 + residual fused:
        pre = x @ w + bias + sc ; out = relu(pre).
    refs = (pre_ref, out_ref, acc_ref) if emit_pre else (out_ref, acc_ref)."""
    acc_ref = refs[-1]

    @pl.when(pl.program_id(2) == 0)
    def _():
        acc_ref[...] = jnp.zeros_like(acc_ref)

    acc_ref[...] += jnp.dot(x_ref[...], w_ref[...],
                            preferred_element_type=jnp.float32)

    @pl.when(pl.program_id(2) == pl.num_programs(2) - 1)
    def _():
        pre = acc_ref[...] + b_ref[...] + sc_ref[...].astype(jnp.float32)
        if emit_pre:
            refs[0][...] = pre.astype(refs[0].dtype)
            refs[1][...] = jnp.maximum(pre, 0.0).astype(refs[1].dtype)
        else:
            refs[0][...] = jnp.maximum(pre, 0.0).astype(refs[0].dtype)


def _conv3x3_kernel(ph_ref, w_ref, b_ref, o_ref, *, stride, th, wo, hp):
    """3x3 conv (pad=1, given stride) + folded-BN bias + ReLU for one row tile.

    ph_ref: (n_phases*hp, wp, C) spatially padded (and, for stride>1,
            phase-decomposed) input of one image — its index_map is constant
            across row tiles, so it stays resident in VMEM.
    w_ref : (9*C, Cout) folded weights, tap-major rows.
    o_ref : (th*wo, Cout) output rows [r*th, r*th+th).

    All 9 taps are gathered into one (th*wo, 9*C) im2col tile (lane-aligned
    concat — channels are 128-multiples) and contracted in a single MXU dot:
    no accumulator scratch, no zero-init, no 9x read-modify-write.
    """
    row0 = pl.program_id(1) * th
    taps = []
    for kh in range(3):
        for kw in range(3):
            phase = (kh % stride) * stride + (kw % stride)
            oh, ow = kh // stride, kw // stride
            r0 = phase * hp + row0 + oh
            taps.append(ph_ref[pl.ds(r0, th), pl.ds(ow, wo), :])  # (th, wo, C)
    x = jnp.concatenate(taps, axis=-1)                            # (th, wo, 9C)
    x = x.reshape(th * wo, x.shape[-1])
    y = jnp.dot(x, w_ref[...], preferred_element_type=jnp.float32)
    y = y + b_ref[...]
    o_ref[...] = jnp.maximum(y, 0.0).astype(o_ref.dtype)


# ------------------------------ kernel wrappers ----------------------------

def _mm_bn(x, w, bias, *, relu, out_dtype=jnp.float32, residual=None,
           emit_pre=False):
    """Tiled matmul + BN bias (+relu) (+fused residual / optional preact).

    x: (M, K) bf16, w: (K, N) bf16 (BN scale folded), bias: (1, N) f32,
    residual: optional (M, N) bf16.  M multiple of 512; K, N multiples of 128.
    """
    m, k = x.shape
    _, n = w.shape
    assert m % 512 == 0 and k % 128 == 0 and n % 128 == 0
    # tm=512 halves weight re-streaming; keep 256 when only one 512-tile exists
    # so the grid still has >= 2 parallel M tiles (v7x megacore).
    tm = 512 if m >= 1024 else 256
    tk, tn = _pick_tile(k), _pick_tile(n)
    grid = (m // tm, n // tn, k // tk)

    in_specs = [
        pl.BlockSpec((tm, tk), lambda i, j, kk: (i, kk)),
        pl.BlockSpec((tk, tn), lambda i, j, kk: (kk, j)),
        pl.BlockSpec((1, tn), lambda i, j, kk: (0, j)),
    ]
    out_block = pl.BlockSpec((tm, tn), lambda i, j, kk: (i, j))
    cp = pltpu.CompilerParams(
        dimension_semantics=("parallel", "parallel", "arbitrary"))
    scratch = [pltpu.VMEM((tm, tn), jnp.float32)]

    if residual is None:
        return pl.pallas_call(
            functools.partial(_mm_bn_kernel, relu=relu),
            out_shape=jax.ShapeDtypeStruct((m, n), out_dtype),
            grid=grid,
            in_specs=in_specs,
            out_specs=out_block,
            scratch_shapes=scratch,
            compiler_params=cp,
        )(x, w, bias)

    in_specs = in_specs + [out_block]            # residual, read once per (i,j)
    if emit_pre:
        out_shape = (jax.ShapeDtypeStruct((m, n), jnp.float32),   # preact
                     jax.ShapeDtypeStruct((m, n), jnp.bfloat16))  # relu out
        out_specs = (out_block, out_block)
    else:
        out_shape = jax.ShapeDtypeStruct((m, n), jnp.bfloat16)
        out_specs = out_block
    return pl.pallas_call(
        functools.partial(_mm_bn_res_kernel, emit_pre=emit_pre),
        out_shape=out_shape,
        grid=grid,
        in_specs=in_specs,
        out_specs=out_specs,
        scratch_shapes=scratch,
        compiler_params=cp,
    )(x, w, bias, residual)


def _conv3x3_bn_relu(phases, w2, bias, *, stride, th, ho, wo, hp):
    """phases: (N, n_phases*hp, wp, C) bf16, w2: (9*C, Cout) bf16."""
    n, phw, wp, c = phases.shape
    cout = w2.shape[-1]
    kern = functools.partial(_conv3x3_kernel, stride=stride, th=th, wo=wo,
                             hp=hp)
    # Per-step VMEM is bounded (out block <= 512 x Cout, weights + one image
    # halo slab), well within the 32 MiB default scoped limit on every chip.
    return pl.pallas_call(
        kern,
        out_shape=jax.ShapeDtypeStruct((n, ho * wo, cout), jnp.bfloat16),
        grid=(n, ho // th),
        in_specs=[
            pl.BlockSpec((None, phw, wp, c), lambda b, r: (b, 0, 0, 0)),
            pl.BlockSpec((9 * c, cout), lambda b, r: (0, 0)),
            pl.BlockSpec((1, cout), lambda b, r: (0, 0)),
        ],
        out_specs=pl.BlockSpec((None, th * wo, cout), lambda b, r: (b, r, 0)),
        compiler_params=pltpu.CompilerParams(
            dimension_semantics=("parallel", "parallel")),
    )(phases, w2, bias)


# ---------------------- one-time parameter preparation ---------------------

def prepare_params(p):
    """Fold BN scale into conv weights, pad channels to multiples of 128,
    cast MXU operands to bf16.  Done once, outside the forward pass."""
    cin, planes = p["w1"].shape
    out_c = p["w3"].shape[1]
    cin_p, pln_p, oc_p = _pad128(cin), _pad128(planes), _pad128(out_c)

    def fold(w, s, b, kp, np_):
        ws = w.astype(jnp.float32) * s.astype(jnp.float32)[None, :]
        ws = jnp.pad(ws, ((0, kp - ws.shape[0]), (0, np_ - ws.shape[1])))
        bp = jnp.pad(b.astype(jnp.float32), (0, np_ - b.shape[0]))
        return ws.astype(jnp.bfloat16), bp.reshape(1, np_)

    fp = {}
    fp["w1"], fp["b1"] = fold(p["w1"], p["s1"], p["b1"], cin_p, pln_p)

    # conv2 weights flattened to (9*Cin_p, Cout_p), tap-major rows, so the
    # kernel can do one dot with contraction depth 9*C.
    w2 = (p["w2"].astype(jnp.float32) *
          p["s2"].astype(jnp.float32)[None, None, None, :])
    w2 = w2.reshape(9, planes, planes)
    w2 = jnp.pad(w2, ((0, 0), (0, pln_p - planes), (0, pln_p - planes)))
    fp["w2"] = w2.reshape(9 * pln_p, pln_p).astype(jnp.bfloat16)
    fp["b2"] = jnp.pad(p["b2"].astype(jnp.float32),
                       (0, pln_p - planes)).reshape(1, pln_p)

    fp["w3"], fp["b3"] = fold(p["w3"], p["s3"], p["b3"], pln_p, oc_p)
    if p.get("wsc") is not None:
        fp["wsc"], fp["bsc"] = fold(p["wsc"], p["ssc"], p["bsc"], cin_p, oc_p)
    else:
        fp["wsc"] = None
    return fp


# ------------------------------- forward pass -------------------------------

def bottleneck_forward(x_nchw, fp, *, out_c, stride=1, is_last=False):
    # TODO(synk): chained blocks should stay NHWC bf16 end-to-end; the
    # NCHW<->NHWC transposes (and f32 interface dtype) exist only to match the
    # PyTorch module interface.
    x = jnp.transpose(x_nchw, (0, 2, 3, 1)).astype(jnp.float32)   # NHWC
    n, h, w, cin = x.shape
    cin_p, pln_p = fp["w1"].shape
    oc_p = fp["w3"].shape[1]
    ho = (h - 1) // stride + 1
    wo = (w - 1) // stride + 1

    # ---- conv1 (1x1) + bn1 + relu : bf16 matmul, f32 accumulation ----------
    m0 = n * h * w
    m0p = _pad_to(m0, 512)
    x0 = jnp.pad(x.reshape(m0, cin).astype(jnp.bfloat16),
                 ((0, m0p - m0), (0, cin_p - cin)))
    y1 = _mm_bn(x0, fp["w1"], fp["b1"], relu=True, out_dtype=jnp.bfloat16)
    y1 = y1[:m0].reshape(n, h, w, pln_p)

    # ---- conv2 (3x3, pad=1, stride) + bn2 + relu ----------------------------
    # Spatial halo pad (+ phase decomposition for stride>1); per-phase width is
    # padded to a multiple of 8 so tap windows start sublane-aligned.
    # TODO(synk): this pad/stack is still an XLA-side HBM pass over y1; removing
    # it requires conv1 to emit a halo'd buffer or boundary masking in-kernel.
    s = stride
    hp2 = _pad_to(h + 2, s)
    wp_phase = _pad_to(-(-(w + 2) // s), 8)
    wp2 = wp_phase * s
    y1p = jnp.pad(y1, ((0, 0), (1, hp2 - h - 1), (1, wp2 - w - 1), (0, 0)))
    hp = hp2 // s
    if s == 1:
        phases = y1p                                     # (n, hp, wp, C)
    else:
        phases = jnp.stack(
            [y1p[:, r::s, c::s, :] for r in range(s) for c in range(s)],
            axis=1).reshape(n, s * s * hp, wp_phase, pln_p)
    th = _pick_row_tile(ho, wo)
    y2 = _conv3x3_bn_relu(phases, fp["w2"], fp["b2"],
                          stride=s, th=th, ho=ho, wo=wo, hp=hp)

    # ---- shortcut branch (carried in bf16) ----------------------------------
    m1 = n * ho * wo
    m1p = _pad_to(m1, 512)
    if fp["wsc"] is not None:
        xs = x[:, ::stride, ::stride, :].reshape(m1, cin).astype(jnp.bfloat16)
        xs = jnp.pad(xs, ((0, m1p - m1), (0, cin_p - cin)))
        sc = _mm_bn(xs, fp["wsc"], fp["bsc"], relu=False,
                    out_dtype=jnp.bfloat16)
    else:  # identity shortcut (stride == 1 and cin == out_c)
        sc = jnp.pad(x.reshape(m1, cin).astype(jnp.bfloat16),
                     ((0, m1p - m1), (0, oc_p - cin)))

    # ---- conv3 (1x1) + bn3 + residual add + relu, fused ---------------------
    # `pre` (preact) is only produced when is_last=True; `out` is bf16.
    y2f = jnp.pad(y2.reshape(m1, pln_p), ((0, m1p - m1), (0, 0)))
    res = _mm_bn(y2f, fp["w3"], fp["b3"], relu=False, residual=sc,
                 emit_pre=is_last)
    if is_last:
        pre, out = res
    else:
        out = res

    out = jnp.transpose(
        out[:m1, :out_c].reshape(n, ho, wo, out_c).astype(jnp.float32),
        (0, 3, 1, 2))
    if is_last:
        pre = jnp.transpose(pre[:m1, :out_c].reshape(n, ho, wo, out_c),
                            (0, 3, 1, 2))
        return out, pre
    return out


# ------------------------- deterministic parameters ------------------------

def init_params(key, in_planes, planes, stride, expansion=4):
    eps = 1e-5

    def bn_scale_bias(keys, c):
        kg, kb, km, kv = keys
        gamma = 1.0 + 0.1 * jax.random.normal(kg, (c,), jnp.float32)
        beta = 0.1 * jax.random.normal(kb, (c,), jnp.float32)
        mean = 0.1 * jax.random.normal(km, (c,), jnp.float32)
        var = 1.0 + 0.1 * jnp.abs(jax.random.normal(kv, (c,), jnp.float32))
        scale = gamma / jnp.sqrt(var + eps)
        bias = beta - mean * scale
        return scale, bias

    ks = jax.random.split(key, 16)
    out_c = expansion * planes
    p = {}
    p["w1"] = 0.2 * jax.random.normal(ks[0], (in_planes, planes), jnp.float32)
    p["s1"], p["b1"] = bn_scale_bias(ks[1:5], planes)
    p["w2"] = 0.1 * jax.random.normal(ks[5], (3, 3, planes, planes),
                                      jnp.float32)  # HWIO
    p["s2"], p["b2"] = bn_scale_bias(ks[6:10], planes)
    p["w3"] = 0.2 * jax.random.normal(ks[10], (planes, out_c), jnp.float32)
    p["s3"], p["b3"] = bn_scale_bias(ks[11:15], out_c)
    if stride != 1 or in_planes != out_c:
        ks2 = jax.random.split(ks[15], 5)
        p["wsc"] = 0.2 * jax.random.normal(ks2[0], (in_planes, out_c),
                                           jnp.float32)
        p["ssc"], p["bsc"] = bn_scale_bias(ks2[1:5], out_c)
    else:
        p["wsc"] = None
    return p


# ------------------------------ pure-JAX reference -------------------------

def _ref_forward(x_nchw, p, *, stride=1, is_last=False):
    x = jnp.transpose(x_nchw, (0, 2, 3, 1)).astype(jnp.float32)
    y1 = jnp.maximum(x @ p["w1"] * p["s1"] + p["b1"], 0.0)
    y2 = lax.conv_general_dilated(
        y1, p["w2"], (stride, stride), ((1, 1), (1, 1)),
        dimension_numbers=("NHWC", "HWIO", "NHWC"))
    y2 = jnp.maximum(y2 * p["s2"] + p["b2"], 0.0)
    y3 = y2 @ p["w3"] * p["s3"] + p["b3"]
    if p.get("wsc") is not None:
        xs = x[:, ::stride, ::stride, :]
        sc = xs @ p["wsc"] * p["ssc"] + p["bsc"]
    else:
        sc = x
    pre = y3 + sc
    out = jnp.maximum(pre, 0.0)
    out = jnp.transpose(out, (0, 3, 1, 2))
    pre = jnp.transpose(pre, (0, 3, 1, 2))
    return (out, pre) if is_last else out


# ----------------------------------- main -----------------------------------

if __name__ == "__main__":
    key = jax.random.PRNGKey(0)
    kx, kp1, kp2, kp3, kx3 = jax.random.split(key, 5)

    in_planes, planes = 4, 4
    out_c = 4 * planes
    x = jax.random.normal(kx, (2, in_planes, 16, 16), jnp.float32)  # NCHW

    TOL = dict(rtol=2e-2, atol=2e-2)   # bf16 MXU operands vs f32 reference

    # Config A: stride=1, projection shortcut (in_planes != 4*planes), is_last
    p1 = init_params(kp1, in_planes, planes, stride=1)
    fwd1 = jax.jit(functools.partial(bottleneck_forward, out_c=out_c,
                                     stride=1, is_last=True))
    out1, pre1 = fwd1(x, prepare_params(p1))
    jax.block_until_ready((out1, pre1))
    r_out1, r_pre1 = _ref_forward(x, p1, stride=1, is_last=True)
    assert out1.shape == (2, 16, 16, 16) and pre1.shape == (2, 16, 16, 16)
    assert jnp.allclose(out1, r_out1, **TOL)
    assert jnp.allclose(pre1, r_pre1, **TOL)

    # Config B: stride=2 downsampling (projection) shortcut, is_last=False
    p2 = init_params(kp2, in_planes, planes, stride=2)
    fwd2 = jax.jit(functools.partial(bottleneck_forward, out_c=out_c,
                                     stride=2, is_last=False))
    out2 = fwd2(x, prepare_params(p2))
    jax.block_until_ready(out2)
    r_out2 = _ref_forward(x, p2, stride=2, is_last=False)
    assert out2.shape == (2, 16, 8, 8)
    assert jnp.allclose(out2, r_out2, **TOL)

    # Config C: identity shortcut (in_planes == 4*planes, stride=1)
    x3 = jax.random.normal(kx3, (2, out_c, 16, 16), jnp.float32)
    p3 = init_params(kp3, out_c, planes, stride=1)
    fwd3 = jax.jit(functools.partial(bottleneck_forward, out_c=out_c,
                                     stride=1, is_last=False))
    out3 = fwd3(x3, prepare_params(p3))
    jax.block_until_ready(out3)
    r_out3 = _ref_forward(x3, p3, stride=1, is_last=False)
    assert out3.shape == (2, 16, 16, 16)
    assert jnp.allclose(out3, r_out3, **TOL)

    print("KERNEL_OK")
</pallas_src>

<mosaic_0001>
module attributes {stable_mosaic.version = 11 : i64} {
  func.func @_mm_bn_kernel(%arg0: i32, %arg1: i32, %arg2: i32, %arg3: memref<256x128xbf16, #tpu.memory_space<vmem>>, %arg4: memref<128x128xbf16, #tpu.memory_space<vmem>>, %arg5: memref<1x128xf32, #tpu.memory_space<vmem>>, %arg6: memref<256x128xbf16, #tpu.memory_space<vmem>>, %arg7: memref<256x128xf32, #tpu.memory_space<vmem>>) attributes {dimension_semantics = [#tpu.dimension_semantics<parallel>, #tpu.dimension_semantics<parallel>, #tpu.dimension_semantics<arbitrary>], iteration_bounds = array<i64: 2, 1, 1>, scalar_prefetch = 0 : i64, scratch_operands = 1 : i64, tpu.core_type = #tpu.core_type<tc>, window_params = [{transform_indices = @transform_0, window_bounds = array<i64: 256, 128>}, {transform_indices = @transform_1, window_bounds = array<i64: 128, 128>}, {transform_indices = @transform_2, window_bounds = array<i64: 1, 128>}, {transform_indices = @transform_3, window_bounds = array<i64: 256, 128>}]} {
    %c0_i32 = arith.constant 0 : i32
    %0 = arith.cmpi eq, %arg2, %c0_i32 : i32
    %1 = arith.extui %0 : i1 to i32
    %c0_i32_0 = arith.constant 0 : i32
    %2 = arith.cmpi ne, %1, %c0_i32_0 : i32
    scf.if %2 {
      %cst_10 = arith.constant 0.000000e+00 : f32
      %12 = vector.broadcast %cst_10 : f32 to vector<256x128xf32>
      %c0_11 = arith.constant 0 : index
      %c0_12 = arith.constant 0 : index
      %13 = vector.load %arg7[%c0_11, %c0_12] : memref<256x128xf32, #tpu.memory_space<vmem>>, vector<256x128xf32>
      tpu.vector_store %arg7[%c0_11, %c0_12], %12 {strides = array<i32>} : memref<256x128xf32, #tpu.memory_space<vmem>>, vector<256x128xf32>,
    } else {
    }
    %c0 = arith.constant 0 : index
    %c0_1 = arith.constant 0 : index
    %3 = vector.load %arg7[%c0, %c0_1] : memref<256x128xf32, #tpu.memory_space<vmem>>, vector<256x128xf32>
    %c0_2 = arith.constant 0 : index
    %c0_3 = arith.constant 0 : index
    %4 = vector.load %arg3[%c0_2, %c0_3] : memref<256x128xbf16, #tpu.memory_space<vmem>>, vector<256x128xbf16>
    %c0_4 = arith.constant 0 : index
    %c0_5 = arith.constant 0 : index
    %5 = vector.load %arg4[%c0_4, %c0_5] : memref<128x128xbf16, #tpu.memory_space<vmem>>, vector<128x128xbf16>
    %cst = arith.constant dense<0.000000e+00> : vector<256x128xf32>
    %6 = tpu.matmul %4, %5, %cst {dimension_numbers = #tpu.dot_dimension_numbers<[1], [0], [0], [1], [0, 0, 1, 1], [], []>} : vector<256x128xbf16>, vector<128x128xbf16>, vector<256x128xf32> -> vector<256x128xf32>
    %7 = arith.addf %3, %6 : vector<256x128xf32>
    %c0_6 = arith.constant 0 : index
    %c0_7 = arith.constant 0 : index
    %8 = vector.load %arg7[%c0_6, %c0_7] : memref<256x128xf32, #tpu.memory_space<vmem>>, vector<256x128xf32>
    tpu.vector_store %arg7[%c0_6, %c0_7], %7 {strides = array<i32>} : memref<256x128xf32, #tpu.memory_space<vmem>>, vector<256x128xf32>,
    %c0_i32_8 = arith.constant 0 : i32
    %9 = arith.cmpi eq, %arg2, %c0_i32_8 : i32
    %10 = arith.extui %9 : i1 to i32
    %c0_i32_9 = arith.constant 0 : i32
    %11 = arith.cmpi ne, %10, %c0_i32_9 : i32
    scf.if %11 {
      %c0_10 = arith.constant 0 : index
      %c0_11 = arith.constant 0 : index
      %12 = vector.load %arg7[%c0_10, %c0_11] : memref<256x128xf32, #tpu.memory_space<vmem>>, vector<256x128xf32>
      %c0_12 = arith.constant 0 : index
      %c0_13 = arith.constant 0 : index
      %13 = vector.load %arg5[%c0_12, %c0_13] : memref<1x128xf32, #tpu.memory_space<vmem>>, vector<1x128xf32>
      %14 = vector.broadcast %13 : vector<1x128xf32> to vector<256x128xf32>
      %15 = arith.addf %12, %14 : vector<256x128xf32>
      %16 = arith.truncf %15 : vector<256x128xf32> to vector<256x128xbf16>
      %c0_14 = arith.constant 0 : index
      %c0_15 = arith.constant 0 : index
      %17 = vector.load %arg6[%c0_14, %c0_15] : memref<256x128xbf16, #tpu.memory_space<vmem>>, vector<256x128xbf16>
      tpu.vector_store %arg6[%c0_14, %c0_15], %16 {strides = array<i32>} : memref<256x128xbf16, #tpu.memory_space<vmem>>, vector<256x128xbf16>,
    } else {
    }
    return
  }
  func.func @transform_0(%arg0: i32, %arg1: i32, %arg2: i32) -> (i32, i32) {
    %c0_i32 = arith.constant 0 : i32
    return %arg0, %arg2 : i32, i32
  }
  func.func @transform_1(%arg0: i32, %arg1: i32, %arg2: i32) -> (i32, i32) {
    %c0_i32 = arith.constant 0 : i32
    return %arg2, %arg1 : i32, i32
  }
  func.func @transform_2(%arg0: i32, %arg1: i32, %arg2: i32) -> (i32, i32) {
    %c0_i32 = arith.constant 0 : i32
    %c0_i32_0 = arith.constant 0 : i32
    return %c0_i32, %arg1 : i32, i32
  }
  func.func @transform_3(%arg0: i32, %arg1: i32, %arg2: i32) -> (i32, i32) {
    %c0_i32 = arith.constant 0 : i32
    return %arg0, %arg1 : i32, i32
  }
}

module attributes {stable_mosaic.version = 11 : i64} {
  func.func @_mm_bn_kernel(%arg0: i32, %arg1: i32, %arg2: i32, %arg3: memref<256x128xbf16, #tpu.memory_space<vmem>>, %arg4: memref<128x128xbf16, #tpu.memory_space<vmem>>, %arg5: memref<1x128xf32, #tpu.memory_space<vmem>>, %arg6: memref<256x128xbf16, #tpu.memory_space<vmem>>, %arg7: memref<256x128xf32, #tpu.memory_space<vmem>>) attributes {dimension_semantics = [#tpu.dimension_semantics<parallel>, #tpu.dimension_semantics<parallel>, #tpu.dimension_semantics<arbitrary>], iteration_bounds = array<i64: 2, 1, 1>, scalar_prefetch = 0 : i64, scratch_operands = 1 : i64, tpu.core_type = #tpu.core_type<tc>, window_params = [{transform_indices = @transform_0, window_bounds = array<i64: 256, 128>}, {transform_indices = @transform_1, window_bounds = array<i64: 128, 128>}, {transform_indices = @transform_2, window_bounds = array<i64: 1, 128>}, {transform_indices = @transform_3, window_bounds = array<i64: 256, 128>}]} {
    %c0_i32 = arith.constant 0 : i32
    %0 = arith.cmpi eq, %arg2, %c0_i32 : i32
    %1 = arith.extui %0 : i1 to i32
    %c0_i32_0 = arith.constant 0 : i32
    %2 = arith.cmpi ne, %1, %c0_i32_0 : i32
    scf.if %2 {
      %cst_10 = arith.constant 0.000000e+00 : f32
      %12 = vector.broadcast %cst_10 : f32 to vector<256x128xf32>
      %c0_11 = arith.constant 0 : index
      %c0_12 = arith.constant 0 : index
      %13 = vector.load %arg7[%c0_11, %c0_12] : memref<256x128xf32, #tpu.memory_space<vmem>>, vector<256x128xf32>
      tpu.vector_store %arg7[%c0_11, %c0_12], %12 {strides = array<i32>} : memref<256x128xf32, #tpu.memory_space<vmem>>, vector<256x128xf32>,
    } else {
    }
    %c0 = arith.constant 0 : index
    %c0_1 = arith.constant 0 : index
    %3 = vector.load %arg7[%c0, %c0_1] : memref<256x128xf32, #tpu.memory_space<vmem>>, vector<256x128xf32>
    %c0_2 = arith.constant 0 : index
    %c0_3 = arith.constant 0 : index
    %4 = vector.load %arg3[%c0_2, %c0_3] : memref<256x128xbf16, #tpu.memory_space<vmem>>, vector<256x128xbf16>
    %c0_4 = arith.constant 0 : index
    %c0_5 = arith.constant 0 : index
    %5 = vector.load %arg4[%c0_4, %c0_5] : memref<128x128xbf16, #tpu.memory_space<vmem>>, vector<128x128xbf16>
    %cst = arith.constant dense<0.000000e+00> : vector<256x128xf32>
    %6 = tpu.matmul %4, %5, %cst {dimension_numbers = #tpu.dot_dimension_numbers<[1], [0], [0], [1], [0, 0, 1, 1], [], []>} : vector<256x128xbf16>, vector<128x128xbf16>, vector<256x128xf32> -> vector<256x128xf32>
    %7 = arith.addf %3, %6 : vector<256x128xf32>
    %c0_6 = arith.constant 0 : index
    %c0_7 = arith.constant 0 : index
    %8 = vector.load %arg7[%c0_6, %c0_7] : memref<256x128xf32, #tpu.memory_space<vmem>>, vector<256x128xf32>
    tpu.vector_store %arg7[%c0_6, %c0_7], %7 {strides = array<i32>} : memref<256x128xf32, #tpu.memory_space<vmem>>, vector<256x128xf32>,
    %c0_i32_8 = arith.constant 0 : i32
    %9 = arith.cmpi eq, %arg2, %c0_i32_8 : i32
    %10 = arith.extui %9 : i1 to i32
    %c0_i32_9 = arith.constant 0 : i32
    %11 = arith.cmpi ne, %10, %c0_i32_9 : i32
    scf.if %11 {
      %c0_10 = arith.constant 0 : index
      %c0_11 = arith.constant 0 : index
      %12 = vector.load %arg7[%c0_10, %c0_11] : memref<256x128xf32, #tpu.memory_space<vmem>>, vector<256x128xf32>
      %c0_12 = arith.constant 0 : index
      %c0_13 = arith.constant 0 : index
      %13 = vector.load %arg5[%c0_12, %c0_13] : memref<1x128xf32, #tpu.memory_space<vmem>>, vector<1x128xf32>
      %14 = vector.broadcast %13 : vector<1x128xf32> to vector<256x128xf32>
      %15 = arith.addf %12, %14 : vector<256x128xf32>
      %cst_14 = arith.constant 0.000000e+00 : f32
      %16 = vector.broadcast %cst_14 : f32 to vector<256x128xf32>
      %17 = arith.maximumf %15, %16 : vector<256x128xf32>
      %18 = arith.truncf %17 : vector<256x128xf32> to vector<256x128xbf16>
      %c0_15 = arith.constant 0 : index
      %c0_16 = arith.constant 0 : index
      %19 = vector.load %arg6[%c0_15, %c0_16] : memref<256x128xbf16, #tpu.memory_space<vmem>>, vector<256x128xbf16>
      tpu.vector_store %arg6[%c0_15, %c0_16], %18 {strides = array<i32>} : memref<256x128xbf16, #tpu.memory_space<vmem>>, vector<256x128xbf16>,
    } else {
    }
    return
  }
  func.func @transform_0(%arg0: i32, %arg1: i32, %arg2: i32) -> (i32, i32) {
    %c0_i32 = arith.constant 0 : i32
    return %arg0, %arg2 : i32, i32
  }
  func.func @transform_1(%arg0: i32, %arg1: i32, %arg2: i32) -> (i32, i32) {
    %c0_i32 = arith.constant 0 : i32
    return %arg2, %arg1 : i32, i32
  }
  func.func @transform_2(%arg0: i32, %arg1: i32, %arg2: i32) -> (i32, i32) {
    %c0_i32 = arith.constant 0 : i32
    %c0_i32_0 = arith.constant 0 : i32
    return %c0_i32, %arg1 : i32, i32
  }
  func.func @transform_3(%arg0: i32, %arg1: i32, %arg2: i32) -> (i32, i32) {
    %c0_i32 = arith.constant 0 : i32
    return %arg0, %arg1 : i32, i32
  }
}

module attributes {stable_mosaic.version = 11 : i64} {
  func.func @_conv3x3_kernel(%arg0: i32, %arg1: i32, %arg2: memref<1x18x24x128xbf16, #tpu.memory_space<vmem>>, %arg3: memref<1152x128xbf16, #tpu.memory_space<vmem>>, %arg4: memref<1x128xf32, #tpu.memory_space<vmem>>, %arg5: memref<1x128x128xbf16, #tpu.memory_space<vmem>>) attributes {dimension_semantics = [#tpu.dimension_semantics<parallel>, #tpu.dimension_semantics<parallel>], iteration_bounds = array<i64: 2, 2>, scalar_prefetch = 0 : i64, scratch_operands = 0 : i64, tpu.core_type = #tpu.core_type<tc>, window_params = [{transform_indices = @transform_0, window_bounds = array<i64: 1, 18, 24, 128>}, {pipeline_mode = #tpu.pipeline_mode<synchronous>, transform_indices = @transform_1, window_bounds = array<i64: 1152, 128>}, {pipeline_mode = #tpu.pipeline_mode<synchronous>, transform_indices = @transform_2, window_bounds = array<i64: 1, 128>}, {transform_indices = @transform_3, window_bounds = array<i64: 1, 128, 128>}]} {
    %c8_i32 = arith.constant 8 : i32
    %0 = arith.muli %arg1, %c8_i32 : i32
    %c0_i32 = arith.constant 0 : i32
    %1 = arith.addi %c0_i32, %0 : i32
    %c0_i32_0 = arith.constant 0 : i32
    %2 = arith.addi %1, %c0_i32_0 : i32
    %c0 = arith.constant 0 : index
    %3 = arith.index_cast %2 : i32 to index
    %c0_1 = arith.constant 0 : index
    %c0_2 = arith.constant 0 : index
    %4 = vector.load %arg2[%c0, %3, %c0_1, %c0_2] : memref<1x18x24x128xbf16, #tpu.memory_space<vmem>>, vector<1x8x16x128xbf16>
    %5 = vector.shape_cast %4 : vector<1x8x16x128xbf16> to vector<8x16x128xbf16>
    %c0_i32_3 = arith.constant 0 : i32
    %6 = arith.addi %c0_i32_3, %0 : i32
    %c0_i32_4 = arith.constant 0 : i32
    %7 = arith.addi %6, %c0_i32_4 : i32
    %c0_5 = arith.constant 0 : index
    %8 = arith.index_cast %7 : i32 to index
    %c1 = arith.constant 1 : index
    %c0_6 = arith.constant 0 : index
    %9 = vector.load %arg2[%c0_5, %8, %c1, %c0_6] : memref<1x18x24x128xbf16, #tpu.memory_space<vmem>>, vector<1x8x16x128xbf16>
    %10 = vector.shape_cast %9 : vector<1x8x16x128xbf16> to vector<8x16x128xbf16>
    %c0_i32_7 = arith.constant 0 : i32
    %11 = arith.addi %c0_i32_7, %0 : i32
    %c0_i32_8 = arith.constant 0 : i32
    %12 = arith.addi %11, %c0_i32_8 : i32
    %c0_9 = arith.constant 0 : index
    %13 = arith.index_cast %12 : i32 to index
    %c2 = arith.constant 2 : index
    %c0_10 = arith.constant 0 : index
    %14 = vector.load %arg2[%c0_9, %13, %c2, %c0_10] : memref<1x18x24x128xbf16, #tpu.memory_space<vmem>>, vector<1x8x16x128xbf16>
    %15 = vector.shape_cast %14 : vector<1x8x16x128xbf16> to vector<8x16x128xbf16>
    %c0_i32_11 = arith.constant 0 : i32
    %16 = arith.addi %c0_i32_11, %0 : i32
    %c1_i32 = arith.constant 1 : i32
    %17 = arith.addi %16, %c1_i32 : i32
    %c0_12 = arith.constant 0 : index
    %18 = arith.index_cast %17 : i32 to index
    %c0_13 = arith.constant 0 : index
    %c0_14 = arith.constant 0 : index
    %19 = vector.load %arg2[%c0_12, %18, %c0_13, %c0_14] : memref<1x18x24x128xbf16, #tpu.memory_space<vmem>>, vector<1x8x16x128xbf16>
    %20 = vector.shape_cast %19 : vector<1x8x16x128xbf16> to vector<8x16x128xbf16>
    %c0_i32_15 = arith.constant 0 : i32
    %21 = arith.addi %c0_i32_15, %0 : i32
    %c1_i32_16 = arith.constant 1 : i32
    %22 = arith.addi %21, %c1_i32_16 : i32
    %c0_17 = arith.constant 0 : index
    %23 = arith.index_cast %22 : i32 to index
    %c1_18 = arith.constant 1 : index
    %c0_19 = arith.constant 0 : index
    %24 = vector.load %arg2[%c0_17, %23, %c1_18, %c0_19] : memref<1x18x24x128xbf16, #tpu.memory_space<vmem>>, vector<1x8x16x128xbf16>
    %25 = vector.shape_cast %24 : vector<1x8x16x128xbf16> to vector<8x16x128xbf16>
    %c0_i32_20 = arith.constant 0 : i32
    %26 = arith.addi %c0_i32_20, %0 : i32
    %c1_i32_21 = arith.constant 1 : i32
    %27 = arith.addi %26, %c1_i32_21 : i32
    %c0_22 = arith.constant 0 : index
    %28 = arith.index_cast %27 : i32 to index
    %c2_23 = arith.constant 2 : index
    %c0_24 = arith.constant 0 : index
    %29 = vector.load %arg2[%c0_22, %28, %c2_23, %c0_24] : memref<1x18x24x128xbf16, #tpu.memory_space<vmem>>, vector<1x8x16x128xbf16>
    %30 = vector.shape_cast %29 : vector<1x8x16x128xbf16> to vector<8x16x128xbf16>
    %c0_i32_25 = arith.constant 0 : i32
    %31 = arith.addi %c0_i32_25, %0 : i32
    %c2_i32 = arith.constant 2 : i32
    %32 = arith.addi %31, %c2_i32 : i32
    %c0_26 = arith.constant 0 : index
    %33 = arith.index_cast %32 : i32 to index
    %c0_27 = arith.constant 0 : index
    %c0_28 = arith.constant 0 : index
    %34 = vector.load %arg2[%c0_26, %33, %c0_27, %c0_28] : memref<1x18x24x128xbf16, #tpu.memory_space<vmem>>, vector<1x8x16x128xbf16>
    %35 = vector.shape_cast %34 : vector<1x8x16x128xbf16> to vector<8x16x128xbf16>
    %c0_i32_29 = arith.constant 0 : i32
    %36 = arith.addi %c0_i32_29, %0 : i32
    %c2_i32_30 = arith.constant 2 : i32
    %37 = arith.addi %36, %c2_i32_30 : i32
    %c0_31 = arith.constant 0 : index
    %38 = arith.index_cast %37 : i32 to index
    %c1_32 = arith.constant 1 : index
    %c0_33 = arith.constant 0 : index
    %39 = vector.load %arg2[%c0_31, %38, %c1_32, %c0_33] : memref<1x18x24x128xbf16, #tpu.memory_space<vmem>>, vector<1x8x16x128xbf16>
    %40 = vector.shape_cast %39 : vector<1x8x16x128xbf16> to vector<8x16x128xbf16>
    %c0_i32_34 = arith.constant 0 : i32
    %41 = arith.addi %c0_i32_34, %0 : i32
    %c2_i32_35 = arith.constant 2 : i32
    %42 = arith.addi %41, %c2_i32_35 : i32
    %c0_36 = arith.constant 0 : index
    %43 = arith.index_cast %42 : i32 to index
    %c2_37 = arith.constant 2 : index
    %c0_38 = arith.constant 0 : index
    %44 = vector.load %arg2[%c0_36, %43, %c2_37, %c0_38] : memref<1x18x24x128xbf16, #tpu.memory_space<vmem>>, vector<1x8x16x128xbf16>
    %45 = vector.shape_cast %44 : vector<1x8x16x128xbf16> to vector<8x16x128xbf16>
    %46 = tpu.concatenate %5, %10, %15, %20, %25, %30, %35, %40, %45 in 2 : vector<8x16x128xbf16>, vector<8x16x128xbf16>, vector<8x16x128xbf16>, vector<8x16x128xbf16>, vector<8x16x128xbf16>, vector<8x16x128xbf16>, vector<8x16x128xbf16>, vector<8x16x128xbf16>, vector<8x16x128xbf16> -> vector<8x16x1152xbf16>
    %47 = vector.shape_cast %46 : vector<8x16x1152xbf16> to vector<128x1152xbf16>
    %c0_39 = arith.constant 0 : index
    %c0_40 = arith.constant 0 : index
    %48 = vector.load %arg3[%c0_39, %c0_40] : memref<1152x128xbf16, #tpu.memory_space<vmem>>, vector<1152x128xbf16>
    %cst = arith.constant dense<0.000000e+00> : vector<128x128xf32>
    %49 = tpu.matmul %47, %48, %cst {dimension_numbers = #tpu.dot_dimension_numbers<[1], [0], [0], [1], [0, 0, 1, 1], [], []>} : vector<128x1152xbf16>, vector<1152x128xbf16>, vector<128x128xf32> -> vector<128x128xf32>
    %c0_41 = arith.constant 0 : index
    %c0_42 = arith.constant 0 : index
    %50 = vector.load %arg4[%c0_41, %c0_42] : memref<1x128xf32, #tpu.memory_space<vmem>>, vector<1x128xf32>
    %51 = vector.broadcast %50 : vector<1x128xf32> to vector<128x128xf32>
    %52 = arith.addf %49, %51 : vector<128x128xf32>
    %cst_43 = arith.constant 0.000000e+00 : f32
    %53 = vector.broadcast %cst_43 : f32 to vector<128x128xf32>
    %54 = arith.maximumf %52, %53 : vector<128x128xf32>
    %55 = arith.truncf %54 : vector<128x128xf32> to vector<128x128xbf16>
    %c0_44 = arith.constant 0 : index
    %c0_45 = arith.constant 0 : index
    %c0_46 = arith.constant 0 : index
    %56 = vector.load %arg5[%c0_44, %c0_45, %c0_46] : memref<1x128x128xbf16, #tpu.memory_space<vmem>>, vector<1x128x128xbf16>
    %57 = vector.shape_cast %56 : vector<1x128x128xbf16> to vector<128x128xbf16>
    %58 = vector.shape_cast %55 : vector<128x128xbf16> to vector<1x128x128xbf16>
    tpu.vector_store %arg5[%c0_44, %c0_45, %c0_46], %58 {strides = array<i32>} : memref<1x128x128xbf16, #tpu.memory_space<vmem>>, vector<1x128x128xbf16>,
    return
  }
  func.func @transform_0(%arg0: i32, %arg1: i32) -> (i32, i32, i32, i32) {
    %c0_i32 = arith.constant 0 : i32
    %c0_i32_0 = arith.constant 0 : i32
    %c0_i32_1 = arith.constant 0 : i32
    %c0_i32_2 = arith.constant 0 : i32
    return %arg0, %c0_i32, %c0_i32_0, %c0_i32_1 : i32, i32, i32, i32
  }
  func.func @transform_1(%arg0: i32, %arg1: i32) -> (i32, i32) {
    %c0_i32 = arith.constant 0 : i32
    %c0_i32_0 = arith.constant 0 : i32
    %c0_i32_1 = arith.constant 0 : i32
    return %c0_i32, %c0_i32_0 : i32, i32
  }
  func.func @transform_2(%arg0: i32, %arg1: i32) -> (i32, i32) {
    %c0_i32 = arith.constant 0 : i32
    %c0_i32_0 = arith.constant 0 : i32
    %c0_i32_1 = arith.constant 0 : i32
    return %c0_i32, %c0_i32_0 : i32, i32
  }
  func.func @transform_3(%arg0: i32, %arg1: i32) -> (i32, i32, i32) {
    %c0_i32 = arith.constant 0 : i32
    %c0_i32_0 = arith.constant 0 : i32
    return %arg0, %arg1, %c0_i32 : i32, i32, i32
  }
}

module attributes {stable_mosaic.version = 11 : i64} {
  func.func @_mm_bn_res_kernel(%arg0: i32, %arg1: i32, %arg2: i32, %arg3: memref<256x128xbf16, #tpu.memory_space<vmem>>, %arg4: memref<128x128xbf16, #tpu.memory_space<vmem>>, %arg5: memref<1x128xf32, #tpu.memory_space<vmem>>, %arg6: memref<256x128xbf16, #tpu.memory_space<vmem>>, %arg7: memref<256x128xf32, #tpu.memory_space<vmem>>, %arg8: memref<256x128xbf16, #tpu.memory_space<vmem>>, %arg9: memref<256x128xf32, #tpu.memory_space<vmem>>) attributes {dimension_semantics = [#tpu.dimension_semantics<parallel>, #tpu.dimension_semantics<parallel>, #tpu.dimension_semantics<arbitrary>], iteration_bounds = array<i64: 2, 1, 1>, scalar_prefetch = 0 : i64, scratch_operands = 1 : i64, tpu.core_type = #tpu.core_type<tc>, window_params = [{transform_indices = @transform_0, window_bounds = array<i64: 256, 128>}, {transform_indices = @transform_1, window_bounds = array<i64: 128, 128>}, {transform_indices = @transform_2, window_bounds = array<i64: 1, 128>}, {transform_indices = @transform_3, window_bounds = array<i64: 256, 128>}, {transform_indices = @transform_4, window_bounds = array<i64: 256, 128>}, {transform_indices = @transform_5, window_bounds = array<i64: 256, 128>}]} {
    %c0_i32 = arith.constant 0 : i32
    %0 = arith.cmpi eq, %arg2, %c0_i32 : i32
    %1 = arith.extui %0 : i1 to i32
    %c0_i32_0 = arith.constant 0 : i32
    %2 = arith.cmpi ne, %1, %c0_i32_0 : i32
    scf.if %2 {
      %cst_10 = arith.constant 0.000000e+00 : f32
      %12 = vector.broadcast %cst_10 : f32 to vector<256x128xf32>
      %c0_11 = arith.constant 0 : index
      %c0_12 = arith.constant 0 : index
      %13 = vector.load %arg9[%c0_11, %c0_12] : memref<256x128xf32, #tpu.memory_space<vmem>>, vector<256x128xf32>
      tpu.vector_store %arg9[%c0_11, %c0_12], %12 {strides = array<i32>} : memref<256x128xf32, #tpu.memory_space<vmem>>, vector<256x128xf32>,
    } else {
    }
    %c0 = arith.constant 0 : index
    %c0_1 = arith.constant 0 : index
    %3 = vector.load %arg9[%c0, %c0_1] : memref<256x128xf32, #tpu.memory_space<vmem>>, vector<256x128xf32>
    %c0_2 = arith.constant 0 : index
    %c0_3 = arith.constant 0 : index
    %4 = vector.load %arg3[%c0_2, %c0_3] : memref<256x128xbf16, #tpu.memory_space<vmem>>, vector<256x128xbf16>
    %c0_4 = arith.constant 0 : index
    %c0_5 = arith.constant 0 : index
    %5 = vector.load %arg4[%c0_4, %c0_5] : memref<128x128xbf16, #tpu.memory_space<vmem>>, vector<128x128xbf16>
    %cst = arith.constant dense<0.000000e+00> : vector<256x128xf32>
    %6 = tpu.matmul %4, %5, %cst {dimension_numbers = #tpu.dot_dimension_numbers<[1], [0], [0], [1], [0, 0, 1, 1], [], []>} : vector<256x128xbf16>, vector<128x128xbf16>, vector<256x128xf32> -> vector<256x128xf32>
    %7 = arith.addf %3, %6 : vector<256x128xf32>
    %c0_6 = arith.constant 0 : index
    %c0_7 = arith.constant 0 : index
    %8 = vector.load %arg9[%c0_6, %c0_7] : memref<256x128xf32, #tpu.memory_space<vmem>>, vector<256x128xf32>
    tpu.vector_store %arg9[%c0_6, %c0_7], %7 {strides = array<i32>} : memref<256x128xf32, #tpu.memory_space<vmem>>, vector<256x128xf32>,
    %c0_i32_8 = arith.constant 0 : i32
    %9 = arith.cmpi eq, %arg2, %c0_i32_8 : i32
    %10 = arith.extui %9 : i1 to i32
    %c0_i32_9 = arith.constant 0 : i32
    %11 = arith.cmpi ne, %10, %c0_i32_9 : i32
    scf.if %11 {
      %c0_10 = arith.constant 0 : index
      %c0_11 = arith.constant 0 : index
      %12 = vector.load %arg9[%c0_10, %c0_11] : memref<256x128xf32, #tpu.memory_space<vmem>>, vector<256x128xf32>
      %c0_12 = arith.constant 0 : index
      %c0_13 = arith.constant 0 : index
      %13 = vector.load %arg5[%c0_12, %c0_13] : memref<1x128xf32, #tpu.memory_space<vmem>>, vector<1x128xf32>
      %14 = vector.broadcast %13 : vector<1x128xf32> to vector<256x128xf32>
      %15 = arith.addf %12, %14 : vector<256x128xf32>
      %c0_14 = arith.constant 0 : index
      %c0_15 = arith.constant 0 : index
      %16 = vector.load %arg6[%c0_14, %c0_15] : memref<256x128xbf16, #tpu.memory_space<vmem>>, vector<256x128xbf16>
      %17 = arith.extf %16 : vector<256x128xbf16> to vector<256x128xf32>
      %18 = arith.addf %15, %17 : vector<256x128xf32>
      %c0_16 = arith.constant 0 : index
      %c0_17 = arith.constant 0 : index
      %19 = vector.load %arg7[%c0_16, %c0_17] : memref<256x128xf32, #tpu.memory_space<vmem>>, vector<256x128xf32>
      tpu.vector_store %arg7[%c0_16, %c0_17], %18 {strides = array<i32>} : memref<256x128xf32, #tpu.memory_space<vmem>>, vector<256x128xf32>,
      %cst_18 = arith.constant 0.000000e+00 : f32
      %20 = vector.broadcast %cst_18 : f32 to vector<256x128xf32>
      %21 = arith.maximumf %18, %20 : vector<256x128xf32>
      %22 = arith.truncf %21 : vector<256x128xf32> to vector<256x128xbf16>
      %c0_19 = arith.constant 0 : index
      %c0_20 = arith.constant 0 : index
      %23 = vector.load %arg8[%c0_19, %c0_20] : memref<256x128xbf16, #tpu.memory_space<vmem>>, vector<256x128xbf16>
      tpu.vector_store %arg8[%c0_19, %c0_20], %22 {strides = array<i32>} : memref<256x128xbf16, #tpu.memory_space<vmem>>, vector<256x128xbf16>,
    } else {
    }
    return
  }
  func.func @transform_0(%arg0: i32, %arg1: i32, %arg2: i32) -> (i32, i32) {
    %c0_i32 = arith.constant 0 : i32
    return %arg0, %arg2 : i32, i32
  }
  func.func @transform_1(%arg0: i32, %arg1: i32, %arg2: i32) -> (i32, i32) {
    %c0_i32 = arith.constant 0 : i32
    return %arg2, %arg1 : i32, i32
  }
  func.func @transform_2(%arg0: i32, %arg1: i32, %arg2: i32) -> (i32, i32) {
    %c0_i32 = arith.constant 0 : i32
    %c0_i32_0 = arith.constant 0 : i32
    return %c0_i32, %arg1 : i32, i32
  }
  func.func @transform_3(%arg0: i32, %arg1: i32, %arg2: i32) -> (i32, i32) {
    %c0_i32 = arith.constant 0 : i32
    return %arg0, %arg1 : i32, i32
  }
  func.func @transform_4(%arg0: i32, %arg1: i32, %arg2: i32) -> (i32, i32) {
    %c0_i32 = arith.constant 0 : i32
    return %arg0, %arg1 : i32, i32
  }
  func.func @transform_5(%arg0: i32, %arg1: i32, %arg2: i32) -> (i32, i32) {
    %c0_i32 = arith.constant 0 : i32
    return %arg0, %arg1 : i32, i32
  }
}

</mosaic_0001>

<llo_original>
// kernel: bottleneck_forward.6
$region0: #{bottleneck_forward.6}
  #allocation0 [shape = 'u32[]', space=smem, size = 0x4, offset = 0x4, fixed_abs, tag = 'smem constant byte address 0x4 - core index']
  #allocation1 [shape = 'u32[144,128]{1,0:T(1,128)}', space=vmem, size = 0x12000, scoped, tag = 'internal scratch']
  #allocation2 [shape = 'f32[256,128]{1,0:T(8,128)}', space=vmem, size = 0x20000, scoped, tag = 'scratch operand']
  %s0 = inlined_call_operand.vmem [shape: bf16[512,128], index: 0, kind: input, shape index: {}]
  %s1 = inlined_call_operand.vmem [shape: bf16[128,128], index: 1, kind: input, shape index: {}]
  %s2 = inlined_call_operand.vmem [shape: f32[1,128], index: 2, kind: input, shape index: {}]
  %s3 = inlined_call_operand.vmem [shape: bf16[512,128], index: 3, kind: output, shape index: {}]
  %s4 = sld [smem:[#allocation0]]
  $region53: #{bottleneck_forward.6} parent=0
    _
  %s6 = ssub.s32 1, %s4
  %s7 = scalar_select 0, %s6, %s4
  loop: start=0, step=1, limit=4
  $region2: #{bottleneck_forward.6} parent=0 // loop_pre_header
    _
  $region3: #{bottleneck_forward.6} parent=0 // loop_header
    %s9 = sphi 0, %s13
    %p10 = scmp.ge.s32.totalorder %s9, 4
    %s16 = sphi 0, %s35
    %s17 = sphi 0, %s31
    %s18 = sphi 0, %s27
    %s19 = sphi 0, %s16
    %s20 = sphi 0, %s17
    %s21 = sphi 0, %s18
    %s22 = sphi 0, %s19
    %s23 = sphi 0, %s20
    %s24 = sphi 0, %s21
    %s40 = sphi 0, %s42
    %s43 = sphi 0, %s40
    %s44 = sphi 0, %s43
    %s60 = sphi 0, %s44
    %s68 = sphi 0, %s70
    %s71 = sphi 0, %s68
    %s72 = sphi 0, %s71
    %s88 = sphi 0, %s72
    %s94 = sphi 0, %s96
    %s97 = sphi 0, %s94
    %s98 = sphi 0, %s97
    %s114 = sphi 0, %s98
    %s122 = sphi 0, %s124
    %s125 = sphi 0, %s122
    %s126 = sphi 0, %s125
    %s142 = sphi 0, %s126
  $region4: #{bottleneck_forward.6} parent=0 // loop_header_branch
    %12 = sbr.rel (%p10) target = $region8
  $region5: #{bottleneck_forward.6} parent=0 // loop_body
    %s14 = ssub.s32 %s9, 1
    %s15 = ssub.s32 %s9, 2
    %s25 = sadd.s32 1, %s18
    %p26 = scmp.ge.s32.totalorder %s25, 1
    %s27 = scalar_select %p26, 0, %s25
    %s28 = sadd.s32 1, %s17
    %s29 = scalar_select %p26, %s28, %s17
    %p30 = scmp.ge.s32.totalorder %s29, 1
    %s31 = scalar_select %p30, 0, %s29
    %s32 = sadd.s32 1, %s16
    %s33 = scalar_select %p30, %s32, %s16
    %p34 = scmp.ge.s32.totalorder %s33, 2
    %s35 = scalar_select %p34, 0, %s33
    %s36 = ssub.s32 %s16, %s35
    %s37 = ssub.s32 %s18, %s27
    %s38 = sor.u32 %s36, %s37
    %p39 = scmp.eq.s32.totalorder %s38, 0
    %s41 = sadd.s32 %s40, 1
    %s42 = scalar_select %p39, %s40, %s41
    %p45 = pneg %p39
    %p46 = scmp.eq.s32.totalorder %s9, 1
    %p47 = por %p45, %p46
    %p48 = scmp.ne.s32.totalorder %s40, %s43
    %p49 = scmp.eq.s32.totalorder %s9, 0
    %p50 = por %p48, %p49
    %p51 = scmp.ne.s32.totalorder %s40, %s43
    %p52 = scmp.eq.s32.totalorder %s14, 1
    %p53 = por %p51, %p52
    %p54 = scmp.ne.s32.totalorder %s43, %s44
    %p55 = scmp.eq.s32.totalorder %s14, 0
    %p56 = por %p54, %p55
    %p57 = scmp.ne.s32.totalorder %s43, %s44
    %p58 = scmp.eq.s32.totalorder %s15, 1
    %p59 = por %p57, %p58
    %p61 = scmp.ne.s32.totalorder %s44, %s60
    %p62 = scmp.eq.s32.totalorder %s15, 0
    %p63 = por %p61, %p62
    %s64 = ssub.s32 %s18, %s27
    %s65 = ssub.s32 %s17, %s31
    %s66 = sor.u32 %s64, %s65
    %p67 = scmp.eq.s32.totalorder %s66, 0
    %s69 = sadd.s32 %s68, 1
    %s70 = scalar_select %p67, %s68, %s69
    %p73 = pneg %p67
    %p74 = scmp.eq.s32.totalorder %s9, 1
    %p75 = por %p73, %p74
    %p76 = scmp.ne.s32.totalorder %s68, %s71
    %p77 = scmp.eq.s32.totalorder %s9, 0
    %p78 = por %p76, %p77
    %p79 = scmp.ne.s32.totalorder %s68, %s71
    %p80 = scmp.eq.s32.totalorder %s14, 1
    %p81 = por %p79, %p80
    %p82 = scmp.ne.s32.totalorder %s71, %s72
    %p83 = scmp.eq.s32.totalorder %s14, 0
    %p84 = por %p82, %p83
    %p85 = scmp.ne.s32.totalorder %s71, %s72
    %p86 = scmp.eq.s32.totalorder %s15, 1
    %p87 = por %p85, %p86
    %p89 = scmp.ne.s32.totalorder %s72, %s88
    %p90 = scmp.eq.s32.totalorder %s15, 0
    %p91 = por %p89, %p90
    %s92 = ssub.s32 %s17, %s31
    %p93 = scmp.eq.s32.totalorder %s92, 0
    %s95 = sadd.s32 %s94, 1
    %s96 = scalar_select %p93, %s94, %s95
    %p99 = pneg %p93
    %p100 = scmp.eq.s32.totalorder %s9, 1
    %p101 = por %p99, %p100
    %p102 = scmp.ne.s32.totalorder %s94, %s97
    %p103 = scmp.eq.s32.totalorder %s9, 0
    %p104 = por %p102, %p103
    %p105 = scmp.ne.s32.totalorder %s94, %s97
    %p106 = scmp.eq.s32.totalorder %s14, 1
    %p107 = por %p105, %p106
    %p108 = scmp.ne.s32.totalorder %s97, %s98
    %p109 = scmp.eq.s32.totalorder %s14, 0
    %p110 = por %p108, %p109
    %p111 = scmp.ne.s32.totalorder %s97, %s98
    %p112 = scmp.eq.s32.totalorder %s15, 1
    %p113 = por %p111, %p112
    %p115 = scmp.ne.s32.totalorder %s98, %s114
    %p116 = scmp.eq.s32.totalorder %s15, 0
    %p117 = por %p115, %p116
    %s118 = ssub.s32 %s16, %s35
    %s119 = ssub.s32 %s17, %s31
    %s120 = sor.u32 %s118, %s119
    %p121 = scmp.eq.s32.totalorder %s120, 0
    %s123 = sadd.s32 %s122, 1
    %s124 = scalar_select %p121, %s122, %s123
    %p127 = pneg %p121
    %p128 = scmp.eq.s32.totalorder %s9, 1
    %p129 = por %p127, %p128
    %p130 = scmp.ne.s32.totalorder %s122, %s125
    %p131 = scmp.eq.s32.totalorder %s9, 0
    %p132 = por %p130, %p131
    %p133 = scmp.ne.s32.totalorder %s122, %s125
    %p134 = scmp.eq.s32.totalorder %s14, 1
    %p135 = por %p133, %p134
    %p136 = scmp.ne.s32.totalorder %s125, %s126
    %p137 = scmp.eq.s32.totalorder %s14, 0
    %p138 = por %p136, %p137
    %p139 = scmp.ne.s32.totalorder %s125, %s126
    %p140 = scmp.eq.s32.totalorder %s15, 1
    %p141 = por %p139, %p140
    %p143 = scmp.ne.s32.totalorder %s126, %s142
    %p144 = scmp.eq.s32.totalorder %s15, 0
    %p145 = por %p143, %p144
    %p146 = scmp.le.s32.totalorder 1, %s9
    %p147 = scmp.lt.s32.totalorder %s9, 3
    %p148 = pnand %p146, %p147
    %p149 = pneg %p148
    // Predicated region
    $region9: #{bottleneck_forward.6} parent=5 // pred_check
      _
    $region10: #{bottleneck_forward.6} parent=5 // pred_check_branch
      %151 = sbr.rel (%p148) target = $region12
    $region11: #{bottleneck_forward.6} parent=5 // pred_region
      %s152 = ssub.s32 %s9, 1
      // Predicated region
      $region13: #{bottleneck_forward.6} parent=11 // pred_check
        %p153 = pneg %p84
      $region14: #{bottleneck_forward.6} parent=11 // pred_check_branch
        %155 = sbr.rel (%p153) target = $region16
      $region15: #{bottleneck_forward.6} parent=11 // pred_region
        %s156 = smul.u32 16, %s21
        %p157 = scmp.lt.s32.totalorder %s156, 15
        %s158 = scalar_select %p157, %s156, 15
        %p159 = scmp.lt.s32.totalorder %s20, 0
        %s160 = scalar_select %p159, %s20, 0
        %s161 = sadd.s32 %s160, %s158
        %s162 = smul.addr %s161, 4
        %s163 = scalar_lea.vmem %s1, %s162
        %s164 = smul.u32 16, %s21
      $region16: #{bottleneck_forward.6} parent=11 // pred_fallthru
        _
      // Predicated region
      $region17: #{bottleneck_forward.6} parent=11 // pred_check
        %p165 = pneg %p110
      $region18: #{bottleneck_forward.6} parent=11 // pred_check_branch
        %167 = sbr.rel (%p165) target = $region20
      $region19: #{bottleneck_forward.6} parent=11 // pred_region
        %p168 = scmp.lt.s32.totalorder %s20, 0
        %s169 = scalar_select %p168, %s20, 0
        %s170 = scalar_lea.vmem %s2, %s169
      $region20: #{bottleneck_forward.6} parent=11 // pred_fallthru
        _
    $region12: #{bottleneck_forward.6} parent=5 // pred_fallthru
      _
    %p171 = scmp.lt.s32.totalorder %s9, 2
    // Predicated region
    $region21: #{bottleneck_forward.6} parent=5 // pred_check
      %p172 = pneg %p171
    $region22: #{bottleneck_forward.6} parent=5 // pred_check_branch
      %174 = sbr.rel (%p172) target = $region24
    $region23: #{bottleneck_forward.6} parent=5 // pred_region
      // Predicated region
      $region25: #{bottleneck_forward.6} parent=23 // pred_check
        %p175 = pneg %p50
      $region26: #{bottleneck_forward.6} parent=23 // pred_check_branch
        %177 = sbr.rel (%p175) target = $region28
      $region27: #{bottleneck_forward.6} parent=23 // pred_region
        %s178 = smul.u32 32, %s16
        %p179 = scmp.lt.s32.totalorder %s178, 63
        %s180 = scalar_select %p179, %s178, 63
        %p181 = scmp.lt.s32.totalorder %s18, 0
        %s182 = scalar_select %p181, %s18, 0
        %s183 = sadd.s32 %s182, %s180
        %s184 = smul.addr %s183, 4
        %s185 = scalar_lea.vmem %s0, %s184
        %s186 = smul.u32 32, %s16
      $region28: #{bottleneck_forward.6} parent=23 // pred_fallthru
        _
    $region24: #{bottleneck_forward.6} parent=5 // pred_fallthru
      _
    %p187 = scmp.le.s32.totalorder 1, %s9
    %p188 = scmp.lt.s32.totalorder %s9, 3
    %p189 = pnand %p187, %p188
    %p190 = pneg %p189
    // Predicated region
    $region29: #{bottleneck_forward.6} parent=5 // pred_check
      _
    $region30: #{bottleneck_forward.6} parent=5 // pred_check_branch
      %192 = sbr.rel (%p189) target = $region32
    $region31: #{bottleneck_forward.6} parent=5 // pred_region
      %s193 = ssub.s32 %s9, 1
      %s194 = smul.u32 32, %s19
      %p195 = scmp.lt.s32.totalorder %s194, 63
      %s196 = scalar_select %p195, %s194, 63
      %p197 = scmp.lt.s32.totalorder %s21, 0
      %s198 = scalar_select %p197, %s21, 0
      %s199 = sadd.s32 %s198, %s196
      %s200 = smul.addr %s199, 4
      %s201 = scalar_lea.vmem %s0, %s200
      %p202 = pneg %p56
      %p203 = pneg %p53
      %s204 = smul.u32 16, %s21
      %p205 = scmp.lt.s32.totalorder %s204, 15
      %s206 = scalar_select %p205, %s204, 15
      %p207 = scmp.lt.s32.totalorder %s20, 0
      %s208 = scalar_select %p207, %s20, 0
      %s209 = sadd.s32 %s208, %s206
      %s210 = smul.addr %s209, 4
      %s211 = scalar_lea.vmem %s1, %s210
      %p212 = pneg %p84
      %p213 = pneg %p81
      %p214 = scmp.lt.s32.totalorder %s20, 0
      %s215 = scalar_select %p214, %s20, 0
      %s216 = scalar_lea.vmem %s2, %s215
      %p217 = pneg %p110
      %p218 = pneg %p107
      %p219 = pneg %p138
      %p220 = pneg %p135
      %s221 = smul.u32 32, %s19
      %p222 = scmp.lt.s32.totalorder %s221, 63
      %s223 = scalar_select %p222, %s221, 63
      %p224 = scmp.lt.s32.totalorder %s20, 0
      %s225 = scalar_select %p224, %s20, 0
      %s226 = sadd.s32 %s225, %s223
      %s227 = smul.addr %s226, 4
      %s228 = scalar_lea.vmem %s3, %s227
      %s229 = smul.u32 32, %s19
      %p230 = scmp.lt.s32.totalorder %s229, 63
      %s231 = scalar_select %p230, %s229, 63
      %p232 = scmp.lt.s32.totalorder %s21, 0
      %s233 = scalar_select %p232, %s21, 0
      %s234 = sadd.s32 %s233, %s231
      %s235 = smul.addr %s234, 4
      %s236 = scalar_lea.vmem %s0, %s235
      %s237 = smul.u32 32, %s19
      %s238 = smul.u32 16, %s21
      %p239 = scmp.lt.s32.totalorder %s238, 15
      %s240 = scalar_select %p239, %s238, 15
      %p241 = scmp.lt.s32.totalorder %s20, 0
      %s242 = scalar_select %p241, %s20, 0
      %s243 = sadd.s32 %s242, %s240
      %s244 = smul.addr %s243, 4
      %s245 = scalar_lea.vmem %s1, %s244
      %s246 = smul.u32 16, %s21
      %p247 = scmp.lt.s32.totalorder %s20, 0
      %s248 = scalar_select %p247, %s20, 0
      %s249 = scalar_lea.vmem %s2, %s248
      %s250 = smul.u32 32, %s19
      %p251 = scmp.lt.s32.totalorder %s250, 63
      %s252 = scalar_select %p251, %s250, 63
      %p253 = scmp.lt.s32.totalorder %s20, 0
      %s254 = scalar_select %p253, %s20, 0
      %s255 = sadd.s32 %s254, %s252
      %s256 = smul.addr %s255, 4
      %s257 = scalar_lea.vmem %s3, %s256
      %s258 = smul.u32 32, %s19
      %p260 = scmp.eq.s32.totalorder %s21, 0
      // Predicated region
      $region33: #{bottleneck_forward.6} parent=31 // pred_check
        %p261 = pneg %p260
      $region34: #{bottleneck_forward.6} parent=31 // pred_check_branch
        %263 = sbr.rel (%p261) target = $region36
      $region35: #{bottleneck_forward.6} parent=31 // pred_region
        %264 = vst [vmem:[#allocation2] sm:$0xff] 0.0
        %265 = vst [vmem:[#allocation2 + $0x8] sm:$0xff] 0.0
        %266 = vst [vmem:[#allocation2 + $0x10] sm:$0xff] 0.0
        %267 = vst [vmem:[#allocation2 + $0x18] sm:$0xff] 0.0
        %268 = vst [vmem:[#allocation2 + $0x20] sm:$0xff] 0.0
        %269 = vst [vmem:[#allocation2 + $0x28] sm:$0xff] 0.0
        %270 = vst [vmem:[#allocation2 + $0x30] sm:$0xff] 0.0
        %271 = vst [vmem:[#allocation2 + $0x38] sm:$0xff] 0.0
        %272 = vst [vmem:[#allocation2 + $0x40] sm:$0xff] 0.0
        %273 = vst [vmem:[#allocation2 + $0x48] sm:$0xff] 0.0
        %274 = vst [vmem:[#allocation2 + $0x50] sm:$0xff] 0.0
        %275 = vst [vmem:[#allocation2 + $0x58] sm:$0xff] 0.0
        %276 = vst [vmem:[#allocation2 + $0x60] sm:$0xff] 0.0
        %277 = vst [vmem:[#allocation2 + $0x68] sm:$0xff] 0.0
        %278 = vst [vmem:[#allocation2 + $0x70] sm:$0xff] 0.0
        %279 = vst [vmem:[#allocation2 + $0x78] sm:$0xff] 0.0
        %280 = vst [vmem:[#allocation2 + $0x80] sm:$0xff] 0.0
        %281 = vst [vmem:[#allocation2 + $0x88] sm:$0xff] 0.0
        %282 = vst [vmem:[#allocation2 + $0x90] sm:$0xff] 0.0
        %283 = vst [vmem:[#allocation2 + $0x98] sm:$0xff] 0.0
        %284 = vst [vmem:[#allocation2 + $0xa0] sm:$0xff] 0.0
        %285 = vst [vmem:[#allocation2 + $0xa8] sm:$0xff] 0.0
        %286 = vst [vmem:[#allocation2 + $0xb0] sm:$0xff] 0.0
        %287 = vst [vmem:[#allocation2 + $0xb8] sm:$0xff] 0.0
        %288 = vst [vmem:[#allocation2 + $0xc0] sm:$0xff] 0.0
        %289 = vst [vmem:[#allocation2 + $0xc8] sm:$0xff] 0.0
        %290 = vst [vmem:[#allocation2 + $0xd0] sm:$0xff] 0.0
        %291 = vst [vmem:[#allocation2 + $0xd8] sm:$0xff] 0.0
        %292 = vst [vmem:[#allocation2 + $0xe0] sm:$0xff] 0.0
        %293 = vst [vmem:[#allocation2 + $0xe8] sm:$0xff] 0.0
        %294 = vst [vmem:[#allocation2 + $0xf0] sm:$0xff] 0.0
        %295 = vst [vmem:[#allocation2 + $0xf8] sm:$0xff] 0.0
      $region36: #{bottleneck_forward.6} parent=31 // pred_fallthru
        _
      %v296 = vld [vmem:[#allocation2] sm:$0xff]
      %v297 = vld [vmem:[#allocation2 + $0x8] sm:$0xff]
      %v298 = vld [vmem:[#allocation2 + $0x10] sm:$0xff]
      %v299 = vld [vmem:[#allocation2 + $0x18] sm:$0xff]
      %v300 = vld [vmem:[#allocation2 + $0x20] sm:$0xff]
      %v301 = vld [vmem:[#allocation2 + $0x28] sm:$0xff]
      %v302 = vld [vmem:[#allocation2 + $0x30] sm:$0xff]
      %v303 = vld [vmem:[#allocation2 + $0x38] sm:$0xff]
      %v304 = vld [vmem:[#allocation2 + $0x40] sm:$0xff]
      %v305 = vld [vmem:[#allocation2 + $0x48] sm:$0xff]
      %v306 = vld [vmem:[#allocation2 + $0x50] sm:$0xff]
      %v307 = vld [vmem:[#allocation2 + $0x58] sm:$0xff]
      %v308 = vld [vmem:[#allocation2 + $0x60] sm:$0xff]
      %v309 = vld [vmem:[#allocation2 + $0x68] sm:$0xff]
      %v310 = vld [vmem:[#allocation2 + $0x70] sm:$0xff]
      %v311 = vld [vmem:[#allocation2 + $0x78] sm:$0xff]
      %v312 = vld [vmem:[#allocation2 + $0x80] sm:$0xff]
      %v313 = vld [vmem:[#allocation2 + $0x88] sm:$0xff]
      %v314 = vld [vmem:[#allocation2 + $0x90] sm:$0xff]
      %v315 = vld [vmem:[#allocation2 + $0x98] sm:$0xff]
      %v316 = vld [vmem:[#allocation2 + $0xa0] sm:$0xff]
      %v317 = vld [vmem:[#allocation2 + $0xa8] sm:$0xff]
      %v318 = vld [vmem:[#allocation2 + $0xb0] sm:$0xff]
      %v319 = vld [vmem:[#allocation2 + $0xb8] sm:$0xff]
      %v320 = vld [vmem:[#allocation2 + $0xc0] sm:$0xff]
      %v321 = vld [vmem:[#allocation2 + $0xc8] sm:$0xff]
      %v322 = vld [vmem:[#allocation2 + $0xd0] sm:$0xff]
      %v323 = vld [vmem:[#allocation2 + $0xd8] sm:$0xff]
      %v324 = vld [vmem:[#allocation2 + $0xe0] sm:$0xff]
      %v325 = vld [vmem:[#allocation2 + $0xe8] sm:$0xff]
      %v326 = vld [vmem:[#allocation2 + $0xf0] sm:$0xff]
      %v327 = vld [vmem:[#allocation2 + $0xf8] sm:$0xff]
      %v328 = vld [vmem:[%s236] sm:$0xf]
      %v329 = vld [vmem:[%s236 + $0x4] sm:$0xf]
      %v330 = vld [vmem:[%s236 + $0x8] sm:$0xf]
      %v331 = vld [vmem:[%s236 + $0xc] sm:$0xf]
      %v332 = vld [vmem:[%s236 + $0x10] sm:$0xf]
      %v333 = vld [vmem:[%s236 + $0x14] sm:$0xf]
      %v334 = vld [vmem:[%s236 + $0x18] sm:$0xf]
      %v335 = vld [vmem:[%s236 + $0x1c] sm:$0xf]
      %v336 = vld [vmem:[%s236 + $0x20] sm:$0xf]
      %v337 = vld [vmem:[%s236 + $0x24] sm:$0xf]
      %v338 = vld [vmem:[%s236 + $0x28] sm:$0xf]
      %v339 = vld [vmem:[%s236 + $0x2c] sm:$0xf]
      %v340 = vld [vmem:[%s236 + $0x30] sm:$0xf]
      %v341 = vld [vmem:[%s236 + $0x34] sm:$0xf]
      %v342 = vld [vmem:[%s236 + $0x38] sm:$0xf]
      %v343 = vld [vmem:[%s236 + $0x3c] sm:$0xf]
      %v344 = vld [vmem:[%s236 + $0x40] sm:$0xf]
      %v345 = vld [vmem:[%s236 + $0x44] sm:$0xf]
      %v346 = vld [vmem:[%s236 + $0x48] sm:$0xf]
      %v347 = vld [vmem:[%s236 + $0x4c] sm:$0xf]
      %v348 = vld [vmem:[%s236 + $0x50] sm:$0xf]
      %v349 = vld [vmem:[%s236 + $0x54] sm:$0xf]
      %v350 = vld [vmem:[%s236 + $0x58] sm:$0xf]
      %v351 = vld [vmem:[%s236 + $0x5c] sm:$0xf]
      %v352 = vld [vmem:[%s236 + $0x60] sm:$0xf]
      %v353 = vld [vmem:[%s236 + $0x64] sm:$0xf]
      %v354 = vld [vmem:[%s236 + $0x68] sm:$0xf]
      %v355 = vld [vmem:[%s236 + $0x6c] sm:$0xf]
      %v356 = vld [vmem:[%s236 + $0x70] sm:$0xf]
      %v357 = vld [vmem:[%s236 + $0x74] sm:$0xf]
      %v358 = vld [vmem:[%s236 + $0x78] sm:$0xf]
      %v359 = vld [vmem:[%s236 + $0x7c] sm:$0xf]
      %v360 = vld [vmem:[%s245] sm:$0xf]
      %v361 = vld [vmem:[%s245 + $0x4] sm:$0xf]
      %v362 = vld [vmem:[%s245 + $0x8] sm:$0xf]
      %v363 = vld [vmem:[%s245 + $0xc] sm:$0xf]
      %v364 = vld [vmem:[%s245 + $0x10] sm:$0xf]
      %v365 = vld [vmem:[%s245 + $0x14] sm:$0xf]
      %v366 = vld [vmem:[%s245 + $0x18] sm:$0xf]
      %v367 = vld [vmem:[%s245 + $0x1c] sm:$0xf]
      %v368 = vld [vmem:[%s245 + $0x20] sm:$0xf]
      %v369 = vld [vmem:[%s245 + $0x24] sm:$0xf]
      %v370 = vld [vmem:[%s245 + $0x28] sm:$0xf]
      %v371 = vld [vmem:[%s245 + $0x2c] sm:$0xf]
      %v372 = vld [vmem:[%s245 + $0x30] sm:$0xf]
      %v373 = vld [vmem:[%s245 + $0x34] sm:$0xf]
      %v374 = vld [vmem:[%s245 + $0x38] sm:$0xf]
      %v375 = vld [vmem:[%s245 + $0x3c] sm:$0xf]
      %v408 = vunpack.c.l.b16 %v328
      %v409 = vunpack.c.l.b16 %v329
      %v410 = vunpack.c.l.b16 %v330
      %v411 = vunpack.c.l.b16 %v331
      %v412 = vunpack.c.l.b16 %v332
      %v413 = vunpack.c.l.b16 %v333
      %v414 = vunpack.c.l.b16 %v334
      %v415 = vunpack.c.l.b16 %v335
      %v416 = vunpack.c.l.b16 %v336
      %v417 = vunpack.c.l.b16 %v337
      %v418 = vunpack.c.l.b16 %v338
      %v419 = vunpack.c.l.b16 %v339
      %v420 = vunpack.c.l.b16 %v340
      %v421 = vunpack.c.l.b16 %v341
      %v422 = vunpack.c.l.b16 %v342
      %v423 = vunpack.c.l.b16 %v343
      %v424 = vunpack.c.l.b16 %v344
      %v425 = vunpack.c.l.b16 %v345
      %v426 = vunpack.c.l.b16 %v346
      %v427 = vunpack.c.l.b16 %v347
      %v428 = vunpack.c.l.b16 %v348
      %v429 = vunpack.c.l.b16 %v349
      %v430 = vunpack.c.l.b16 %v350
      %v431 = vunpack.c.l.b16 %v351
      %v432 = vunpack.c.l.b16 %v352
      %v433 = vunpack.c.l.b16 %v353
      %v434 = vunpack.c.l.b16 %v354
      %v435 = vunpack.c.l.b16 %v355
      %v436 = vunpack.c.l.b16 %v356
      %v437 = vunpack.c.l.b16 %v357
      %v438 = vunpack.c.l.b16 %v358
      %v439 = vunpack.c.l.b16 %v359
      %v440 = vpack.c.b16 %v409, %v408
      %v441 = vpack.c.b16 %v411, %v410
      %v442 = vpack.c.b16 %v413, %v412
      %v443 = vpack.c.b16 %v415, %v414
      %v444 = vpack.c.b16 %v417, %v416
      %v445 = vpack.c.b16 %v419, %v418
      %v446 = vpack.c.b16 %v421, %v420
      %v447 = vpack.c.b16 %v423, %v422
      %v448 = vpack.c.b16 %v425, %v424
      %v449 = vpack.c.b16 %v427, %v426
      %v450 = vpack.c.b16 %v429, %v428
      %v451 = vpack.c.b16 %v431, %v430
      %v452 = vpack.c.b16 %v433, %v432
      %v453 = vpack.c.b16 %v435, %v434
      %v454 = vpack.c.b16 %v437, %v436
      %v455 = vpack.c.b16 %v439, %v438
      %v488 = vunpack.c.l.b16 %v360
      %v489 = vunpack.c.l.b16 %v361
      %v490 = vunpack.c.l.b16 %v362
      %v491 = vunpack.c.l.b16 %v363
      %v492 = vunpack.c.l.b16 %v364
      %v493 = vunpack.c.l.b16 %v365
      %v494 = vunpack.c.l.b16 %v366
      %v495 = vunpack.c.l.b16 %v367
      %v496 = vunpack.c.l.b16 %v368
      %v497 = vunpack.c.l.b16 %v369
      %v498 = vunpack.c.l.b16 %v370
      %v499 = vunpack.c.l.b16 %v371
      %v500 = vunpack.c.l.b16 %v372
      %v501 = vunpack.c.l.b16 %v373
      %v502 = vunpack.c.l.b16 %v374
      %v503 = vunpack.c.l.b16 %v375
      %v504 = vpack.c.b16 %v489, %v488
      %v505 = vpack.c.b16 %v491, %v490
      %v506 = vpack.c.b16 %v493, %v492
      %v507 = vpack.c.b16 %v495, %v494
      %v508 = vpack.c.b16 %v497, %v496
      %v509 = vpack.c.b16 %v499, %v498
      %v510 = vpack.c.b16 %v501, %v500
      %v511 = vpack.c.b16 %v503, %v502
      %520 = vmatprep.subr.bf16.mxu0 0
      %521 = vmatpush1.bf16.msra.mxu0 %v504
      %522 = vmatprep.subr.bf16.mxu0 0
      %523 = vmatpush1.bf16.msra.mxu0 %v505
      %524 = vmatprep.subr.bf16.mxu0 0
      %525 = vmatpush1.bf16.msra.mxu0 %v506
      %526 = vmatprep.subr.bf16.mxu0 0
      %527 = vmatpush1.bf16.msra.mxu0 %v507
      %528 = vmatprep.subr.bf16.mxu0 0
      %529 = vmatpush1.bf16.msra.mxu0 %v508
      %530 = vmatprep.subr.bf16.mxu0 0
      %531 = vmatpush1.bf16.msra.mxu0 %v509
      %532 = vmatprep.subr.bf16.mxu0 0
      %533 = vmatpush1.bf16.msra.mxu0 %v510
      %534 = vmatprep.subr.bf16.mxu0 0
      %535 = vmatpush1.bf16.msra.mxu0 %v511
      %536 = vmatprep.subr.bf16.mxu0 0
      %537 = vmatpush1.bf16.msra.mxu0 0
      %538 = vmatprep.subr.bf16.mxu0 0
      %539 = vmatpush1.bf16.msra.mxu0 0
      %540 = vmatprep.subr.bf16.mxu0 0
      %541 = vmatpush1.bf16.msra.mxu0 0
      %542 = vmatprep.subr.bf16.mxu0 0
      %543 = vmatpush1.bf16.msra.mxu0 0
      %544 = vmatprep.subr.bf16.mxu0 0
      %545 = vmatpush1.bf16.msra.mxu0 0
      %546 = vmatprep.subr.bf16.mxu0 0
      %547 = vmatpush1.bf16.msra.mxu0 0
      %548 = vmatprep.subr.bf16.mxu0 0
      %549 = vmatpush1.bf16.msra.mxu0 0
      %550 = vmatprep.subr.bf16.mxu0 0
      %551 = vmatpush1.bf16.msra.mxu0 0
      %552 = vmatprep.mubr.bf16.mxu0 0
      %553 = vmatmul.mubr.bf16.gmra.mrb[0].mxu0 %v440
      %v554 = vpop.f32.mrb[0].mxu0
      %v555 = vadd.f32 0.0, %v554
      %v556 = vpop.f32.mrb[0].mxu0
      %v557 = vpop.f32.mrb[0].mxu0
      %v558 = vadd.f32 0.0, %v557
      %v559 = vpop.f32.mrb[0].mxu0
      %560 = vmatprep.mubr.bf16.mxu0 0
      %561 = vmatmul.mubr.bf16.gmra.mrb[0].mxu0 %v441
      %v562 = vpop.f32.mrb[0].mxu0
      %v563 = vadd.f32 0.0, %v562
      %v564 = vpop.f32.mrb[0].mxu0
      %v565 = vpop.f32.mrb[0].mxu0
      %v566 = vadd.f32 0.0, %v565
      %v567 = vpop.f32.mrb[0].mxu0
      %568 = vmatprep.mubr.bf16.mxu0 0
      %569 = vmatmul.mubr.bf16.gmra.mrb[0].mxu0 %v442
      %v570 = vpop.f32.mrb[0].mxu0
      %v571 = vadd.f32 0.0, %v570
      %v572 = vpop.f32.mrb[0].mxu0
      %v573 = vpop.f32.mrb[0].mxu0
      %v574 = vadd.f32 0.0, %v573
      %v575 = vpop.f32.mrb[0].mxu0
      %576 = vmatprep.mubr.bf16.mxu0 0
      %577 = vmatmul.mubr.bf16.gmra.mrb[0].mxu0 %v443
      %v578 = vpop.f32.mrb[0].mxu0
      %v579 = vadd.f32 0.0, %v578
      %v580 = vpop.f32.mrb[0].mxu0
      %v581 = vpop.f32.mrb[0].mxu0
      %v582 = vadd.f32 0.0, %v581
      %v583 = vpop.f32.mrb[0].mxu0
      %584 = vmatprep.mubr.bf16.mxu0 0
      %585 = vmatmul.mubr.bf16.gmra.mrb[0].mxu0 %v444
      %v586 = vpop.f32.mrb[0].mxu0
      %v587 = vadd.f32 0.0, %v586
      %v588 = vpop.f32.mrb[0].mxu0
      %v589 = vpop.f32.mrb[0].mxu0
      %v590 = vadd.f32 0.0, %v589
      %v591 = vpop.f32.mrb[0].mxu0
      %592 = vmatprep.mubr.bf16.mxu0 0
      %593 = vmatmul.mubr.bf16.gmra.mrb[0].mxu0 %v445
      %v594 = vpop.f32.mrb[0].mxu0
      %v595 = vadd.f32 0.0, %v594
      %v596 = vpop.f32.mrb[0].mxu0
      %v597 = vpop.f32.mrb[0].mxu0
      %v598 = vadd.f32 0.0, %v597
      %v599 = vpop.f32.mrb[0].mxu0
      %600 = vmatprep.mubr.bf16.mxu0 0
      %601 = vmatmul.mubr.bf16.gmra.mrb[0].mxu0 %v446
      %v602 = vpop.f32.mrb[0].mxu0
      %v603 = vadd.f32 0.0, %v602
      %v604 = vpop.f32.mrb[0].mxu0
      %v605 = vpop.f32.mrb[0].mxu0
      %v606 = vadd.f32 0.0, %v605
      %v607 = vpop.f32.mrb[0].mxu0
      %608 = vmatprep.mubr.bf16.mxu0 0
      %609 = vmatmul.mubr.bf16.gmra.mrb[0].mxu0 %v447
      %v610 = vpop.f32.mrb[0].mxu0
      %v611 = vadd.f32 0.0, %v610
      %v612 = vpop.f32.mrb[0].mxu0
      %v613 = vpop.f32.mrb[0].mxu0
      %v614 = vadd.f32 0.0, %v613
      %v615 = vpop.f32.mrb[0].mxu0
      %616 = vmatprep.mubr.bf16.mxu0 0
      %617 = vmatmul.mubr.bf16.gmra.mrb[0].mxu0 %v448
      %v618 = vpop.f32.mrb[0].mxu0
      %v619 = vadd.f32 0.0, %v618
      %v620 = vpop.f32.mrb[0].mxu0
      %v621 = vpop.f32.mrb[0].mxu0
      %v622 = vadd.f32 0.0, %v621
      %v623 = vpop.f32.mrb[0].mxu0
      %624 = vmatprep.mubr.bf16.mxu0 0
      %625 = vmatmul.mubr.bf16.gmra.mrb[0].mxu0 %v449
      %v626 = vpop.f32.mrb[0].mxu0
      %v627 = vadd.f32 0.0, %v626
      %v628 = vpop.f32.mrb[0].mxu0
      %v629 = vpop.f32.mrb[0].mxu0
      %v630 = vadd.f32 0.0, %v629
      %v631 = vpop.f32.mrb[0].mxu0
      %632 = vmatprep.mubr.bf16.mxu0 0
      %633 = vmatmul.mubr.bf16.gmra.mrb[0].mxu0 %v450
      %v634 = vpop.f32.mrb[0].mxu0
      %v635 = vadd.f32 0.0, %v634
      %v636 = vpop.f32.mrb[0].mxu0
      %v637 = vpop.f32.mrb[0].mxu0
      %v638 = vadd.f32 0.0, %v637
      %v639 = vpop.f32.mrb[0].mxu0
      %640 = vmatprep.mubr.bf16.mxu0 0
      %641 = vmatmul.mubr.bf16.gmra.mrb[0].mxu0 %v451
      %v642 = vpop.f32.mrb[0].mxu0
      %v643 = vadd.f32 0.0, %v642
      %v644 = vpop.f32.mrb[0].mxu0
      %v645 = vpop.f32.mrb[0].mxu0
      %v646 = vadd.f32 0.0, %v645
      %v647 = vpop.f32.mrb[0].mxu0
      %648 = vmatprep.mubr.bf16.mxu0 0
      %649 = vmatmul.mubr.bf16.gmra.mrb[0].mxu0 %v452
      %v650 = vpop.f32.mrb[0].mxu0
      %v651 = vadd.f32 0.0, %v650
      %v652 = vpop.f32.mrb[0].mxu0
      %v653 = vpop.f32.mrb[0].mxu0
      %v654 = vadd.f32 0.0, %v653
      %v655 = vpop.f32.mrb[0].mxu0
      %656 = vmatprep.mubr.bf16.mxu0 0
      %657 = vmatmul.mubr.bf16.gmra.mrb[0].mxu0 %v453
      %v658 = vpop.f32.mrb[0].mxu0
      %v659 = vadd.f32 0.0, %v658
      %v660 = vpop.f32.mrb[0].mxu0
      %v661 = vpop.f32.mrb[0].mxu0
      %v662 = vadd.f32 0.0, %v661
      %v663 = vpop.f32.mrb[0].mxu0
      %664 = vmatprep.mubr.bf16.mxu0 0
      %665 = vmatmul.mubr.bf16.gmra.mrb[0].mxu0 %v454
      %v666 = vpop.f32.mrb[0].mxu0
      %v667 = vadd.f32 0.0, %v666
      %v668 = vpop.f32.mrb[0].mxu0
      %v669 = vpop.f32.mrb[0].mxu0
      %v670 = vadd.f32 0.0, %v669
      %v671 = vpop.f32.mrb[0].mxu0
      %672 = vmatprep.mubr.bf16.mxu0 0
      %673 = vmatmul.mubr.bf16.gmra.mrb[0].mxu0 %v455
      %v674 = vpop.f32.mrb[0].mxu0
      %v675 = vadd.f32 0.0, %v674
      %v676 = vpop.f32.mrb[0].mxu0
      %v677 = vpop.f32.mrb[0].mxu0
      %v678 = vadd.f32 0.0, %v677
      %v679 = vpop.f32.mrb[0].mxu0
      %680 = vdwg.mxu0
      %v681 = vadd.f32 %v296, %v555
      %v682 = vadd.f32 %v297, %v558
      %v683 = vadd.f32 %v298, %v563
      %v684 = vadd.f32 %v299, %v566
      %v685 = vadd.f32 %v300, %v571
      %v686 = vadd.f32 %v301, %v574
      %v687 = vadd.f32 %v302, %v579
      %v688 = vadd.f32 %v303, %v582
      %v689 = vadd.f32 %v304, %v587
      %v690 = vadd.f32 %v305, %v590
      %v691 = vadd.f32 %v306, %v595
      %v692 = vadd.f32 %v307, %v598
      %v693 = vadd.f32 %v308, %v603
      %v694 = vadd.f32 %v309, %v606
      %v695 = vadd.f32 %v310, %v611
      %v696 = vadd.f32 %v311, %v614
      %v697 = vadd.f32 %v312, %v619
      %v698 = vadd.f32 %v313, %v622
      %v699 = vadd.f32 %v314, %v627
      %v700 = vadd.f32 %v315, %v630
      %v701 = vadd.f32 %v316, %v635
      %v702 = vadd.f32 %v317, %v638
      %v703 = vadd.f32 %v318, %v643
      %v704 = vadd.f32 %v319, %v646
      %v705 = vadd.f32 %v320, %v651
      %v706 = vadd.f32 %v321, %v654
      %v707 = vadd.f32 %v322, %v659
      %v708 = vadd.f32 %v323, %v662
      %v709 = vadd.f32 %v324, %v667
      %v710 = vadd.f32 %v325, %v670
      %v711 = vadd.f32 %v326, %v675
      %v712 = vadd.f32 %v327, %v678
      %713 = vst [vmem:[#allocation2] sm:$0xff] %v681
      %714 = vst [vmem:[#allocation2 + $0x8] sm:$0xff] %v682
      %715 = vst [vmem:[#allocation2 + $0x10] sm:$0xff] %v683
      %716 = vst [vmem:[#allocation2 + $0x18] sm:$0xff] %v684
      %717 = vst [vmem:[#allocation2 + $0x20] sm:$0xff] %v685
      %718 = vst [vmem:[#allocation2 + $0x28] sm:$0xff] %v686
      %719 = vst [vmem:[#allocation2 + $0x30] sm:$0xff] %v687
      %720 = vst [vmem:[#allocation2 + $0x38] sm:$0xff] %v688
      %721 = vst [vmem:[#allocation2 + $0x40] sm:$0xff] %v689
      %722 = vst [vmem:[#allocation2 + $0x48] sm:$0xff] %v690
      %723 = vst [vmem:[#allocation2 + $0x50] sm:$0xff] %v691
      %724 = vst [vmem:[#allocation2 + $0x58] sm:$0xff] %v692
      %725 = vst [vmem:[#allocation2 + $0x60] sm:$0xff] %v693
      %726 = vst [vmem:[#allocation2 + $0x68] sm:$0xff] %v694
      %727 = vst [vmem:[#allocation2 + $0x70] sm:$0xff] %v695
      %728 = vst [vmem:[#allocation2 + $0x78] sm:$0xff] %v696
      %729 = vst [vmem:[#allocation2 + $0x80] sm:$0xff] %v697
      %730 = vst [vmem:[#allocation2 + $0x88] sm:$0xff] %v698
      %731 = vst [vmem:[#allocation2 + $0x90] sm:$0xff] %v699
      %732 = vst [vmem:[#allocation2 + $0x98] sm:$0xff] %v700
      %733 = vst [vmem:[#allocation2 + $0xa0] sm:$0xff] %v701
      %734 = vst [vmem:[#allocation2 + $0xa8] sm:$0xff] %v702
      %735 = vst [vmem:[#allocation2 + $0xb0] sm:$0xff] %v703
      %736 = vst [vmem:[#allocation2 + $0xb8] sm:$0xff] %v704
      %737 = vst [vmem:[#allocation2 + $0xc0] sm:$0xff] %v705
      %738 = vst [vmem:[#allocation2 + $0xc8] sm:$0xff] %v706
      %739 = vst [vmem:[#allocation2 + $0xd0] sm:$0xff] %v707
      %740 = vst [vmem:[#allocation2 + $0xd8] sm:$0xff] %v708
      %741 = vst [vmem:[#allocation2 + $0xe0] sm:$0xff] %v709
      %742 = vst [vmem:[#allocation2 + $0xe8] sm:$0xff] %v710
      %743 = vst [vmem:[#allocation2 + $0xf0] sm:$0xff] %v711
      %744 = vst [vmem:[#allocation2 + $0xf8] sm:$0xff] %v712
      // Predicated region
      $region37: #{bottleneck_forward.6} parent=31 // pred_check
        %p745 = pneg %p260
      $region38: #{bottleneck_forward.6} parent=31 // pred_check_branch
        %747 = sbr.rel (%p745) target = $region40
      $region39: #{bottleneck_forward.6} parent=31 // pred_region
        %v748 = vld [vmem:[#allocation2] sm:$0xff]
        %v749 = vld [vmem:[#allocation2 + $0x8] sm:$0xff]
        %v750 = vld [vmem:[#allocation2 + $0x10] sm:$0xff]
        %v751 = vld [vmem:[#allocation2 + $0x18] sm:$0xff]
        %v752 = vld [vmem:[#allocation2 + $0x20] sm:$0xff]
        %v753 = vld [vmem:[#allocation2 + $0x28] sm:$0xff]
        %v754 = vld [vmem:[#allocation2 + $0x30] sm:$0xff]
        %v755 = vld [vmem:[#allocation2 + $0x38] sm:$0xff]
        %v756 = vld [vmem:[#allocation2 + $0x40] sm:$0xff]
        %v757 = vld [vmem:[#allocation2 + $0x48] sm:$0xff]
        %v758 = vld [vmem:[#allocation2 + $0x50] sm:$0xff]
        %v759 = vld [vmem:[#allocation2 + $0x58] sm:$0xff]
        %v760 = vld [vmem:[#allocation2 + $0x60] sm:$0xff]
        %v761 = vld [vmem:[#allocation2 + $0x68] sm:$0xff]
        %v762 = vld [vmem:[#allocation2 + $0x70] sm:$0xff]
        %v763 = vld [vmem:[#allocation2 + $0x78] sm:$0xff]
        %v764 = vld [vmem:[#allocation2 + $0x80] sm:$0xff]
        %v765 = vld [vmem:[#allocation2 + $0x88] sm:$0xff]
        %v766 = vld [vmem:[#allocation2 + $0x90] sm:$0xff]
        %v767 = vld [vmem:[#allocation2 + $0x98] sm:$0xff]
        %v768 = vld [vmem:[#allocation2 + $0xa0] sm:$0xff]
        %v769 = vld [vmem:[#allocation2 + $0xa8] sm:$0xff]
        %v770 = vld [vmem:[#allocation2 + $0xb0] sm:$0xff]
        %v771 = vld [vmem:[#allocation2 + $0xb8] sm:$0xff]
        %v772 = vld [vmem:[#allocation2 + $0xc0] sm:$0xff]
        %v773 = vld [vmem:[#allocation2 + $0xc8] sm:$0xff]
        %v774 = vld [vmem:[#allocation2 + $0xd0] sm:$0xff]
        %v775 = vld [vmem:[#allocation2 + $0xd8] sm:$0xff]
        %v776 = vld [vmem:[#allocation2 + $0xe0] sm:$0xff]
        %v777 = vld [vmem:[#allocation2 + $0xe8] sm:$0xff]
        %v778 = vld [vmem:[#allocation2 + $0xf0] sm:$0xff]
        %v779 = vld [vmem:[#allocation2 + $0xf8] sm:$0xff]
        %v780 = vld [vmem:[%s249] sm:$0x1]
        %v782 = vlaneseq
        %v783 = vshrl.u32 %v782, 7
        %v784 = vsub.s32 0, %v783
        %v785 = vrot.slane %v780, %v784
        %v787 = vadd.f32 %v748, %v785
        %v788 = vadd.f32 %v749, %v785
        %v789 = vadd.f32 %v750, %v785
        %v790 = vadd.f32 %v751, %v785
        %v791 = vadd.f32 %v752, %v785
        %v792 = vadd.f32 %v753, %v785
        %v793 = vadd.f32 %v754, %v785
        %v794 = vadd.f32 %v755, %v785
        %v795 = vadd.f32 %v756, %v785
        %v796 = vadd.f32 %v757, %v785
        %v797 = vadd.f32 %v758, %v785
        %v798 = vadd.f32 %v759, %v785
        %v799 = vadd.f32 %v760, %v785
        %v800 = vadd.f32 %v761, %v785
        %v801 = vadd.f32 %v762, %v785
        %v802 = vadd.f32 %v763, %v785
        %v803 = vadd.f32 %v764, %v785
        %v804 = vadd.f32 %v765, %v785
        %v805 = vadd.f32 %v766, %v785
        %v806 = vadd.f32 %v767, %v785
        %v807 = vadd.f32 %v768, %v785
        %v808 = vadd.f32 %v769, %v785
        %v809 = vadd.f32 %v770, %v785
        %v810 = vadd.f32 %v771, %v785
        %v811 = vadd.f32 %v772, %v785
        %v812 = vadd.f32 %v773, %v785
        %v813 = vadd.f32 %v774, %v785
        %v814 = vadd.f32 %v775, %v785
        %v815 = vadd.f32 %v776, %v785
        %v816 = vadd.f32 %v777, %v785
        %v817 = vadd.f32 %v778, %v785
        %v818 = vadd.f32 %v779, %v785
        %v819 = vpack.c.bf16 %v788, %v787
        %v820 = vpack.c.bf16 %v790, %v789
        %v821 = vpack.c.bf16 %v792, %v791
        %v822 = vpack.c.bf16 %v794, %v793
        %v823 = vpack.c.bf16 %v796, %v795
        %v824 = vpack.c.bf16 %v798, %v797
        %v825 = vpack.c.bf16 %v800, %v799
        %v826 = vpack.c.bf16 %v802, %v801
        %v827 = vpack.c.bf16 %v804, %v803
        %v828 = vpack.c.bf16 %v806, %v805
        %v829 = vpack.c.bf16 %v808, %v807
        %v830 = vpack.c.bf16 %v810, %v809
        %v831 = vpack.c.bf16 %v812, %v811
        %v832 = vpack.c.bf16 %v814, %v813
        %v833 = vpack.c.bf16 %v816, %v815
        %v834 = vpack.c.bf16 %v818, %v817
        %v851 = vunpack.c.l.b16 %v819
        %v852 = vunpack.c.h.b16 %v819
        %v853 = vunpack.c.l.b16 %v820
        %v854 = vunpack.c.h.b16 %v820
        %v855 = vunpack.c.l.b16 %v821
        %v856 = vunpack.c.h.b16 %v821
        %v857 = vunpack.c.l.b16 %v822
        %v858 = vunpack.c.h.b16 %v822
        %v859 = vunpack.c.l.b16 %v823
        %v860 = vunpack.c.h.b16 %v823
        %v861 = vunpack.c.l.b16 %v824
        %v862 = vunpack.c.h.b16 %v824
        %v863 = vunpack.c.l.b16 %v825
        %v864 = vunpack.c.h.b16 %v825
        %v865 = vunpack.c.l.b16 %v826
        %v866 = vunpack.c.h.b16 %v826
        %v867 = vunpack.c.l.b16 %v827
        %v868 = vunpack.c.h.b16 %v827
        %v869 = vunpack.c.l.b16 %v828
        %v870 = vunpack.c.h.b16 %v828
        %v871 = vunpack.c.l.b16 %v829
        %v872 = vunpack.c.h.b16 %v829
        %v873 = vunpack.c.l.b16 %v830
        %v874 = vunpack.c.h.b16 %v830
        %v875 = vunpack.c.l.b16 %v831
        %v876 = vunpack.c.h.b16 %v831
        %v877 = vunpack.c.l.b16 %v832
        %v878 = vunpack.c.h.b16 %v832
        %v879 = vunpack.c.l.b16 %v833
        %v880 = vunpack.c.h.b16 %v833
        %v881 = vunpack.c.l.b16 %v834
        %v882 = vunpack.c.h.b16 %v834
        %v883 = vpack.c.b16 %v851, %v851
        %v884 = vpack.c.b16 %v852, %v852
        %v885 = vpack.c.b16 %v853, %v853
        %v886 = vpack.c.b16 %v854, %v854
        %v887 = vpack.c.b16 %v855, %v855
        %v888 = vpack.c.b16 %v856, %v856
        %v889 = vpack.c.b16 %v857, %v857
        %v890 = vpack.c.b16 %v858, %v858
        %v891 = vpack.c.b16 %v859, %v859
        %v892 = vpack.c.b16 %v860, %v860
        %v893 = vpack.c.b16 %v861, %v861
        %v894 = vpack.c.b16 %v862, %v862
        %v895 = vpack.c.b16 %v863, %v863
        %v896 = vpack.c.b16 %v864, %v864
        %v897 = vpack.c.b16 %v865, %v865
        %v898 = vpack.c.b16 %v866, %v866
        %v899 = vpack.c.b16 %v867, %v867
        %v900 = vpack.c.b16 %v868, %v868
        %v901 = vpack.c.b16 %v869, %v869
        %v902 = vpack.c.b16 %v870, %v870
        %v903 = vpack.c.b16 %v871, %v871
        %v904 = vpack.c.b16 %v872, %v872
        %v905 = vpack.c.b16 %v873, %v873
        %v906 = vpack.c.b16 %v874, %v874
        %v907 = vpack.c.b16 %v875, %v875
        %v908 = vpack.c.b16 %v876, %v876
        %v909 = vpack.c.b16 %v877, %v877
        %v910 = vpack.c.b16 %v878, %v878
        %v911 = vpack.c.b16 %v879, %v879
        %v912 = vpack.c.b16 %v880, %v880
        %v913 = vpack.c.b16 %v881, %v881
        %v914 = vpack.c.b16 %v882, %v882
        %947 = vst [vmem:[%s257] sm:$0xf] %v883
        %948 = vst [vmem:[%s257 + $0x4] sm:$0xf] %v884
        %949 = vst [vmem:[%s257 + $0x8] sm:$0xf] %v885
        %950 = vst [vmem:[%s257 + $0xc] sm:$0xf] %v886
        %951 = vst [vmem:[%s257 + $0x10] sm:$0xf] %v887
        %952 = vst [vmem:[%s257 + $0x14] sm:$0xf] %v888
        %953 = vst [vmem:[%s257 + $0x18] sm:$0xf] %v889
        %954 = vst [vmem:[%s257 + $0x1c] sm:$0xf] %v890
        %955 = vst [vmem:[%s257 + $0x20] sm:$0xf] %v891
        %956 = vst [vmem:[%s257 + $0x24] sm:$0xf] %v892
        %957 = vst [vmem:[%s257 + $0x28] sm:$0xf] %v893
        %958 = vst [vmem:[%s257 + $0x2c] sm:$0xf] %v894
        %959 = vst [vmem:[%s257 + $0x30] sm:$0xf] %v895
        %960 = vst [vmem:[%s257 + $0x34] sm:$0xf] %v896
        %961 = vst [vmem:[%s257 + $0x38] sm:$0xf] %v897
        %962 = vst [vmem:[%s257 + $0x3c] sm:$0xf] %v898
        %963 = vst [vmem:[%s257 + $0x40] sm:$0xf] %v899
        %964 = vst [vmem:[%s257 + $0x44] sm:$0xf] %v900
        %965 = vst [vmem:[%s257 + $0x48] sm:$0xf] %v901
        %966 = vst [vmem:[%s257 + $0x4c] sm:$0xf] %v902
        %967 = vst [vmem:[%s257 + $0x50] sm:$0xf] %v903
        %968 = vst [vmem:[%s257 + $0x54] sm:$0xf] %v904
        %969 = vst [vmem:[%s257 + $0x58] sm:$0xf] %v905
        %970 = vst [vmem:[%s257 + $0x5c] sm:$0xf] %v906
        %971 = vst [vmem:[%s257 + $0x60] sm:$0xf] %v907
        %972 = vst [vmem:[%s257 + $0x64] sm:$0xf] %v908
        %973 = vst [vmem:[%s257 + $0x68] sm:$0xf] %v909
        %974 = vst [vmem:[%s257 + $0x6c] sm:$0xf] %v910
        %975 = vst [vmem:[%s257 + $0x70] sm:$0xf] %v911
        %976 = vst [vmem:[%s257 + $0x74] sm:$0xf] %v912
        %977 = vst [vmem:[%s257 + $0x78] sm:$0xf] %v913
        %978 = vst [vmem:[%s257 + $0x7c] sm:$0xf] %v914
      $region40: #{bottleneck_forward.6} parent=31 // pred_fallthru
        _
      %s979 = smul.u32 32, %s19
      %p980 = scmp.lt.s32.totalorder %s979, 63
      %s981 = scalar_select %p980, %s979, 63
      %p982 = scmp.lt.s32.totalorder %s20, 0
      %s983 = scalar_select %p982, %s20, 0
      %s984 = sadd.s32 %s983, %s981
      %s985 = smul.addr %s984, 4
      %s986 = scalar_lea.vmem %s3, %s985
      // Predicated region
      $region41: #{bottleneck_forward.6} parent=31 // pred_check
        %p987 = pneg %p135
      $region42: #{bottleneck_forward.6} parent=31 // pred_check_branch
        %989 = sbr.rel (%p987) target = $region44
      $region43: #{bottleneck_forward.6} parent=31 // pred_region
        %s990 = smul.u32 32, %s19
      $region44: #{bottleneck_forward.6} parent=31 // pred_fallthru
        _
    $region32: #{bottleneck_forward.6} parent=5 // pred_fallthru
      _
    %p991 = scmp.le.s32.totalorder 2, %s9
    // Predicated region
    $region45: #{bottleneck_forward.6} parent=5 // pred_check
      %p992 = pneg %p991
    $region46: #{bottleneck_forward.6} parent=5 // pred_check_branch
      %994 = sbr.rel (%p992) target = $region48
    $region47: #{bottleneck_forward.6} parent=5 // pred_region
      %s995 = ssub.s32 %s9, 2
      // Predicated region
      $region49: #{bottleneck_forward.6} parent=47 // pred_check
        %p996 = pneg %p141
      $region50: #{bottleneck_forward.6} parent=47 // pred_check_branch
        %998 = sbr.rel (%p996) target = $region52
      $region51: #{bottleneck_forward.6} parent=47 // pred_region
        %s999 = smul.u32 32, %s22
        %p1000 = scmp.lt.s32.totalorder %s999, 63
        %s1001 = scalar_select %p1000, %s999, 63
        %p1002 = scmp.lt.s32.totalorder %s23, 0
        %s1003 = scalar_select %p1002, %s23, 0
        %s1004 = sadd.s32 %s1003, %s1001
        %s1005 = smul.addr %s1004, 4
        %s1006 = scalar_lea.vmem %s3, %s1005
      $region52: #{bottleneck_forward.6} parent=47 // pred_fallthru
        _
    $region48: #{bottleneck_forward.6} parent=5 // pred_fallthru
      _
  $region6: #{bottleneck_forward.6} parent=0 // loop_footer
    %s13 = sadd.s32 1, %s9
  $region7: #{bottleneck_forward.6} parent=0 // loop_footer_branch
    %8 = sbr.rel target = $region3
  $region8: #{bottleneck_forward.6} parent=0 // loop_exit
    _

// kernel: bottleneck_forward.4
$region0: #{bottleneck_forward.4}
  #allocation0 [shape = 'u32[]', space=smem, size = 0x4, offset = 0x4, fixed_abs, tag = 'smem constant byte address 0x4 - core index']
  #allocation1 [shape = 'u32[144,128]{1,0:T(1,128)}', space=vmem, size = 0x12000, scoped, tag = 'internal scratch']
  #allocation2 [shape = 'f32[256,128]{1,0:T(8,128)}', space=vmem, size = 0x20000, scoped, tag = 'scratch operand']
  %s0 = inlined_call_operand.vmem [shape: bf16[512,128], index: 0, kind: input, shape index: {}]
  %s1 = inlined_call_operand.vmem [shape: bf16[128,128], index: 1, kind: input, shape index: {}]
  %s2 = inlined_call_operand.vmem [shape: f32[1,128], index: 2, kind: input, shape index: {}]
  %s3 = inlined_call_operand.vmem [shape: bf16[512,128], index: 3, kind: output, shape index: {}]
  %s4 = sld [smem:[#allocation0]]
  $region53: #{bottleneck_forward.4} parent=0
    _
  %s6 = ssub.s32 1, %s4
  %s7 = scalar_select 0, %s6, %s4
  loop: start=0, step=1, limit=4
  $region2: #{bottleneck_forward.4} parent=0 // loop_pre_header
    _
  $region3: #{bottleneck_forward.4} parent=0 // loop_header
    %s9 = sphi 0, %s13
    %p10 = scmp.ge.s32.totalorder %s9, 4
    %s16 = sphi 0, %s35
    %s17 = sphi 0, %s31
    %s18 = sphi 0, %s27
    %s19 = sphi 0, %s16
    %s20 = sphi 0, %s17
    %s21 = sphi 0, %s18
    %s22 = sphi 0, %s19
    %s23 = sphi 0, %s20
    %s24 = sphi 0, %s21
    %s40 = sphi 0, %s42
    %s43 = sphi 0, %s40
    %s44 = sphi 0, %s43
    %s60 = sphi 0, %s44
    %s68 = sphi 0, %s70
    %s71 = sphi 0, %s68
    %s72 = sphi 0, %s71
    %s88 = sphi 0, %s72
    %s94 = sphi 0, %s96
    %s97 = sphi 0, %s94
    %s98 = sphi 0, %s97
    %s114 = sphi 0, %s98
    %s122 = sphi 0, %s124
    %s125 = sphi 0, %s122
    %s126 = sphi 0, %s125
    %s142 = sphi 0, %s126
  $region4: #{bottleneck_forward.4} parent=0 // loop_header_branch
    %12 = sbr.rel (%p10) target = $region8
  $region5: #{bottleneck_forward.4} parent=0 // loop_body
    %s14 = ssub.s32 %s9, 1
    %s15 = ssub.s32 %s9, 2
    %s25 = sadd.s32 1, %s18
    %p26 = scmp.ge.s32.totalorder %s25, 1
    %s27 = scalar_select %p26, 0, %s25
    %s28 = sadd.s32 1, %s17
    %s29 = scalar_select %p26, %s28, %s17
    %p30 = scmp.ge.s32.totalorder %s29, 1
    %s31 = scalar_select %p30, 0, %s29
    %s32 = sadd.s32 1, %s16
    %s33 = scalar_select %p30, %s32, %s16
    %p34 = scmp.ge.s32.totalorder %s33, 2
    %s35 = scalar_select %p34, 0, %s33
    %s36 = ssub.s32 %s16, %s35
    %s37 = ssub.s32 %s18, %s27
    %s38 = sor.u32 %s36, %s37
    %p39 = scmp.eq.s32.totalorder %s38, 0
    %s41 = sadd.s32 %s40, 1
    %s42 = scalar_select %p39, %s40, %s41
    %p45 = pneg %p39
    %p46 = scmp.eq.s32.totalorder %s9, 1
    %p47 = por %p45, %p46
    %p48 = scmp.ne.s32.totalorder %s40, %s43
    %p49 = scmp.eq.s32.totalorder %s9, 0
    %p50 = por %p48, %p49
    %p51 = scmp.ne.s32.totalorder %s40, %s43
    %p52 = scmp.eq.s32.totalorder %s14, 1
    %p53 = por %p51, %p52
    %p54 = scmp.ne.s32.totalorder %s43, %s44
    %p55 = scmp.eq.s32.totalorder %s14, 0
    %p56 = por %p54, %p55
    %p57 = scmp.ne.s32.totalorder %s43, %s44
    %p58 = scmp.eq.s32.totalorder %s15, 1
    %p59 = por %p57, %p58
    %p61 = scmp.ne.s32.totalorder %s44, %s60
    %p62 = scmp.eq.s32.totalorder %s15, 0
    %p63 = por %p61, %p62
    %s64 = ssub.s32 %s18, %s27
    %s65 = ssub.s32 %s17, %s31
    %s66 = sor.u32 %s64, %s65
    %p67 = scmp.eq.s32.totalorder %s66, 0
    %s69 = sadd.s32 %s68, 1
    %s70 = scalar_select %p67, %s68, %s69
    %p73 = pneg %p67
    %p74 = scmp.eq.s32.totalorder %s9, 1
    %p75 = por %p73, %p74
    %p76 = scmp.ne.s32.totalorder %s68, %s71
    %p77 = scmp.eq.s32.totalorder %s9, 0
    %p78 = por %p76, %p77
    %p79 = scmp.ne.s32.totalorder %s68, %s71
    %p80 = scmp.eq.s32.totalorder %s14, 1
    %p81 = por %p79, %p80
    %p82 = scmp.ne.s32.totalorder %s71, %s72
    %p83 = scmp.eq.s32.totalorder %s14, 0
    %p84 = por %p82, %p83
    %p85 = scmp.ne.s32.totalorder %s71, %s72
    %p86 = scmp.eq.s32.totalorder %s15, 1
    %p87 = por %p85, %p86
    %p89 = scmp.ne.s32.totalorder %s72, %s88
    %p90 = scmp.eq.s32.totalorder %s15, 0
    %p91 = por %p89, %p90
    %s92 = ssub.s32 %s17, %s31
    %p93 = scmp.eq.s32.totalorder %s92, 0
    %s95 = sadd.s32 %s94, 1
    %s96 = scalar_select %p93, %s94, %s95
    %p99 = pneg %p93
    %p100 = scmp.eq.s32.totalorder %s9, 1
    %p101 = por %p99, %p100
    %p102 = scmp.ne.s32.totalorder %s94, %s97
    %p103 = scmp.eq.s32.totalorder %s9, 0
    %p104 = por %p102, %p103
    %p105 = scmp.ne.s32.totalorder %s94, %s97
    %p106 = scmp.eq.s32.totalorder %s14, 1
    %p107 = por %p105, %p106
    %p108 = scmp.ne.s32.totalorder %s97, %s98
    %p109 = scmp.eq.s32.totalorder %s14, 0
    %p110 = por %p108, %p109
    %p111 = scmp.ne.s32.totalorder %s97, %s98
    %p112 = scmp.eq.s32.totalorder %s15, 1
    %p113 = por %p111, %p112
    %p115 = scmp.ne.s32.totalorder %s98, %s114
    %p116 = scmp.eq.s32.totalorder %s15, 0
    %p117 = por %p115, %p116
    %s118 = ssub.s32 %s16, %s35
    %s119 = ssub.s32 %s17, %s31
    %s120 = sor.u32 %s118, %s119
    %p121 = scmp.eq.s32.totalorder %s120, 0
    %s123 = sadd.s32 %s122, 1
    %s124 = scalar_select %p121, %s122, %s123
    %p127 = pneg %p121
    %p128 = scmp.eq.s32.totalorder %s9, 1
    %p129 = por %p127, %p128
    %p130 = scmp.ne.s32.totalorder %s122, %s125
    %p131 = scmp.eq.s32.totalorder %s9, 0
    %p132 = por %p130, %p131
    %p133 = scmp.ne.s32.totalorder %s122, %s125
    %p134 = scmp.eq.s32.totalorder %s14, 1
    %p135 = por %p133, %p134
    %p136 = scmp.ne.s32.totalorder %s125, %s126
    %p137 = scmp.eq.s32.totalorder %s14, 0
    %p138 = por %p136, %p137
    %p139 = scmp.ne.s32.totalorder %s125, %s126
    %p140 = scmp.eq.s32.totalorder %s15, 1
    %p141 = por %p139, %p140
    %p143 = scmp.ne.s32.totalorder %s126, %s142
    %p144 = scmp.eq.s32.totalorder %s15, 0
    %p145 = por %p143, %p144
    %p146 = scmp.le.s32.totalorder 1, %s9
    %p147 = scmp.lt.s32.totalorder %s9, 3
    %p148 = pnand %p146, %p147
    %p149 = pneg %p148
    // Predicated region
    $region9: #{bottleneck_forward.4} parent=5 // pred_check
      _
    $region10: #{bottleneck_forward.4} parent=5 // pred_check_branch
      %151 = sbr.rel (%p148) target = $region12
    $region11: #{bottleneck_forward.4} parent=5 // pred_region
      %s152 = ssub.s32 %s9, 1
      // Predicated region
      $region13: #{bottleneck_forward.4} parent=11 // pred_check
        %p153 = pneg %p84
      $region14: #{bottleneck_forward.4} parent=11 // pred_check_branch
        %155 = sbr.rel (%p153) target = $region16
      $region15: #{bottleneck_forward.4} parent=11 // pred_region
        %s156 = smul.u32 16, %s21
        %p157 = scmp.lt.s32.totalorder %s156, 15
        %s158 = scalar_select %p157, %s156, 15
        %p159 = scmp.lt.s32.totalorder %s20, 0
        %s160 = scalar_select %p159, %s20, 0
        %s161 = sadd.s32 %s160, %s158
        %s162 = smul.addr %s161, 4
        %s163 = scalar_lea.vmem %s1, %s162
        %s164 = smul.u32 16, %s21
      $region16: #{bottleneck_forward.4} parent=11 // pred_fallthru
        _
      // Predicated region
      $region17: #{bottleneck_forward.4} parent=11 // pred_check
        %p165 = pneg %p110
      $region18: #{bottleneck_forward.4} parent=11 // pred_check_branch
        %167 = sbr.rel (%p165) target = $region20
      $region19: #{bottleneck_forward.4} parent=11 // pred_region
        %p168 = scmp.lt.s32.totalorder %s20, 0
        %s169 = scalar_select %p168, %s20, 0
        %s170 = scalar_lea.vmem %s2, %s169
      $region20: #{bottleneck_forward.4} parent=11 // pred_fallthru
        _
    $region12: #{bottleneck_forward.4} parent=5 // pred_fallthru
      _
    %p171 = scmp.lt.s32.totalorder %s9, 2
    // Predicated region
    $region21: #{bottleneck_forward.4} parent=5 // pred_check
      %p172 = pneg %p171
    $region22: #{bottleneck_forward.4} parent=5 // pred_check_branch
      %174 = sbr.rel (%p172) target = $region24
    $region23: #{bottleneck_forward.4} parent=5 // pred_region
      // Predicated region
      $region25: #{bottleneck_forward.4} parent=23 // pred_check
        %p175 = pneg %p50
      $region26: #{bottleneck_forward.4} parent=23 // pred_check_branch
        %177 = sbr.rel (%p175) target = $region28
      $region27: #{bottleneck_forward.4} parent=23 // pred_region
        %s178 = smul.u32 32, %s16
        %p179 = scmp.lt.s32.totalorder %s178, 63
        %s180 = scalar_select %p179, %s178, 63
        %p181 = scmp.lt.s32.totalorder %s18, 0
        %s182 = scalar_select %p181, %s18, 0
        %s183 = sadd.s32 %s182, %s180
        %s184 = smul.addr %s183, 4
        %s185 = scalar_lea.vmem %s0, %s184
        %s186 = smul.u32 32, %s16
      $region28: #{bottleneck_forward.4} parent=23 // pred_fallthru
        _
    $region24: #{bottleneck_forward.4} parent=5 // pred_fallthru
      _
    %p187 = scmp.le.s32.totalorder 1, %s9
    %p188 = scmp.lt.s32.totalorder %s9, 3
    %p189 = pnand %p187, %p188
    %p190 = pneg %p189
    // Predicated region
    $region29: #{bottleneck_forward.4} parent=5 // pred_check
      _
    $region30: #{bottleneck_forward.4} parent=5 // pred_check_branch
      %192 = sbr.rel (%p189) target = $region32
    $region31: #{bottleneck_forward.4} parent=5 // pred_region
      %s193 = ssub.s32 %s9, 1
      %s194 = smul.u32 32, %s19
      %p195 = scmp.lt.s32.totalorder %s194, 63
      %s196 = scalar_select %p195, %s194, 63
      %p197 = scmp.lt.s32.totalorder %s21, 0
      %s198 = scalar_select %p197, %s21, 0
      %s199 = sadd.s32 %s198, %s196
      %s200 = smul.addr %s199, 4
      %s201 = scalar_lea.vmem %s0, %s200
      %p202 = pneg %p56
      %p203 = pneg %p53
      %s204 = smul.u32 16, %s21
      %p205 = scmp.lt.s32.totalorder %s204, 15
      %s206 = scalar_select %p205, %s204, 15
      %p207 = scmp.lt.s32.totalorder %s20, 0
      %s208 = scalar_select %p207, %s20, 0
      %s209 = sadd.s32 %s208, %s206
      %s210 = smul.addr %s209, 4
      %s211 = scalar_lea.vmem %s1, %s210
      %p212 = pneg %p84
      %p213 = pneg %p81
      %p214 = scmp.lt.s32.totalorder %s20, 0
      %s215 = scalar_select %p214, %s20, 0
      %s216 = scalar_lea.vmem %s2, %s215
      %p217 = pneg %p110
      %p218 = pneg %p107
      %p219 = pneg %p138
      %p220 = pneg %p135
      %s221 = smul.u32 32, %s19
      %p222 = scmp.lt.s32.totalorder %s221, 63
      %s223 = scalar_select %p222, %s221, 63
      %p224 = scmp.lt.s32.totalorder %s20, 0
      %s225 = scalar_select %p224, %s20, 0
      %s226 = sadd.s32 %s225, %s223
      %s227 = smul.addr %s226, 4
      %s228 = scalar_lea.vmem %s3, %s227
      %s229 = smul.u32 32, %s19
      %p230 = scmp.lt.s32.totalorder %s229, 63
      %s231 = scalar_select %p230, %s229, 63
      %p232 = scmp.lt.s32.totalorder %s21, 0
      %s233 = scalar_select %p232, %s21, 0
      %s234 = sadd.s32 %s233, %s231
      %s235 = smul.addr %s234, 4
      %s236 = scalar_lea.vmem %s0, %s235
      %s237 = smul.u32 32, %s19
      %s238 = smul.u32 16, %s21
      %p239 = scmp.lt.s32.totalorder %s238, 15
      %s240 = scalar_select %p239, %s238, 15
      %p241 = scmp.lt.s32.totalorder %s20, 0
      %s242 = scalar_select %p241, %s20, 0
      %s243 = sadd.s32 %s242, %s240
      %s244 = smul.addr %s243, 4
      %s245 = scalar_lea.vmem %s1, %s244
      %s246 = smul.u32 16, %s21
      %p247 = scmp.lt.s32.totalorder %s20, 0
      %s248 = scalar_select %p247, %s20, 0
      %s249 = scalar_lea.vmem %s2, %s248
      %s250 = smul.u32 32, %s19
      %p251 = scmp.lt.s32.totalorder %s250, 63
      %s252 = scalar_select %p251, %s250, 63
      %p253 = scmp.lt.s32.totalorder %s20, 0
      %s254 = scalar_select %p253, %s20, 0
      %s255 = sadd.s32 %s254, %s252
      %s256 = smul.addr %s255, 4
      %s257 = scalar_lea.vmem %s3, %s256
      %s258 = smul.u32 32, %s19
      %p260 = scmp.eq.s32.totalorder %s21, 0
      // Predicated region
      $region33: #{bottleneck_forward.4} parent=31 // pred_check
        %p261 = pneg %p260
      $region34: #{bottleneck_forward.4} parent=31 // pred_check_branch
        %263 = sbr.rel (%p261) target = $region36
      $region35: #{bottleneck_forward.4} parent=31 // pred_region
        %264 = vst [vmem:[#allocation2] sm:$0xff] 0.0
        %265 = vst [vmem:[#allocation2 + $0x8] sm:$0xff] 0.0
        %266 = vst [vmem:[#allocation2 + $0x10] sm:$0xff] 0.0
        %267 = vst [vmem:[#allocation2 + $0x18] sm:$0xff] 0.0
        %268 = vst [vmem:[#allocation2 + $0x20] sm:$0xff] 0.0
        %269 = vst [vmem:[#allocation2 + $0x28] sm:$0xff] 0.0
        %270 = vst [vmem:[#allocation2 + $0x30] sm:$0xff] 0.0
        %271 = vst [vmem:[#allocation2 + $0x38] sm:$0xff] 0.0
        %272 = vst [vmem:[#allocation2 + $0x40] sm:$0xff] 0.0
        %273 = vst [vmem:[#allocation2 + $0x48] sm:$0xff] 0.0
        %274 = vst [vmem:[#allocation2 + $0x50] sm:$0xff] 0.0
        %275 = vst [vmem:[#allocation2 + $0x58] sm:$0xff] 0.0
        %276 = vst [vmem:[#allocation2 + $0x60] sm:$0xff] 0.0
        %277 = vst [vmem:[#allocation2 + $0x68] sm:$0xff] 0.0
        %278 = vst [vmem:[#allocation2 + $0x70] sm:$0xff] 0.0
        %279 = vst [vmem:[#allocation2 + $0x78] sm:$0xff] 0.0
        %280 = vst [vmem:[#allocation2 + $0x80] sm:$0xff] 0.0
        %281 = vst [vmem:[#allocation2 + $0x88] sm:$0xff] 0.0
        %282 = vst [vmem:[#allocation2 + $0x90] sm:$0xff] 0.0
        %283 = vst [vmem:[#allocation2 + $0x98] sm:$0xff] 0.0
        %284 = vst [vmem:[#allocation2 + $0xa0] sm:$0xff] 0.0
        %285 = vst [vmem:[#allocation2 + $0xa8] sm:$0xff] 0.0
        %286 = vst [vmem:[#allocation2 + $0xb0] sm:$0xff] 0.0
        %287 = vst [vmem:[#allocation2 + $0xb8] sm:$0xff] 0.0
        %288 = vst [vmem:[#allocation2 + $0xc0] sm:$0xff] 0.0
        %289 = vst [vmem:[#allocation2 + $0xc8] sm:$0xff] 0.0
        %290 = vst [vmem:[#allocation2 + $0xd0] sm:$0xff] 0.0
        %291 = vst [vmem:[#allocation2 + $0xd8] sm:$0xff] 0.0
        %292 = vst [vmem:[#allocation2 + $0xe0] sm:$0xff] 0.0
        %293 = vst [vmem:[#allocation2 + $0xe8] sm:$0xff] 0.0
        %294 = vst [vmem:[#allocation2 + $0xf0] sm:$0xff] 0.0
        %295 = vst [vmem:[#allocation2 + $0xf8] sm:$0xff] 0.0
      $region36: #{bottleneck_forward.4} parent=31 // pred_fallthru
        _
      %v296 = vld [vmem:[#allocation2] sm:$0xff]
      %v297 = vld [vmem:[#allocation2 + $0x8] sm:$0xff]
      %v298 = vld [vmem:[#allocation2 + $0x10] sm:$0xff]
      %v299 = vld [vmem:[#allocation2 + $0x18] sm:$0xff]
      %v300 = vld [vmem:[#allocation2 + $0x20] sm:$0xff]
      %v301 = vld [vmem:[#allocation2 + $0x28] sm:$0xff]
      %v302 = vld [vmem:[#allocation2 + $0x30] sm:$0xff]
      %v303 = vld [vmem:[#allocation2 + $0x38] sm:$0xff]
      %v304 = vld [vmem:[#allocation2 + $0x40] sm:$0xff]
      %v305 = vld [vmem:[#allocation2 + $0x48] sm:$0xff]
      %v306 = vld [vmem:[#allocation2 + $0x50] sm:$0xff]
      %v307 = vld [vmem:[#allocation2 + $0x58] sm:$0xff]
      %v308 = vld [vmem:[#allocation2 + $0x60] sm:$0xff]
      %v309 = vld [vmem:[#allocation2 + $0x68] sm:$0xff]
      %v310 = vld [vmem:[#allocation2 + $0x70] sm:$0xff]
      %v311 = vld [vmem:[#allocation2 + $0x78] sm:$0xff]
      %v312 = vld [vmem:[#allocation2 + $0x80] sm:$0xff]
      %v313 = vld [vmem:[#allocation2 + $0x88] sm:$0xff]
      %v314 = vld [vmem:[#allocation2 + $0x90] sm:$0xff]
      %v315 = vld [vmem:[#allocation2 + $0x98] sm:$0xff]
      %v316 = vld [vmem:[#allocation2 + $0xa0] sm:$0xff]
      %v317 = vld [vmem:[#allocation2 + $0xa8] sm:$0xff]
      %v318 = vld [vmem:[#allocation2 + $0xb0] sm:$0xff]
      %v319 = vld [vmem:[#allocation2 + $0xb8] sm:$0xff]
      %v320 = vld [vmem:[#allocation2 + $0xc0] sm:$0xff]
      %v321 = vld [vmem:[#allocation2 + $0xc8] sm:$0xff]
      %v322 = vld [vmem:[#allocation2 + $0xd0] sm:$0xff]
      %v323 = vld [vmem:[#allocation2 + $0xd8] sm:$0xff]
      %v324 = vld [vmem:[#allocation2 + $0xe0] sm:$0xff]
      %v325 = vld [vmem:[#allocation2 + $0xe8] sm:$0xff]
      %v326 = vld [vmem:[#allocation2 + $0xf0] sm:$0xff]
      %v327 = vld [vmem:[#allocation2 + $0xf8] sm:$0xff]
      %v328 = vld [vmem:[%s236] sm:$0xf]
      %v329 = vld [vmem:[%s236 + $0x4] sm:$0xf]
      %v330 = vld [vmem:[%s236 + $0x8] sm:$0xf]
      %v331 = vld [vmem:[%s236 + $0xc] sm:$0xf]
      %v332 = vld [vmem:[%s236 + $0x10] sm:$0xf]
      %v333 = vld [vmem:[%s236 + $0x14] sm:$0xf]
      %v334 = vld [vmem:[%s236 + $0x18] sm:$0xf]
      %v335 = vld [vmem:[%s236 + $0x1c] sm:$0xf]
      %v336 = vld [vmem:[%s236 + $0x20] sm:$0xf]
      %v337 = vld [vmem:[%s236 + $0x24] sm:$0xf]
      %v338 = vld [vmem:[%s236 + $0x28] sm:$0xf]
      %v339 = vld [vmem:[%s236 + $0x2c] sm:$0xf]
      %v340 = vld [vmem:[%s236 + $0x30] sm:$0xf]
      %v341 = vld [vmem:[%s236 + $0x34] sm:$0xf]
      %v342 = vld [vmem:[%s236 + $0x38] sm:$0xf]
      %v343 = vld [vmem:[%s236 + $0x3c] sm:$0xf]
      %v344 = vld [vmem:[%s236 + $0x40] sm:$0xf]
      %v345 = vld [vmem:[%s236 + $0x44] sm:$0xf]
      %v346 = vld [vmem:[%s236 + $0x48] sm:$0xf]
      %v347 = vld [vmem:[%s236 + $0x4c] sm:$0xf]
      %v348 = vld [vmem:[%s236 + $0x50] sm:$0xf]
      %v349 = vld [vmem:[%s236 + $0x54] sm:$0xf]
      %v350 = vld [vmem:[%s236 + $0x58] sm:$0xf]
      %v351 = vld [vmem:[%s236 + $0x5c] sm:$0xf]
      %v352 = vld [vmem:[%s236 + $0x60] sm:$0xf]
      %v353 = vld [vmem:[%s236 + $0x64] sm:$0xf]
      %v354 = vld [vmem:[%s236 + $0x68] sm:$0xf]
      %v355 = vld [vmem:[%s236 + $0x6c] sm:$0xf]
      %v356 = vld [vmem:[%s236 + $0x70] sm:$0xf]
      %v357 = vld [vmem:[%s236 + $0x74] sm:$0xf]
      %v358 = vld [vmem:[%s236 + $0x78] sm:$0xf]
      %v359 = vld [vmem:[%s236 + $0x7c] sm:$0xf]
      %v360 = vld [vmem:[%s245] sm:$0xf]
      %v361 = vld [vmem:[%s245 + $0x4] sm:$0xf]
      %v362 = vld [vmem:[%s245 + $0x8] sm:$0xf]
      %v363 = vld [vmem:[%s245 + $0xc] sm:$0xf]
      %v364 = vld [vmem:[%s245 + $0x10] sm:$0xf]
      %v365 = vld [vmem:[%s245 + $0x14] sm:$0xf]
      %v366 = vld [vmem:[%s245 + $0x18] sm:$0xf]
      %v367 = vld [vmem:[%s245 + $0x1c] sm:$0xf]
      %v368 = vld [vmem:[%s245 + $0x20] sm:$0xf]
      %v369 = vld [vmem:[%s245 + $0x24] sm:$0xf]
      %v370 = vld [vmem:[%s245 + $0x28] sm:$0xf]
      %v371 = vld [vmem:[%s245 + $0x2c] sm:$0xf]
      %v372 = vld [vmem:[%s245 + $0x30] sm:$0xf]
      %v373 = vld [vmem:[%s245 + $0x34] sm:$0xf]
      %v374 = vld [vmem:[%s245 + $0x38] sm:$0xf]
      %v375 = vld [vmem:[%s245 + $0x3c] sm:$0xf]
      %v408 = vunpack.c.l.b16 %v328
      %v409 = vunpack.c.l.b16 %v329
      %v410 = vunpack.c.l.b16 %v330
      %v411 = vunpack.c.l.b16 %v331
      %v412 = vunpack.c.l.b16 %v332
      %v413 = vunpack.c.l.b16 %v333
      %v414 = vunpack.c.l.b16 %v334
      %v415 = vunpack.c.l.b16 %v335
      %v416 = vunpack.c.l.b16 %v336
      %v417 = vunpack.c.l.b16 %v337
      %v418 = vunpack.c.l.b16 %v338
      %v419 = vunpack.c.l.b16 %v339
      %v420 = vunpack.c.l.b16 %v340
      %v421 = vunpack.c.l.b16 %v341
      %v422 = vunpack.c.l.b16 %v342
      %v423 = vunpack.c.l.b16 %v343
      %v424 = vunpack.c.l.b16 %v344
      %v425 = vunpack.c.l.b16 %v345
      %v426 = vunpack.c.l.b16 %v346
      %v427 = vunpack.c.l.b16 %v347
      %v428 = vunpack.c.l.b16 %v348
      %v429 = vunpack.c.l.b16 %v349
      %v430 = vunpack.c.l.b16 %v350
      %v431 = vunpack.c.l.b16 %v351
      %v432 = vunpack.c.l.b16 %v352
      %v433 = vunpack.c.l.b16 %v353
      %v434 = vunpack.c.l.b16 %v354
      %v435 = vunpack.c.l.b16 %v355
      %v436 = vunpack.c.l.b16 %v356
      %v437 = vunpack.c.l.b16 %v357
      %v438 = vunpack.c.l.b16 %v358
      %v439 = vunpack.c.l.b16 %v359
      %v440 = vpack.c.b16 %v409, %v408
      %v441 = vpack.c.b16 %v411, %v410
      %v442 = vpack.c.b16 %v413, %v412
      %v443 = vpack.c.b16 %v415, %v414
      %v444 = vpack.c.b16 %v417, %v416
      %v445 = vpack.c.b16 %v419, %v418
      %v446 = vpack.c.b16 %v421, %v420
      %v447 = vpack.c.b16 %v423, %v422
      %v448 = vpack.c.b16 %v425, %v424
      %v449 = vpack.c.b16 %v427, %v426
      %v450 = vpack.c.b16 %v429, %v428
      %v451 = vpack.c.b16 %v431, %v430
      %v452 = vpack.c.b16 %v433, %v432
      %v453 = vpack.c.b16 %v435, %v434
      %v454 = vpack.c.b16 %v437, %v436
      %v455 = vpack.c.b16 %v439, %v438
      %v488 = vunpack.c.l.b16 %v360
      %v489 = vunpack.c.l.b16 %v361
      %v490 = vunpack.c.l.b16 %v362
      %v491 = vunpack.c.l.b16 %v363
      %v492 = vunpack.c.l.b16 %v364
      %v493 = vunpack.c.l.b16 %v365
      %v494 = vunpack.c.l.b16 %v366
      %v495 = vunpack.c.l.b16 %v367
      %v496 = vunpack.c.l.b16 %v368
      %v497 = vunpack.c.l.b16 %v369
      %v498 = vunpack.c.l.b16 %v370
      %v499 = vunpack.c.l.b16 %v371
      %v500 = vunpack.c.l.b16 %v372
      %v501 = vunpack.c.l.b16 %v373
      %v502 = vunpack.c.l.b16 %v374
      %v503 = vunpack.c.l.b16 %v375
      %v504 = vpack.c.b16 %v489, %v488
      %v505 = vpack.c.b16 %v491, %v490
      %v506 = vpack.c.b16 %v493, %v492
      %v507 = vpack.c.b16 %v495, %v494
      %v508 = vpack.c.b16 %v497, %v496
      %v509 = vpack.c.b16 %v499, %v498
      %v510 = vpack.c.b16 %v501, %v500
      %v511 = vpack.c.b16 %v503, %v502
      %520 = vmatprep.subr.bf16.mxu0 0
      %521 = vmatpush1.bf16.msra.mxu0 %v504
      %522 = vmatprep.subr.bf16.mxu0 0
      %523 = vmatpush1.bf16.msra.mxu0 %v505
      %524 = vmatprep.subr.bf16.mxu0 0
      %525 = vmatpush1.bf16.msra.mxu0 %v506
      %526 = vmatprep.subr.bf16.mxu0 0
      %527 = vmatpush1.bf16.msra.mxu0 %v507
      %528 = vmatprep.subr.bf16.mxu0 0
      %529 = vmatpush1.bf16.msra.mxu0 %v508
      %530 = vmatprep.subr.bf16.mxu0 0
      %531 = vmatpush1.bf16.msra.mxu0 %v509
      %532 = vmatprep.subr.bf16.mxu0 0
      %533 = vmatpush1.bf16.msra.mxu0 %v510
      %534 = vmatprep.subr.bf16.mxu0 0
      %535 = vmatpush1.bf16.msra.mxu0 %v511
      %536 = vmatprep.subr.bf16.mxu0 0
      %537 = vmatpush1.bf16.msra.mxu0 0
      %538 = vmatprep.subr.bf16.mxu0 0
      %539 = vmatpush1.bf16.msra.mxu0 0
      %540 = vmatprep.subr.bf16.mxu0 0
      %541 = vmatpush1.bf16.msra.mxu0 0
      %542 = vmatprep.subr.bf16.mxu0 0
      %543 = vmatpush1.bf16.msra.mxu0 0
      %544 = vmatprep.subr.bf16.mxu0 0
      %545 = vmatpush1.bf16.msra.mxu0 0
      %546 = vmatprep.subr.bf16.mxu0 0
      %547 = vmatpush1.bf16.msra.mxu0 0
      %548 = vmatprep.subr.bf16.mxu0 0
      %549 = vmatpush1.bf16.msra.mxu0 0
      %550 = vmatprep.subr.bf16.mxu0 0
      %551 = vmatpush1.bf16.msra.mxu0 0
      %552 = vmatprep.mubr.bf16.mxu0 0
      %553 = vmatmul.mubr.bf16.gmra.mrb[0].mxu0 %v440
      %v554 = vpop.f32.mrb[0].mxu0
      %v555 = vadd.f32 0.0, %v554
      %v556 = vpop.f32.mrb[0].mxu0
      %v557 = vpop.f32.mrb[0].mxu0
      %v558 = vadd.f32 0.0, %v557
      %v559 = vpop.f32.mrb[0].mxu0
      %560 = vmatprep.mubr.bf16.mxu0 0
      %561 = vmatmul.mubr.bf16.gmra.mrb[0].mxu0 %v441
      %v562 = vpop.f32.mrb[0].mxu0
      %v563 = vadd.f32 0.0, %v562
      %v564 = vpop.f32.mrb[0].mxu0
      %v565 = vpop.f32.mrb[0].mxu0
      %v566 = vadd.f32 0.0, %v565
      %v567 = vpop.f32.mrb[0].mxu0
      %568 = vmatprep.mubr.bf16.mxu0 0
      %569 = vmatmul.mubr.bf16.gmra.mrb[0].mxu0 %v442
      %v570 = vpop.f32.mrb[0].mxu0
      %v571 = vadd.f32 0.0, %v570
      %v572 = vpop.f32.mrb[0].mxu0
      %v573 = vpop.f32.mrb[0].mxu0
      %v574 = vadd.f32 0.0, %v573
      %v575 = vpop.f32.mrb[0].mxu0
      %576 = vmatprep.mubr.bf16.mxu0 0
      %577 = vmatmul.mubr.bf16.gmra.mrb[0].mxu0 %v443
      %v578 = vpop.f32.mrb[0].mxu0
      %v579 = vadd.f32 0.0, %v578
      %v580 = vpop.f32.mrb[0].mxu0
      %v581 = vpop.f32.mrb[0].mxu0
      %v582 = vadd.f32 0.0, %v581
      %v583 = vpop.f32.mrb[0].mxu0
      %584 = vmatprep.mubr.bf16.mxu0 0
      %585 = vmatmul.mubr.bf16.gmra.mrb[0].mxu0 %v444
      %v586 = vpop.f32.mrb[0].mxu0
      %v587 = vadd.f32 0.0, %v586
      %v588 = vpop.f32.mrb[0].mxu0
      %v589 = vpop.f32.mrb[0].mxu0
      %v590 = vadd.f32 0.0, %v589
      %v591 = vpop.f32.mrb[0].mxu0
      %592 = vmatprep.mubr.bf16.mxu0 0
      %593 = vmatmul.mubr.bf16.gmra.mrb[0].mxu0 %v445
      %v594 = vpop.f32.mrb[0].mxu0
      %v595 = vadd.f32 0.0, %v594
      %v596 = vpop.f32.mrb[0].mxu0
      %v597 = vpop.f32.mrb[0].mxu0
      %v598 = vadd.f32 0.0, %v597
      %v599 = vpop.f32.mrb[0].mxu0
      %600 = vmatprep.mubr.bf16.mxu0 0
      %601 = vmatmul.mubr.bf16.gmra.mrb[0].mxu0 %v446
      %v602 = vpop.f32.mrb[0].mxu0
      %v603 = vadd.f32 0.0, %v602
      %v604 = vpop.f32.mrb[0].mxu0
      %v605 = vpop.f32.mrb[0].mxu0
      %v606 = vadd.f32 0.0, %v605
      %v607 = vpop.f32.mrb[0].mxu0
      %608 = vmatprep.mubr.bf16.mxu0 0
      %609 = vmatmul.mubr.bf16.gmra.mrb[0].mxu0 %v447
      %v610 = vpop.f32.mrb[0].mxu0
      %v611 = vadd.f32 0.0, %v610
      %v612 = vpop.f32.mrb[0].mxu0
      %v613 = vpop.f32.mrb[0].mxu0
      %v614 = vadd.f32 0.0, %v613
      %v615 = vpop.f32.mrb[0].mxu0
      %616 = vmatprep.mubr.bf16.mxu0 0
      %617 = vmatmul.mubr.bf16.gmra.mrb[0].mxu0 %v448
      %v618 = vpop.f32.mrb[0].mxu0
      %v619 = vadd.f32 0.0, %v618
      %v620 = vpop.f32.mrb[0].mxu0
      %v621 = vpop.f32.mrb[0].mxu0
      %v622 = vadd.f32 0.0, %v621
      %v623 = vpop.f32.mrb[0].mxu0
      %624 = vmatprep.mubr.bf16.mxu0 0
      %625 = vmatmul.mubr.bf16.gmra.mrb[0].mxu0 %v449
      %v626 = vpop.f32.mrb[0].mxu0
      %v627 = vadd.f32 0.0, %v626
      %v628 = vpop.f32.mrb[0].mxu0
      %v629 = vpop.f32.mrb[0].mxu0
      %v630 = vadd.f32 0.0, %v629
      %v631 = vpop.f32.mrb[0].mxu0
      %632 = vmatprep.mubr.bf16.mxu0 0
      %633 = vmatmul.mubr.bf16.gmra.mrb[0].mxu0 %v450
      %v634 = vpop.f32.mrb[0].mxu0
      %v635 = vadd.f32 0.0, %v634
      %v636 = vpop.f32.mrb[0].mxu0
      %v637 = vpop.f32.mrb[0].mxu0
      %v638 = vadd.f32 0.0, %v637
      %v639 = vpop.f32.mrb[0].mxu0
      %640 = vmatprep.mubr.bf16.mxu0 0
      %641 = vmatmul.mubr.bf16.gmra.mrb[0].mxu0 %v451
      %v642 = vpop.f32.mrb[0].mxu0
      %v643 = vadd.f32 0.0, %v642
      %v644 = vpop.f32.mrb[0].mxu0
      %v645 = vpop.f32.mrb[0].mxu0
      %v646 = vadd.f32 0.0, %v645
      %v647 = vpop.f32.mrb[0].mxu0
      %648 = vmatprep.mubr.bf16.mxu0 0
      %649 = vmatmul.mubr.bf16.gmra.mrb[0].mxu0 %v452
      %v650 = vpop.f32.mrb[0].mxu0
      %v651 = vadd.f32 0.0, %v650
      %v652 = vpop.f32.mrb[0].mxu0
      %v653 = vpop.f32.mrb[0].mxu0
      %v654 = vadd.f32 0.0, %v653
      %v655 = vpop.f32.mrb[0].mxu0
      %656 = vmatprep.mubr.bf16.mxu0 0
      %657 = vmatmul.mubr.bf16.gmra.mrb[0].mxu0 %v453
      %v658 = vpop.f32.mrb[0].mxu0
      %v659 = vadd.f32 0.0, %v658
      %v660 = vpop.f32.mrb[0].mxu0
      %v661 = vpop.f32.mrb[0].mxu0
      %v662 = vadd.f32 0.0, %v661
      %v663 = vpop.f32.mrb[0].mxu0
      %664 = vmatprep.mubr.bf16.mxu0 0
      %665 = vmatmul.mubr.bf16.gmra.mrb[0].mxu0 %v454
      %v666 = vpop.f32.mrb[0].mxu0
      %v667 = vadd.f32 0.0, %v666
      %v668 = vpop.f32.mrb[0].mxu0
      %v669 = vpop.f32.mrb[0].mxu0
      %v670 = vadd.f32 0.0, %v669
      %v671 = vpop.f32.mrb[0].mxu0
      %672 = vmatprep.mubr.bf16.mxu0 0
      %673 = vmatmul.mubr.bf16.gmra.mrb[0].mxu0 %v455
      %v674 = vpop.f32.mrb[0].mxu0
      %v675 = vadd.f32 0.0, %v674
      %v676 = vpop.f32.mrb[0].mxu0
      %v677 = vpop.f32.mrb[0].mxu0
      %v678 = vadd.f32 0.0, %v677
      %v679 = vpop.f32.mrb[0].mxu0
      %680 = vdwg.mxu0
      %v681 = vadd.f32 %v296, %v555
      %v682 = vadd.f32 %v297, %v558
      %v683 = vadd.f32 %v298, %v563
      %v684 = vadd.f32 %v299, %v566
      %v685 = vadd.f32 %v300, %v571
      %v686 = vadd.f32 %v301, %v574
      %v687 = vadd.f32 %v302, %v579
      %v688 = vadd.f32 %v303, %v582
      %v689 = vadd.f32 %v304, %v587
      %v690 = vadd.f32 %v305, %v590
      %v691 = vadd.f32 %v306, %v595
      %v692 = vadd.f32 %v307, %v598
      %v693 = vadd.f32 %v308, %v603
      %v694 = vadd.f32 %v309, %v606
      %v695 = vadd.f32 %v310, %v611
      %v696 = vadd.f32 %v311, %v614
      %v697 = vadd.f32 %v312, %v619
      %v698 = vadd.f32 %v313, %v622
      %v699 = vadd.f32 %v314, %v627
      %v700 = vadd.f32 %v315, %v630
      %v701 = vadd.f32 %v316, %v635
      %v702 = vadd.f32 %v317, %v638
      %v703 = vadd.f32 %v318, %v643
      %v704 = vadd.f32 %v319, %v646
      %v705 = vadd.f32 %v320, %v651
      %v706 = vadd.f32 %v321, %v654
      %v707 = vadd.f32 %v322, %v659
      %v708 = vadd.f32 %v323, %v662
      %v709 = vadd.f32 %v324, %v667
      %v710 = vadd.f32 %v325, %v670
      %v711 = vadd.f32 %v326, %v675
      %v712 = vadd.f32 %v327, %v678
      %713 = vst [vmem:[#allocation2] sm:$0xff] %v681
      %714 = vst [vmem:[#allocation2 + $0x8] sm:$0xff] %v682
      %715 = vst [vmem:[#allocation2 + $0x10] sm:$0xff] %v683
      %716 = vst [vmem:[#allocation2 + $0x18] sm:$0xff] %v684
      %717 = vst [vmem:[#allocation2 + $0x20] sm:$0xff] %v685
      %718 = vst [vmem:[#allocation2 + $0x28] sm:$0xff] %v686
      %719 = vst [vmem:[#allocation2 + $0x30] sm:$0xff] %v687
      %720 = vst [vmem:[#allocation2 + $0x38] sm:$0xff] %v688
      %721 = vst [vmem:[#allocation2 + $0x40] sm:$0xff] %v689
      %722 = vst [vmem:[#allocation2 + $0x48] sm:$0xff] %v690
      %723 = vst [vmem:[#allocation2 + $0x50] sm:$0xff] %v691
      %724 = vst [vmem:[#allocation2 + $0x58] sm:$0xff] %v692
      %725 = vst [vmem:[#allocation2 + $0x60] sm:$0xff] %v693
      %726 = vst [vmem:[#allocation2 + $0x68] sm:$0xff] %v694
      %727 = vst [vmem:[#allocation2 + $0x70] sm:$0xff] %v695
      %728 = vst [vmem:[#allocation2 + $0x78] sm:$0xff] %v696
      %729 = vst [vmem:[#allocation2 + $0x80] sm:$0xff] %v697
      %730 = vst [vmem:[#allocation2 + $0x88] sm:$0xff] %v698
      %731 = vst [vmem:[#allocation2 + $0x90] sm:$0xff] %v699
      %732 = vst [vmem:[#allocation2 + $0x98] sm:$0xff] %v700
      %733 = vst [vmem:[#allocation2 + $0xa0] sm:$0xff] %v701
      %734 = vst [vmem:[#allocation2 + $0xa8] sm:$0xff] %v702
      %735 = vst [vmem:[#allocation2 + $0xb0] sm:$0xff] %v703
      %736 = vst [vmem:[#allocation2 + $0xb8] sm:$0xff] %v704
      %737 = vst [vmem:[#allocation2 + $0xc0] sm:$0xff] %v705
      %738 = vst [vmem:[#allocation2 + $0xc8] sm:$0xff] %v706
      %739 = vst [vmem:[#allocation2 + $0xd0] sm:$0xff] %v707
      %740 = vst [vmem:[#allocation2 + $0xd8] sm:$0xff] %v708
      %741 = vst [vmem:[#allocation2 + $0xe0] sm:$0xff] %v709
      %742 = vst [vmem:[#allocation2 + $0xe8] sm:$0xff] %v710
      %743 = vst [vmem:[#allocation2 + $0xf0] sm:$0xff] %v711
      %744 = vst [vmem:[#allocation2 + $0xf8] sm:$0xff] %v712
      // Predicated region
      $region37: #{bottleneck_forward.4} parent=31 // pred_check
        %p745 = pneg %p260
      $region38: #{bottleneck_forward.4} parent=31 // pred_check_branch
        %747 = sbr.rel (%p745) target = $region40
      $region39: #{bottleneck_forward.4} parent=31 // pred_region
        %v748 = vld [vmem:[#allocation2] sm:$0xff]
        %v749 = vld [vmem:[#allocation2 + $0x8] sm:$0xff]
        %v750 = vld [vmem:[#allocation2 + $0x10] sm:$0xff]
        %v751 = vld [vmem:[#allocation2 + $0x18] sm:$0xff]
        %v752 = vld [vmem:[#allocation2 + $0x20] sm:$0xff]
        %v753 = vld [vmem:[#allocation2 + $0x28] sm:$0xff]
        %v754 = vld [vmem:[#allocation2 + $0x30] sm:$0xff]
        %v755 = vld [vmem:[#allocation2 + $0x38] sm:$0xff]
        %v756 = vld [vmem:[#allocation2 + $0x40] sm:$0xff]
        %v757 = vld [vmem:[#allocation2 + $0x48] sm:$0xff]
        %v758 = vld [vmem:[#allocation2 + $0x50] sm:$0xff]
        %v759 = vld [vmem:[#allocation2 + $0x58] sm:$0xff]
        %v760 = vld [vmem:[#allocation2 + $0x60] sm:$0xff]
        %v761 = vld [vmem:[#allocation2 + $0x68] sm:$0xff]
        %v762 = vld [vmem:[#allocation2 + $0x70] sm:$0xff]
        %v763 = vld [vmem:[#allocation2 + $0x78] sm:$0xff]
        %v764 = vld [vmem:[#allocation2 + $0x80] sm:$0xff]
        %v765 = vld [vmem:[#allocation2 + $0x88] sm:$0xff]
        %v766 = vld [vmem:[#allocation2 + $0x90] sm:$0xff]
        %v767 = vld [vmem:[#allocation2 + $0x98] sm:$0xff]
        %v768 = vld [vmem:[#allocation2 + $0xa0] sm:$0xff]
        %v769 = vld [vmem:[#allocation2 + $0xa8] sm:$0xff]
        %v770 = vld [vmem:[#allocation2 + $0xb0] sm:$0xff]
        %v771 = vld [vmem:[#allocation2 + $0xb8] sm:$0xff]
        %v772 = vld [vmem:[#allocation2 + $0xc0] sm:$0xff]
        %v773 = vld [vmem:[#allocation2 + $0xc8] sm:$0xff]
        %v774 = vld [vmem:[#allocation2 + $0xd0] sm:$0xff]
        %v775 = vld [vmem:[#allocation2 + $0xd8] sm:$0xff]
        %v776 = vld [vmem:[#allocation2 + $0xe0] sm:$0xff]
        %v777 = vld [vmem:[#allocation2 + $0xe8] sm:$0xff]
        %v778 = vld [vmem:[#allocation2 + $0xf0] sm:$0xff]
        %v779 = vld [vmem:[#allocation2 + $0xf8] sm:$0xff]
        %v780 = vld [vmem:[%s249] sm:$0x1]
        %v782 = vlaneseq
        %v783 = vshrl.u32 %v782, 7
        %v784 = vsub.s32 0, %v783
        %v785 = vrot.slane %v780, %v784
        %v787 = vadd.f32 %v748, %v785
        %v788 = vadd.f32 %v749, %v785
        %v789 = vadd.f32 %v750, %v785
        %v790 = vadd.f32 %v751, %v785
        %v791 = vadd.f32 %v752, %v785
        %v792 = vadd.f32 %v753, %v785
        %v793 = vadd.f32 %v754, %v785
        %v794 = vadd.f32 %v755, %v785
        %v795 = vadd.f32 %v756, %v785
        %v796 = vadd.f32 %v757, %v785
        %v797 = vadd.f32 %v758, %v785
        %v798 = vadd.f32 %v759, %v785
        %v799 = vadd.f32 %v760, %v785
        %v800 = vadd.f32 %v761, %v785
        %v801 = vadd.f32 %v762, %v785
        %v802 = vadd.f32 %v763, %v785
        %v803 = vadd.f32 %v764, %v785
        %v804 = vadd.f32 %v765, %v785
        %v805 = vadd.f32 %v766, %v785
        %v806 = vadd.f32 %v767, %v785
        %v807 = vadd.f32 %v768, %v785
        %v808 = vadd.f32 %v769, %v785
        %v809 = vadd.f32 %v770, %v785
        %v810 = vadd.f32 %v771, %v785
        %v811 = vadd.f32 %v772, %v785
        %v812 = vadd.f32 %v773, %v785
        %v813 = vadd.f32 %v774, %v785
        %v814 = vadd.f32 %v775, %v785
        %v815 = vadd.f32 %v776, %v785
        %v816 = vadd.f32 %v777, %v785
        %v817 = vadd.f32 %v778, %v785
        %v818 = vadd.f32 %v779, %v785
        %v819 = vmax.f32 %v787, 0.0
        %v820 = vmax.f32 %v788, 0.0
        %v821 = vmax.f32 %v789, 0.0
        %v822 = vmax.f32 %v790, 0.0
        %v823 = vmax.f32 %v791, 0.0
        %v824 = vmax.f32 %v792, 0.0
        %v825 = vmax.f32 %v793, 0.0
        %v826 = vmax.f32 %v794, 0.0
        %v827 = vmax.f32 %v795, 0.0
        %v828 = vmax.f32 %v796, 0.0
        %v829 = vmax.f32 %v797, 0.0
        %v830 = vmax.f32 %v798, 0.0
        %v831 = vmax.f32 %v799, 0.0
        %v832 = vmax.f32 %v800, 0.0
        %v833 = vmax.f32 %v801, 0.0
        %v834 = vmax.f32 %v802, 0.0
        %v835 = vmax.f32 %v803, 0.0
        %v836 = vmax.f32 %v804, 0.0
        %v837 = vmax.f32 %v805, 0.0
        %v838 = vmax.f32 %v806, 0.0
        %v839 = vmax.f32 %v807, 0.0
        %v840 = vmax.f32 %v808, 0.0
        %v841 = vmax.f32 %v809, 0.0
        %v842 = vmax.f32 %v810, 0.0
        %v843 = vmax.f32 %v811, 0.0
        %v844 = vmax.f32 %v812, 0.0
        %v845 = vmax.f32 %v813, 0.0
        %v846 = vmax.f32 %v814, 0.0
        %v847 = vmax.f32 %v815, 0.0
        %v848 = vmax.f32 %v816, 0.0
        %v849 = vmax.f32 %v817, 0.0
        %v850 = vmax.f32 %v818, 0.0
        %v851 = vpack.c.bf16 %v820, %v819
        %v852 = vpack.c.bf16 %v822, %v821
        %v853 = vpack.c.bf16 %v824, %v823
        %v854 = vpack.c.bf16 %v826, %v825
        %v855 = vpack.c.bf16 %v828, %v827
        %v856 = vpack.c.bf16 %v830, %v829
        %v857 = vpack.c.bf16 %v832, %v831
        %v858 = vpack.c.bf16 %v834, %v833
        %v859 = vpack.c.bf16 %v836, %v835
        %v860 = vpack.c.bf16 %v838, %v837
        %v861 = vpack.c.bf16 %v840, %v839
        %v862 = vpack.c.bf16 %v842, %v841
        %v863 = vpack.c.bf16 %v844, %v843
        %v864 = vpack.c.bf16 %v846, %v845
        %v865 = vpack.c.bf16 %v848, %v847
        %v866 = vpack.c.bf16 %v850, %v849
        %v883 = vunpack.c.l.b16 %v851
        %v884 = vunpack.c.h.b16 %v851
        %v885 = vunpack.c.l.b16 %v852
        %v886 = vunpack.c.h.b16 %v852
        %v887 = vunpack.c.l.b16 %v853
        %v888 = vunpack.c.h.b16 %v853
        %v889 = vunpack.c.l.b16 %v854
        %v890 = vunpack.c.h.b16 %v854
        %v891 = vunpack.c.l.b16 %v855
        %v892 = vunpack.c.h.b16 %v855
        %v893 = vunpack.c.l.b16 %v856
        %v894 = vunpack.c.h.b16 %v856
        %v895 = vunpack.c.l.b16 %v857
        %v896 = vunpack.c.h.b16 %v857
        %v897 = vunpack.c.l.b16 %v858
        %v898 = vunpack.c.h.b16 %v858
        %v899 = vunpack.c.l.b16 %v859
        %v900 = vunpack.c.h.b16 %v859
        %v901 = vunpack.c.l.b16 %v860
        %v902 = vunpack.c.h.b16 %v860
        %v903 = vunpack.c.l.b16 %v861
        %v904 = vunpack.c.h.b16 %v861
        %v905 = vunpack.c.l.b16 %v862
        %v906 = vunpack.c.h.b16 %v862
        %v907 = vunpack.c.l.b16 %v863
        %v908 = vunpack.c.h.b16 %v863
        %v909 = vunpack.c.l.b16 %v864
        %v910 = vunpack.c.h.b16 %v864
        %v911 = vunpack.c.l.b16 %v865
        %v912 = vunpack.c.h.b16 %v865
        %v913 = vunpack.c.l.b16 %v866
        %v914 = vunpack.c.h.b16 %v866
        %v915 = vpack.c.b16 %v883, %v883
        %v916 = vpack.c.b16 %v884, %v884
        %v917 = vpack.c.b16 %v885, %v885
        %v918 = vpack.c.b16 %v886, %v886
        %v919 = vpack.c.b16 %v887, %v887
        %v920 = vpack.c.b16 %v888, %v888
        %v921 = vpack.c.b16 %v889, %v889
        %v922 = vpack.c.b16 %v890, %v890
        %v923 = vpack.c.b16 %v891, %v891
        %v924 = vpack.c.b16 %v892, %v892
        %v925 = vpack.c.b16 %v893, %v893
        %v926 = vpack.c.b16 %v894, %v894
        %v927 = vpack.c.b16 %v895, %v895
        %v928 = vpack.c.b16 %v896, %v896
        %v929 = vpack.c.b16 %v897, %v897
        %v930 = vpack.c.b16 %v898, %v898
        %v931 = vpack.c.b16 %v899, %v899
        %v932 = vpack.c.b16 %v900, %v900
        %v933 = vpack.c.b16 %v901, %v901
        %v934 = vpack.c.b16 %v902, %v902
        %v935 = vpack.c.b16 %v903, %v903
        %v936 = vpack.c.b16 %v904, %v904
        %v937 = vpack.c.b16 %v905, %v905
        %v938 = vpack.c.b16 %v906, %v906
        %v939 = vpack.c.b16 %v907, %v907
        %v940 = vpack.c.b16 %v908, %v908
        %v941 = vpack.c.b16 %v909, %v909
        %v942 = vpack.c.b16 %v910, %v910
        %v943 = vpack.c.b16 %v911, %v911
        %v944 = vpack.c.b16 %v912, %v912
        %v945 = vpack.c.b16 %v913, %v913
        %v946 = vpack.c.b16 %v914, %v914
        %979 = vst [vmem:[%s257] sm:$0xf] %v915
        %980 = vst [vmem:[%s257 + $0x4] sm:$0xf] %v916
        %981 = vst [vmem:[%s257 + $0x8] sm:$0xf] %v917
        %982 = vst [vmem:[%s257 + $0xc] sm:$0xf] %v918
        %983 = vst [vmem:[%s257 + $0x10] sm:$0xf] %v919
        %984 = vst [vmem:[%s257 + $0x14] sm:$0xf] %v920
        %985 = vst [vmem:[%s257 + $0x18] sm:$0xf] %v921
        %986 = vst [vmem:[%s257 + $0x1c] sm:$0xf] %v922
        %987 = vst [vmem:[%s257 + $0x20] sm:$0xf] %v923
        %988 = vst [vmem:[%s257 + $0x24] sm:$0xf] %v924
        %989 = vst [vmem:[%s257 + $0x28] sm:$0xf] %v925
        %990 = vst [vmem:[%s257 + $0x2c] sm:$0xf] %v926
        %991 = vst [vmem:[%s257 + $0x30] sm:$0xf] %v927
        %992 = vst [vmem:[%s257 + $0x34] sm:$0xf] %v928
        %993 = vst [vmem:[%s257 + $0x38] sm:$0xf] %v929
        %994 = vst [vmem:[%s257 + $0x3c] sm:$0xf] %v930
        %995 = vst [vmem:[%s257 + $0x40] sm:$0xf] %v931
        %996 = vst [vmem:[%s257 + $0x44] sm:$0xf] %v932
        %997 = vst [vmem:[%s257 + $0x48] sm:$0xf] %v933
        %998 = vst [vmem:[%s257 + $0x4c] sm:$0xf] %v934
        %999 = vst [vmem:[%s257 + $0x50] sm:$0xf] %v935
        %1000 = vst [vmem:[%s257 + $0x54] sm:$0xf] %v936
        %1001 = vst [vmem:[%s257 + $0x58] sm:$0xf] %v937
        %1002 = vst [vmem:[%s257 + $0x5c] sm:$0xf] %v938
        %1003 = vst [vmem:[%s257 + $0x60] sm:$0xf] %v939
        %1004 = vst [vmem:[%s257 + $0x64] sm:$0xf] %v940
        %1005 = vst [vmem:[%s257 + $0x68] sm:$0xf] %v941
        %1006 = vst [vmem:[%s257 + $0x6c] sm:$0xf] %v942
        %1007 = vst [vmem:[%s257 + $0x70] sm:$0xf] %v943
        %1008 = vst [vmem:[%s257 + $0x74] sm:$0xf] %v944
        %1009 = vst [vmem:[%s257 + $0x78] sm:$0xf] %v945
        %1010 = vst [vmem:[%s257 + $0x7c] sm:$0xf] %v946
      $region40: #{bottleneck_forward.4} parent=31 // pred_fallthru
        _
      %s1011 = smul.u32 32, %s19
      %p1012 = scmp.lt.s32.totalorder %s1011, 63
      %s1013 = scalar_select %p1012, %s1011, 63
      %p1014 = scmp.lt.s32.totalorder %s20, 0
      %s1015 = scalar_select %p1014, %s20, 0
      %s1016 = sadd.s32 %s1015, %s1013
      %s1017 = smul.addr %s1016, 4
      %s1018 = scalar_lea.vmem %s3, %s1017
      // Predicated region
      $region41: #{bottleneck_forward.4} parent=31 // pred_check
        %p1019 = pneg %p135
      $region42: #{bottleneck_forward.4} parent=31 // pred_check_branch
        %1021 = sbr.rel (%p1019) target = $region44
      $region43: #{bottleneck_forward.4} parent=31 // pred_region
        %s1022 = smul.u32 32, %s19
      $region44: #{bottleneck_forward.4} parent=31 // pred_fallthru
        _
    $region32: #{bottleneck_forward.4} parent=5 // pred_fallthru
      _
    %p1023 = scmp.le.s32.totalorder 2, %s9
    // Predicated region
    $region45: #{bottleneck_forward.4} parent=5 // pred_check
      %p1024 = pneg %p1023
    $region46: #{bottleneck_forward.4} parent=5 // pred_check_branch
      %1026 = sbr.rel (%p1024) target = $region48
    $region47: #{bottleneck_forward.4} parent=5 // pred_region
      %s1027 = ssub.s32 %s9, 2
      // Predicated region
      $region49: #{bottleneck_forward.4} parent=47 // pred_check
        %p1028 = pneg %p141
      $region50: #{bottleneck_forward.4} parent=47 // pred_check_branch
        %1030 = sbr.rel (%p1028) target = $region52
      $region51: #{bottleneck_forward.4} parent=47 // pred_region
        %s1031 = smul.u32 32, %s22
        %p1032 = scmp.lt.s32.totalorder %s1031, 63
        %s1033 = scalar_select %p1032, %s1031, 63
        %p1034 = scmp.lt.s32.totalorder %s23, 0
        %s1035 = scalar_select %p1034, %s23, 0
        %s1036 = sadd.s32 %s1035, %s1033
        %s1037 = smul.addr %s1036, 4
        %s1038 = scalar_lea.vmem %s3, %s1037
      $region52: #{bottleneck_forward.4} parent=47 // pred_fallthru
        _
    $region48: #{bottleneck_forward.4} parent=5 // pred_fallthru
      _
  $region6: #{bottleneck_forward.4} parent=0 // loop_footer
    %s13 = sadd.s32 1, %s9
  $region7: #{bottleneck_forward.4} parent=0 // loop_footer_branch
    %8 = sbr.rel target = $region3
  $region8: #{bottleneck_forward.4} parent=0 // loop_exit
    _

// kernel: bottleneck_forward.7
$region0: #{bottleneck_forward.7}
  #allocation0 [shape = 'u32[]', space=smem, size = 0x4, offset = 0x4, fixed_abs, tag = 'smem constant byte address 0x4 - core index']
  #allocation1 [shape = 'u32[144,128]{1,0:T(1,128)}', space=vmem, size = 0x12000, scoped, tag = 'internal scratch']
  #allocation2 [shape = 'f32[256,128]{1,0:T(8,128)}', space=vmem, size = 0x20000, scoped, tag = 'scratch operand']
  %s0 = inlined_call_operand.vmem [shape: bf16[512,128], index: 0, kind: input, shape index: {}]
  %s1 = inlined_call_operand.vmem [shape: bf16[128,128], index: 1, kind: input, shape index: {}]
  %s2 = inlined_call_operand.vmem [shape: f32[1,128], index: 2, kind: input, shape index: {}]
  %s3 = inlined_call_operand.vmem [shape: bf16[512,128], index: 3, kind: input, shape index: {}]
  %s4 = inlined_call_operand.vmem [shape: f32[512,128], index: 4, kind: output, shape index: {0}]
  %s5 = inlined_call_operand.vmem [shape: bf16[512,128], index: 5, kind: output, shape index: {1}]
  %6 = xla_tuple %s4, %s5
  %s7 = sld [smem:[#allocation0]]
  $region65: #{bottleneck_forward.7} parent=0
    _
  %s9 = ssub.s32 1, %s7
  %s10 = scalar_select 0, %s9, %s7
  loop: start=0, step=1, limit=4
  $region2: #{bottleneck_forward.7} parent=0 // loop_pre_header
    _
  $region3: #{bottleneck_forward.7} parent=0 // loop_header
    %s12 = sphi 0, %s16
    %p13 = scmp.ge.s32.totalorder %s12, 4
    %s19 = sphi 0, %s38
    %s20 = sphi 0, %s34
    %s21 = sphi 0, %s30
    %s22 = sphi 0, %s19
    %s23 = sphi 0, %s20
    %s24 = sphi 0, %s21
    %s25 = sphi 0, %s22
    %s26 = sphi 0, %s23
    %s27 = sphi 0, %s24
    %s43 = sphi 0, %s45
    %s46 = sphi 0, %s43
    %s47 = sphi 0, %s46
    %s63 = sphi 0, %s47
    %s71 = sphi 0, %s73
    %s74 = sphi 0, %s71
    %s75 = sphi 0, %s74
    %s91 = sphi 0, %s75
    %s97 = sphi 0, %s99
    %s100 = sphi 0, %s97
    %s101 = sphi 0, %s100
    %s117 = sphi 0, %s101
    %s125 = sphi 0, %s127
    %s128 = sphi 0, %s125
    %s129 = sphi 0, %s128
    %s145 = sphi 0, %s129
    %s153 = sphi 0, %s155
    %s156 = sphi 0, %s153
    %s157 = sphi 0, %s156
    %s173 = sphi 0, %s157
    %s181 = sphi 0, %s183
    %s184 = sphi 0, %s181
    %s185 = sphi 0, %s184
    %s201 = sphi 0, %s185
  $region4: #{bottleneck_forward.7} parent=0 // loop_header_branch
    %15 = sbr.rel (%p13) target = $region8
  $region5: #{bottleneck_forward.7} parent=0 // loop_body
    %s17 = ssub.s32 %s12, 1
    %s18 = ssub.s32 %s12, 2
    %s28 = sadd.s32 1, %s21
    %p29 = scmp.ge.s32.totalorder %s28, 1
    %s30 = scalar_select %p29, 0, %s28
    %s31 = sadd.s32 1, %s20
    %s32 = scalar_select %p29, %s31, %s20
    %p33 = scmp.ge.s32.totalorder %s32, 1
    %s34 = scalar_select %p33, 0, %s32
    %s35 = sadd.s32 1, %s19
    %s36 = scalar_select %p33, %s35, %s19
    %p37 = scmp.ge.s32.totalorder %s36, 2
    %s38 = scalar_select %p37, 0, %s36
    %s39 = ssub.s32 %s19, %s38
    %s40 = ssub.s32 %s21, %s30
    %s41 = sor.u32 %s39, %s40
    %p42 = scmp.eq.s32.totalorder %s41, 0
    %s44 = sadd.s32 %s43, 1
    %s45 = scalar_select %p42, %s43, %s44
    %p48 = pneg %p42
    %p49 = scmp.eq.s32.totalorder %s12, 1
    %p50 = por %p48, %p49
    %p51 = scmp.ne.s32.totalorder %s43, %s46
    %p52 = scmp.eq.s32.totalorder %s12, 0
    %p53 = por %p51, %p52
    %p54 = scmp.ne.s32.totalorder %s43, %s46
    %p55 = scmp.eq.s32.totalorder %s17, 1
    %p56 = por %p54, %p55
    %p57 = scmp.ne.s32.totalorder %s46, %s47
    %p58 = scmp.eq.s32.totalorder %s17, 0
    %p59 = por %p57, %p58
    %p60 = scmp.ne.s32.totalorder %s46, %s47
    %p61 = scmp.eq.s32.totalorder %s18, 1
    %p62 = por %p60, %p61
    %p64 = scmp.ne.s32.totalorder %s47, %s63
    %p65 = scmp.eq.s32.totalorder %s18, 0
    %p66 = por %p64, %p65
    %s67 = ssub.s32 %s21, %s30
    %s68 = ssub.s32 %s20, %s34
    %s69 = sor.u32 %s67, %s68
    %p70 = scmp.eq.s32.totalorder %s69, 0
    %s72 = sadd.s32 %s71, 1
    %s73 = scalar_select %p70, %s71, %s72
    %p76 = pneg %p70
    %p77 = scmp.eq.s32.totalorder %s12, 1
    %p78 = por %p76, %p77
    %p79 = scmp.ne.s32.totalorder %s71, %s74
    %p80 = scmp.eq.s32.totalorder %s12, 0
    %p81 = por %p79, %p80
    %p82 = scmp.ne.s32.totalorder %s71, %s74
    %p83 = scmp.eq.s32.totalorder %s17, 1
    %p84 = por %p82, %p83
    %p85 = scmp.ne.s32.totalorder %s74, %s75
    %p86 = scmp.eq.s32.totalorder %s17, 0
    %p87 = por %p85, %p86
    %p88 = scmp.ne.s32.totalorder %s74, %s75
    %p89 = scmp.eq.s32.totalorder %s18, 1
    %p90 = por %p88, %p89
    %p92 = scmp.ne.s32.totalorder %s75, %s91
    %p93 = scmp.eq.s32.totalorder %s18, 0
    %p94 = por %p92, %p93
    %s95 = ssub.s32 %s20, %s34
    %p96 = scmp.eq.s32.totalorder %s95, 0
    %s98 = sadd.s32 %s97, 1
    %s99 = scalar_select %p96, %s97, %s98
    %p102 = pneg %p96
    %p103 = scmp.eq.s32.totalorder %s12, 1
    %p104 = por %p102, %p103
    %p105 = scmp.ne.s32.totalorder %s97, %s100
    %p106 = scmp.eq.s32.totalorder %s12, 0
    %p107 = por %p105, %p106
    %p108 = scmp.ne.s32.totalorder %s97, %s100
    %p109 = scmp.eq.s32.totalorder %s17, 1
    %p110 = por %p108, %p109
    %p111 = scmp.ne.s32.totalorder %s100, %s101
    %p112 = scmp.eq.s32.totalorder %s17, 0
    %p113 = por %p111, %p112
    %p114 = scmp.ne.s32.totalorder %s100, %s101
    %p115 = scmp.eq.s32.totalorder %s18, 1
    %p116 = por %p114, %p115
    %p118 = scmp.ne.s32.totalorder %s101, %s117
    %p119 = scmp.eq.s32.totalorder %s18, 0
    %p120 = por %p118, %p119
    %s121 = ssub.s32 %s19, %s38
    %s122 = ssub.s32 %s20, %s34
    %s123 = sor.u32 %s121, %s122
    %p124 = scmp.eq.s32.totalorder %s123, 0
    %s126 = sadd.s32 %s125, 1
    %s127 = scalar_select %p124, %s125, %s126
    %p130 = pneg %p124
    %p131 = scmp.eq.s32.totalorder %s12, 1
    %p132 = por %p130, %p131
    %p133 = scmp.ne.s32.totalorder %s125, %s128
    %p134 = scmp.eq.s32.totalorder %s12, 0
    %p135 = por %p133, %p134
    %p136 = scmp.ne.s32.totalorder %s125, %s128
    %p137 = scmp.eq.s32.totalorder %s17, 1
    %p138 = por %p136, %p137
    %p139 = scmp.ne.s32.totalorder %s128, %s129
    %p140 = scmp.eq.s32.totalorder %s17, 0
    %p141 = por %p139, %p140
    %p142 = scmp.ne.s32.totalorder %s128, %s129
    %p143 = scmp.eq.s32.totalorder %s18, 1
    %p144 = por %p142, %p143
    %p146 = scmp.ne.s32.totalorder %s129, %s145
    %p147 = scmp.eq.s32.totalorder %s18, 0
    %p148 = por %p146, %p147
    %s149 = ssub.s32 %s19, %s38
    %s150 = ssub.s32 %s20, %s34
    %s151 = sor.u32 %s149, %s150
    %p152 = scmp.eq.s32.totalorder %s151, 0
    %s154 = sadd.s32 %s153, 1
    %s155 = scalar_select %p152, %s153, %s154
    %p158 = pneg %p152
    %p159 = scmp.eq.s32.totalorder %s12, 1
    %p160 = por %p158, %p159
    %p161 = scmp.ne.s32.totalorder %s153, %s156
    %p162 = scmp.eq.s32.totalorder %s12, 0
    %p163 = por %p161, %p162
    %p164 = scmp.ne.s32.totalorder %s153, %s156
    %p165 = scmp.eq.s32.totalorder %s17, 1
    %p166 = por %p164, %p165
    %p167 = scmp.ne.s32.totalorder %s156, %s157
    %p168 = scmp.eq.s32.totalorder %s17, 0
    %p169 = por %p167, %p168
    %p170 = scmp.ne.s32.totalorder %s156, %s157
    %p171 = scmp.eq.s32.totalorder %s18, 1
    %p172 = por %p170, %p171
    %p174 = scmp.ne.s32.totalorder %s157, %s173
    %p175 = scmp.eq.s32.totalorder %s18, 0
    %p176 = por %p174, %p175
    %s177 = ssub.s32 %s19, %s38
    %s178 = ssub.s32 %s20, %s34
    %s179 = sor.u32 %s177, %s178
    %p180 = scmp.eq.s32.totalorder %s179, 0
    %s182 = sadd.s32 %s181, 1
    %s183 = scalar_select %p180, %s181, %s182
    %p186 = pneg %p180
    %p187 = scmp.eq.s32.totalorder %s12, 1
    %p188 = por %p186, %p187
    %p189 = scmp.ne.s32.totalorder %s181, %s184
    %p190 = scmp.eq.s32.totalorder %s12, 0
    %p191 = por %p189, %p190
    %p192 = scmp.ne.s32.totalorder %s181, %s184
    %p193 = scmp.eq.s32.totalorder %s17, 1
    %p194 = por %p192, %p193
    %p195 = scmp.ne.s32.totalorder %s184, %s185
    %p196 = scmp.eq.s32.totalorder %s17, 0
    %p197 = por %p195, %p196
    %p198 = scmp.ne.s32.totalorder %s184, %s185
    %p199 = scmp.eq.s32.totalorder %s18, 1
    %p200 = por %p198, %p199
    %p202 = scmp.ne.s32.totalorder %s185, %s201
    %p203 = scmp.eq.s32.totalorder %s18, 0
    %p204 = por %p202, %p203
    %p205 = scmp.le.s32.totalorder 1, %s12
    %p206 = scmp.lt.s32.totalorder %s12, 3
    %p207 = pnand %p205, %p206
    %p208 = pneg %p207
    // Predicated region
    $region9: #{bottleneck_forward.7} parent=5 // pred_check
      _
    $region10: #{bottleneck_forward.7} parent=5 // pred_check_branch
      %210 = sbr.rel (%p207) target = $region12
    $region11: #{bottleneck_forward.7} parent=5 // pred_region
      %s211 = ssub.s32 %s12, 1
      // Predicated region
      $region13: #{bottleneck_forward.7} parent=11 // pred_check
        %p212 = pneg %p87
      $region14: #{bottleneck_forward.7} parent=11 // pred_check_branch
        %214 = sbr.rel (%p212) target = $region16
      $region15: #{bottleneck_forward.7} parent=11 // pred_region
        %s215 = smul.u32 16, %s24
        %p216 = scmp.lt.s32.totalorder %s215, 15
        %s217 = scalar_select %p216, %s215, 15
        %p218 = scmp.lt.s32.totalorder %s23, 0
        %s219 = scalar_select %p218, %s23, 0
        %s220 = sadd.s32 %s219, %s217
        %s221 = smul.addr %s220, 4
        %s222 = scalar_lea.vmem %s1, %s221
        %s223 = smul.u32 16, %s24
      $region16: #{bottleneck_forward.7} parent=11 // pred_fallthru
        _
      // Predicated region
      $region17: #{bottleneck_forward.7} parent=11 // pred_check
        %p224 = pneg %p113
      $region18: #{bottleneck_forward.7} parent=11 // pred_check_branch
        %226 = sbr.rel (%p224) target = $region20
      $region19: #{bottleneck_forward.7} parent=11 // pred_region
        %p227 = scmp.lt.s32.totalorder %s23, 0
        %s228 = scalar_select %p227, %s23, 0
        %s229 = scalar_lea.vmem %s2, %s228
      $region20: #{bottleneck_forward.7} parent=11 // pred_fallthru
        _
    $region12: #{bottleneck_forward.7} parent=5 // pred_fallthru
      _
    %p230 = scmp.lt.s32.totalorder %s12, 2
    // Predicated region
    $region21: #{bottleneck_forward.7} parent=5 // pred_check
      %p231 = pneg %p230
    $region22: #{bottleneck_forward.7} parent=5 // pred_check_branch
      %233 = sbr.rel (%p231) target = $region24
    $region23: #{bottleneck_forward.7} parent=5 // pred_region
      // Predicated region
      $region25: #{bottleneck_forward.7} parent=23 // pred_check
        %p234 = pneg %p53
      $region26: #{bottleneck_forward.7} parent=23 // pred_check_branch
        %236 = sbr.rel (%p234) target = $region28
      $region27: #{bottleneck_forward.7} parent=23 // pred_region
        %s237 = smul.u32 32, %s19
        %p238 = scmp.lt.s32.totalorder %s237, 63
        %s239 = scalar_select %p238, %s237, 63
        %p240 = scmp.lt.s32.totalorder %s21, 0
        %s241 = scalar_select %p240, %s21, 0
        %s242 = sadd.s32 %s241, %s239
        %s243 = smul.addr %s242, 4
        %s244 = scalar_lea.vmem %s0, %s243
        %s245 = smul.u32 32, %s19
      $region28: #{bottleneck_forward.7} parent=23 // pred_fallthru
        _
      // Predicated region
      $region29: #{bottleneck_forward.7} parent=23 // pred_check
        %p246 = pneg %p135
      $region30: #{bottleneck_forward.7} parent=23 // pred_check_branch
        %248 = sbr.rel (%p246) target = $region32
      $region31: #{bottleneck_forward.7} parent=23 // pred_region
        %s249 = smul.u32 32, %s19
        %p250 = scmp.lt.s32.totalorder %s249, 63
        %s251 = scalar_select %p250, %s249, 63
        %p252 = scmp.lt.s32.totalorder %s20, 0
        %s253 = scalar_select %p252, %s20, 0
        %s254 = sadd.s32 %s253, %s251
        %s255 = smul.addr %s254, 4
        %s256 = scalar_lea.vmem %s3, %s255
        %s257 = smul.u32 32, %s19
      $region32: #{bottleneck_forward.7} parent=23 // pred_fallthru
        _
    $region24: #{bottleneck_forward.7} parent=5 // pred_fallthru
      _
    %p258 = scmp.le.s32.totalorder 1, %s12
    %p259 = scmp.lt.s32.totalorder %s12, 3
    %p260 = pnand %p258, %p259
    %p261 = pneg %p260
    // Predicated region
    $region33: #{bottleneck_forward.7} parent=5 // pred_check
      _
    $region34: #{bottleneck_forward.7} parent=5 // pred_check_branch
      %263 = sbr.rel (%p260) target = $region36
    $region35: #{bottleneck_forward.7} parent=5 // pred_region
      %s264 = ssub.s32 %s12, 1
      %s265 = smul.u32 32, %s22
      %p266 = scmp.lt.s32.totalorder %s265, 63
      %s267 = scalar_select %p266, %s265, 63
      %p268 = scmp.lt.s32.totalorder %s24, 0
      %s269 = scalar_select %p268, %s24, 0
      %s270 = sadd.s32 %s269, %s267
      %s271 = smul.addr %s270, 4
      %s272 = scalar_lea.vmem %s0, %s271
      %p273 = pneg %p59
      %p274 = pneg %p56
      %s275 = smul.u32 16, %s24
      %p276 = scmp.lt.s32.totalorder %s275, 15
      %s277 = scalar_select %p276, %s275, 15
      %p278 = scmp.lt.s32.totalorder %s23, 0
      %s279 = scalar_select %p278, %s23, 0
      %s280 = sadd.s32 %s279, %s277
      %s281 = smul.addr %s280, 4
      %s282 = scalar_lea.vmem %s1, %s281
      %p283 = pneg %p87
      %p284 = pneg %p84
      %p285 = scmp.lt.s32.totalorder %s23, 0
      %s286 = scalar_select %p285, %s23, 0
      %s287 = scalar_lea.vmem %s2, %s286
      %p288 = pneg %p113
      %p289 = pneg %p110
      %s290 = smul.u32 32, %s22
      %p291 = scmp.lt.s32.totalorder %s290, 63
      %s292 = scalar_select %p291, %s290, 63
      %p293 = scmp.lt.s32.totalorder %s23, 0
      %s294 = scalar_select %p293, %s23, 0
      %s295 = sadd.s32 %s294, %s292
      %s296 = smul.addr %s295, 4
      %s297 = scalar_lea.vmem %s3, %s296
      %p298 = pneg %p141
      %p299 = pneg %p138
      %p300 = pneg %p169
      %p301 = pneg %p166
      %s302 = smul.u32 32, %s22
      %p303 = scmp.lt.s32.totalorder %s302, 63
      %s304 = scalar_select %p303, %s302, 63
      %p305 = scmp.lt.s32.totalorder %s23, 0
      %s306 = scalar_select %p305, %s23, 0
      %s307 = sadd.s32 %s306, %s304
      %s308 = smul.addr %s307, 8
      %s309 = scalar_lea.vmem %s4, %s308
      %p310 = pneg %p197
      %p311 = pneg %p194
      %s312 = smul.u32 32, %s22
      %p313 = scmp.lt.s32.totalorder %s312, 63
      %s314 = scalar_select %p313, %s312, 63
      %p315 = scmp.lt.s32.totalorder %s23, 0
      %s316 = scalar_select %p315, %s23, 0
      %s317 = sadd.s32 %s316, %s314
      %s318 = smul.addr %s317, 4
      %s319 = scalar_lea.vmem %s5, %s318
      %s320 = smul.u32 32, %s22
      %p321 = scmp.lt.s32.totalorder %s320, 63
      %s322 = scalar_select %p321, %s320, 63
      %p323 = scmp.lt.s32.totalorder %s24, 0
      %s324 = scalar_select %p323, %s24, 0
      %s325 = sadd.s32 %s324, %s322
      %s326 = smul.addr %s325, 4
      %s327 = scalar_lea.vmem %s0, %s326
      %s328 = smul.u32 32, %s22
      %s329 = smul.u32 16, %s24
      %p330 = scmp.lt.s32.totalorder %s329, 15
      %s331 = scalar_select %p330, %s329, 15
      %p332 = scmp.lt.s32.totalorder %s23, 0
      %s333 = scalar_select %p332, %s23, 0
      %s334 = sadd.s32 %s333, %s331
      %s335 = smul.addr %s334, 4
      %s336 = scalar_lea.vmem %s1, %s335
      %s337 = smul.u32 16, %s24
      %p338 = scmp.lt.s32.totalorder %s23, 0
      %s339 = scalar_select %p338, %s23, 0
      %s340 = scalar_lea.vmem %s2, %s339
      %s341 = smul.u32 32, %s22
      %p342 = scmp.lt.s32.totalorder %s341, 63
      %s343 = scalar_select %p342, %s341, 63
      %p344 = scmp.lt.s32.totalorder %s23, 0
      %s345 = scalar_select %p344, %s23, 0
      %s346 = sadd.s32 %s345, %s343
      %s347 = smul.addr %s346, 4
      %s348 = scalar_lea.vmem %s3, %s347
      %s349 = smul.u32 32, %s22
      %s350 = smul.u32 32, %s22
      %p351 = scmp.lt.s32.totalorder %s350, 63
      %s352 = scalar_select %p351, %s350, 63
      %p353 = scmp.lt.s32.totalorder %s23, 0
      %s354 = scalar_select %p353, %s23, 0
      %s355 = sadd.s32 %s354, %s352
      %s356 = smul.addr %s355, 8
      %s357 = scalar_lea.vmem %s4, %s356
      %s358 = smul.u32 32, %s22
      %s359 = smul.u32 32, %s22
      %p360 = scmp.lt.s32.totalorder %s359, 63
      %s361 = scalar_select %p360, %s359, 63
      %p362 = scmp.lt.s32.totalorder %s23, 0
      %s363 = scalar_select %p362, %s23, 0
      %s364 = sadd.s32 %s363, %s361
      %s365 = smul.addr %s364, 4
      %s366 = scalar_lea.vmem %s5, %s365
      %s367 = smul.u32 32, %s22
      %p369 = scmp.eq.s32.totalorder %s24, 0
      // Predicated region
      $region37: #{bottleneck_forward.7} parent=35 // pred_check
        %p370 = pneg %p369
      $region38: #{bottleneck_forward.7} parent=35 // pred_check_branch
        %372 = sbr.rel (%p370) target = $region40
      $region39: #{bottleneck_forward.7} parent=35 // pred_region
        %373 = vst [vmem:[#allocation2] sm:$0xff] 0.0
        %374 = vst [vmem:[#allocation2 + $0x8] sm:$0xff] 0.0
        %375 = vst [vmem:[#allocation2 + $0x10] sm:$0xff] 0.0
        %376 = vst [vmem:[#allocation2 + $0x18] sm:$0xff] 0.0
        %377 = vst [vmem:[#allocation2 + $0x20] sm:$0xff] 0.0
        %378 = vst [vmem:[#allocation2 + $0x28] sm:$0xff] 0.0
        %379 = vst [vmem:[#allocation2 + $0x30] sm:$0xff] 0.0
        %380 = vst [vmem:[#allocation2 + $0x38] sm:$0xff] 0.0
        %381 = vst [vmem:[#allocation2 + $0x40] sm:$0xff] 0.0
        %382 = vst [vmem:[#allocation2 + $0x48] sm:$0xff] 0.0
        %383 = vst [vmem:[#allocation2 + $0x50] sm:$0xff] 0.0
        %384 = vst [vmem:[#allocation2 + $0x58] sm:$0xff] 0.0
        %385 = vst [vmem:[#allocation2 + $0x60] sm:$0xff] 0.0
        %386 = vst [vmem:[#allocation2 + $0x68] sm:$0xff] 0.0
        %387 = vst [vmem:[#allocation2 + $0x70] sm:$0xff] 0.0
        %388 = vst [vmem:[#allocation2 + $0x78] sm:$0xff] 0.0
        %389 = vst [vmem:[#allocation2 + $0x80] sm:$0xff] 0.0
        %390 = vst [vmem:[#allocation2 + $0x88] sm:$0xff] 0.0
        %391 = vst [vmem:[#allocation2 + $0x90] sm:$0xff] 0.0
        %392 = vst [vmem:[#allocation2 + $0x98] sm:$0xff] 0.0
        %393 = vst [vmem:[#allocation2 + $0xa0] sm:$0xff] 0.0
        %394 = vst [vmem:[#allocation2 + $0xa8] sm:$0xff] 0.0
        %395 = vst [vmem:[#allocation2 + $0xb0] sm:$0xff] 0.0
        %396 = vst [vmem:[#allocation2 + $0xb8] sm:$0xff] 0.0
        %397 = vst [vmem:[#allocation2 + $0xc0] sm:$0xff] 0.0
        %398 = vst [vmem:[#allocation2 + $0xc8] sm:$0xff] 0.0
        %399 = vst [vmem:[#allocation2 + $0xd0] sm:$0xff] 0.0
        %400 = vst [vmem:[#allocation2 + $0xd8] sm:$0xff] 0.0
        %401 = vst [vmem:[#allocation2 + $0xe0] sm:$0xff] 0.0
        %402 = vst [vmem:[#allocation2 + $0xe8] sm:$0xff] 0.0
        %403 = vst [vmem:[#allocation2 + $0xf0] sm:$0xff] 0.0
        %404 = vst [vmem:[#allocation2 + $0xf8] sm:$0xff] 0.0
      $region40: #{bottleneck_forward.7} parent=35 // pred_fallthru
        _
      %v405 = vld [vmem:[#allocation2] sm:$0xff]
      %v406 = vld [vmem:[#allocation2 + $0x8] sm:$0xff]
      %v407 = vld [vmem:[#allocation2 + $0x10] sm:$0xff]
      %v408 = vld [vmem:[#allocation2 + $0x18] sm:$0xff]
      %v409 = vld [vmem:[#allocation2 + $0x20] sm:$0xff]
      %v410 = vld [vmem:[#allocation2 + $0x28] sm:$0xff]
      %v411 = vld [vmem:[#allocation2 + $0x30] sm:$0xff]
      %v412 = vld [vmem:[#allocation2 + $0x38] sm:$0xff]
      %v413 = vld [vmem:[#allocation2 + $0x40] sm:$0xff]
      %v414 = vld [vmem:[#allocation2 + $0x48] sm:$0xff]
      %v415 = vld [vmem:[#allocation2 + $0x50] sm:$0xff]
      %v416 = vld [vmem:[#allocation2 + $0x58] sm:$0xff]
      %v417 = vld [vmem:[#allocation2 + $0x60] sm:$0xff]
      %v418 = vld [vmem:[#allocation2 + $0x68] sm:$0xff]
      %v419 = vld [vmem:[#allocation2 + $0x70] sm:$0xff]
      %v420 = vld [vmem:[#allocation2 + $0x78] sm:$0xff]
      %v421 = vld [vmem:[#allocation2 + $0x80] sm:$0xff]
      %v422 = vld [vmem:[#allocation2 + $0x88] sm:$0xff]
      %v423 = vld [vmem:[#allocation2 + $0x90] sm:$0xff]
      %v424 = vld [vmem:[#allocation2 + $0x98] sm:$0xff]
      %v425 = vld [vmem:[#allocation2 + $0xa0] sm:$0xff]
      %v426 = vld [vmem:[#allocation2 + $0xa8] sm:$0xff]
      %v427 = vld [vmem:[#allocation2 + $0xb0] sm:$0xff]
      %v428 = vld [vmem:[#allocation2 + $0xb8] sm:$0xff]
      %v429 = vld [vmem:[#allocation2 + $0xc0] sm:$0xff]
      %v430 = vld [vmem:[#allocation2 + $0xc8] sm:$0xff]
      %v431 = vld [vmem:[#allocation2 + $0xd0] sm:$0xff]
      %v432 = vld [vmem:[#allocation2 + $0xd8] sm:$0xff]
      %v433 = vld [vmem:[#allocation2 + $0xe0] sm:$0xff]
      %v434 = vld [vmem:[#allocation2 + $0xe8] sm:$0xff]
      %v435 = vld [vmem:[#allocation2 + $0xf0] sm:$0xff]
      %v436 = vld [vmem:[#allocation2 + $0xf8] sm:$0xff]
      %v437 = vld [vmem:[%s327] sm:$0xf]
      %v438 = vld [vmem:[%s327 + $0x4] sm:$0xf]
      %v439 = vld [vmem:[%s327 + $0x8] sm:$0xf]
      %v440 = vld [vmem:[%s327 + $0xc] sm:$0xf]
      %v441 = vld [vmem:[%s327 + $0x10] sm:$0xf]
      %v442 = vld [vmem:[%s327 + $0x14] sm:$0xf]
      %v443 = vld [vmem:[%s327 + $0x18] sm:$0xf]
      %v444 = vld [vmem:[%s327 + $0x1c] sm:$0xf]
      %v445 = vld [vmem:[%s327 + $0x20] sm:$0xf]
      %v446 = vld [vmem:[%s327 + $0x24] sm:$0xf]
      %v447 = vld [vmem:[%s327 + $0x28] sm:$0xf]
      %v448 = vld [vmem:[%s327 + $0x2c] sm:$0xf]
      %v449 = vld [vmem:[%s327 + $0x30] sm:$0xf]
      %v450 = vld [vmem:[%s327 + $0x34] sm:$0xf]
      %v451 = vld [vmem:[%s327 + $0x38] sm:$0xf]
      %v452 = vld [vmem:[%s327 + $0x3c] sm:$0xf]
      %v453 = vld [vmem:[%s327 + $0x40] sm:$0xf]
      %v454 = vld [vmem:[%s327 + $0x44] sm:$0xf]
      %v455 = vld [vmem:[%s327 + $0x48] sm:$0xf]
      %v456 = vld [vmem:[%s327 + $0x4c] sm:$0xf]
      %v457 = vld [vmem:[%s327 + $0x50] sm:$0xf]
      %v458 = vld [vmem:[%s327 + $0x54] sm:$0xf]
      %v459 = vld [vmem:[%s327 + $0x58] sm:$0xf]
      %v460 = vld [vmem:[%s327 + $0x5c] sm:$0xf]
      %v461 = vld [vmem:[%s327 + $0x60] sm:$0xf]
      %v462 = vld [vmem:[%s327 + $0x64] sm:$0xf]
      %v463 = vld [vmem:[%s327 + $0x68] sm:$0xf]
      %v464 = vld [vmem:[%s327 + $0x6c] sm:$0xf]
      %v465 = vld [vmem:[%s327 + $0x70] sm:$0xf]
      %v466 = vld [vmem:[%s327 + $0x74] sm:$0xf]
      %v467 = vld [vmem:[%s327 + $0x78] sm:$0xf]
      %v468 = vld [vmem:[%s327 + $0x7c] sm:$0xf]
      %v469 = vld [vmem:[%s336] sm:$0xf]
      %v470 = vld [vmem:[%s336 + $0x4] sm:$0xf]
      %v471 = vld [vmem:[%s336 + $0x8] sm:$0xf]
      %v472 = vld [vmem:[%s336 + $0xc] sm:$0xf]
      %v473 = vld [vmem:[%s336 + $0x10] sm:$0xf]
      %v474 = vld [vmem:[%s336 + $0x14] sm:$0xf]
      %v475 = vld [vmem:[%s336 + $0x18] sm:$0xf]
      %v476 = vld [vmem:[%s336 + $0x1c] sm:$0xf]
      %v477 = vld [vmem:[%s336 + $0x20] sm:$0xf]
      %v478 = vld [vmem:[%s336 + $0x24] sm:$0xf]
      %v479 = vld [vmem:[%s336 + $0x28] sm:$0xf]
      %v480 = vld [vmem:[%s336 + $0x2c] sm:$0xf]
      %v481 = vld [vmem:[%s336 + $0x30] sm:$0xf]
      %v482 = vld [vmem:[%s336 + $0x34] sm:$0xf]
      %v483 = vld [vmem:[%s336 + $0x38] sm:$0xf]
      %v484 = vld [vmem:[%s336 + $0x3c] sm:$0xf]
      %v517 = vunpack.c.l.b16 %v437
      %v518 = vunpack.c.l.b16 %v438
      %v519 = vunpack.c.l.b16 %v439
      %v520 = vunpack.c.l.b16 %v440
      %v521 = vunpack.c.l.b16 %v441
      %v522 = vunpack.c.l.b16 %v442
      %v523 = vunpack.c.l.b16 %v443
      %v524 = vunpack.c.l.b16 %v444
      %v525 = vunpack.c.l.b16 %v445
      %v526 = vunpack.c.l.b16 %v446
      %v527 = vunpack.c.l.b16 %v447
      %v528 = vunpack.c.l.b16 %v448
      %v529 = vunpack.c.l.b16 %v449
      %v530 = vunpack.c.l.b16 %v450
      %v531 = vunpack.c.l.b16 %v451
      %v532 = vunpack.c.l.b16 %v452
      %v533 = vunpack.c.l.b16 %v453
      %v534 = vunpack.c.l.b16 %v454
      %v535 = vunpack.c.l.b16 %v455
      %v536 = vunpack.c.l.b16 %v456
      %v537 = vunpack.c.l.b16 %v457
      %v538 = vunpack.c.l.b16 %v458
      %v539 = vunpack.c.l.b16 %v459
      %v540 = vunpack.c.l.b16 %v460
      %v541 = vunpack.c.l.b16 %v461
      %v542 = vunpack.c.l.b16 %v462
      %v543 = vunpack.c.l.b16 %v463
      %v544 = vunpack.c.l.b16 %v464
      %v545 = vunpack.c.l.b16 %v465
      %v546 = vunpack.c.l.b16 %v466
      %v547 = vunpack.c.l.b16 %v467
      %v548 = vunpack.c.l.b16 %v468
      %v549 = vpack.c.b16 %v518, %v517
      %v550 = vpack.c.b16 %v520, %v519
      %v551 = vpack.c.b16 %v522, %v521
      %v552 = vpack.c.b16 %v524, %v523
      %v553 = vpack.c.b16 %v526, %v525
      %v554 = vpack.c.b16 %v528, %v527
      %v555 = vpack.c.b16 %v530, %v529
      %v556 = vpack.c.b16 %v532, %v531
      %v557 = vpack.c.b16 %v534, %v533
      %v558 = vpack.c.b16 %v536, %v535
      %v559 = vpack.c.b16 %v538, %v537
      %v560 = vpack.c.b16 %v540, %v539
      %v561 = vpack.c.b16 %v542, %v541
      %v562 = vpack.c.b16 %v544, %v543
      %v563 = vpack.c.b16 %v546, %v545
      %v564 = vpack.c.b16 %v548, %v547
      %v597 = vunpack.c.l.b16 %v469
      %v598 = vunpack.c.l.b16 %v470
      %v599 = vunpack.c.l.b16 %v471
      %v600 = vunpack.c.l.b16 %v472
      %v601 = vunpack.c.l.b16 %v473
      %v602 = vunpack.c.l.b16 %v474
      %v603 = vunpack.c.l.b16 %v475
      %v604 = vunpack.c.l.b16 %v476
      %v605 = vunpack.c.l.b16 %v477
      %v606 = vunpack.c.l.b16 %v478
      %v607 = vunpack.c.l.b16 %v479
      %v608 = vunpack.c.l.b16 %v480
      %v609 = vunpack.c.l.b16 %v481
      %v610 = vunpack.c.l.b16 %v482
      %v611 = vunpack.c.l.b16 %v483
      %v612 = vunpack.c.l.b16 %v484
      %v613 = vpack.c.b16 %v598, %v597
      %v614 = vpack.c.b16 %v600, %v599
      %v615 = vpack.c.b16 %v602, %v601
      %v616 = vpack.c.b16 %v604, %v603
      %v617 = vpack.c.b16 %v606, %v605
      %v618 = vpack.c.b16 %v608, %v607
      %v619 = vpack.c.b16 %v610, %v609
      %v620 = vpack.c.b16 %v612, %v611
      %629 = vmatprep.subr.bf16.mxu0 0
      %630 = vmatpush1.bf16.msra.mxu0 %v613
      %631 = vmatprep.subr.bf16.mxu0 0
      %632 = vmatpush1.bf16.msra.mxu0 %v614
      %633 = vmatprep.subr.bf16.mxu0 0
      %634 = vmatpush1.bf16.msra.mxu0 %v615
      %635 = vmatprep.subr.bf16.mxu0 0
      %636 = vmatpush1.bf16.msra.mxu0 %v616
      %637 = vmatprep.subr.bf16.mxu0 0
      %638 = vmatpush1.bf16.msra.mxu0 %v617
      %639 = vmatprep.subr.bf16.mxu0 0
      %640 = vmatpush1.bf16.msra.mxu0 %v618
      %641 = vmatprep.subr.bf16.mxu0 0
      %642 = vmatpush1.bf16.msra.mxu0 %v619
      %643 = vmatprep.subr.bf16.mxu0 0
      %644 = vmatpush1.bf16.msra.mxu0 %v620
      %645 = vmatprep.subr.bf16.mxu0 0
      %646 = vmatpush1.bf16.msra.mxu0 0
      %647 = vmatprep.subr.bf16.mxu0 0
      %648 = vmatpush1.bf16.msra.mxu0 0
      %649 = vmatprep.subr.bf16.mxu0 0
      %650 = vmatpush1.bf16.msra.mxu0 0
      %651 = vmatprep.subr.bf16.mxu0 0
      %652 = vmatpush1.bf16.msra.mxu0 0
      %653 = vmatprep.subr.bf16.mxu0 0
      %654 = vmatpush1.bf16.msra.mxu0 0
      %655 = vmatprep.subr.bf16.mxu0 0
      %656 = vmatpush1.bf16.msra.mxu0 0
      %657 = vmatprep.subr.bf16.mxu0 0
      %658 = vmatpush1.bf16.msra.mxu0 0
      %659 = vmatprep.subr.bf16.mxu0 0
      %660 = vmatpush1.bf16.msra.mxu0 0
      %661 = vmatprep.mubr.bf16.mxu0 0
      %662 = vmatmul.mubr.bf16.gmra.mrb[0].mxu0 %v549
      %v663 = vpop.f32.mrb[0].mxu0
      %v664 = vadd.f32 0.0, %v663
      %v665 = vpop.f32.mrb[0].mxu0
      %v666 = vpop.f32.mrb[0].mxu0
      %v667 = vadd.f32 0.0, %v666
      %v668 = vpop.f32.mrb[0].mxu0
      %669 = vmatprep.mubr.bf16.mxu0 0
      %670 = vmatmul.mubr.bf16.gmra.mrb[0].mxu0 %v550
      %v671 = vpop.f32.mrb[0].mxu0
      %v672 = vadd.f32 0.0, %v671
      %v673 = vpop.f32.mrb[0].mxu0
      %v674 = vpop.f32.mrb[0].mxu0
      %v675 = vadd.f32 0.0, %v674
      %v676 = vpop.f32.mrb[0].mxu0
      %677 = vmatprep.mubr.bf16.mxu0 0
      %678 = vmatmul.mubr.bf16.gmra.mrb[0].mxu0 %v551
      %v679 = vpop.f32.mrb[0].mxu0
      %v680 = vadd.f32 0.0, %v679
      %v681 = vpop.f32.mrb[0].mxu0
      %v682 = vpop.f32.mrb[0].mxu0
      %v683 = vadd.f32 0.0, %v682
      %v684 = vpop.f32.mrb[0].mxu0
      %685 = vmatprep.mubr.bf16.mxu0 0
      %686 = vmatmul.mubr.bf16.gmra.mrb[0].mxu0 %v552
      %v687 = vpop.f32.mrb[0].mxu0
      %v688 = vadd.f32 0.0, %v687
      %v689 = vpop.f32.mrb[0].mxu0
      %v690 = vpop.f32.mrb[0].mxu0
      %v691 = vadd.f32 0.0, %v690
      %v692 = vpop.f32.mrb[0].mxu0
      %693 = vmatprep.mubr.bf16.mxu0 0
      %694 = vmatmul.mubr.bf16.gmra.mrb[0].mxu0 %v553
      %v695 = vpop.f32.mrb[0].mxu0
      %v696 = vadd.f32 0.0, %v695
      %v697 = vpop.f32.mrb[0].mxu0
      %v698 = vpop.f32.mrb[0].mxu0
      %v699 = vadd.f32 0.0, %v698
      %v700 = vpop.f32.mrb[0].mxu0
      %701 = vmatprep.mubr.bf16.mxu0 0
      %702 = vmatmul.mubr.bf16.gmra.mrb[0].mxu0 %v554
      %v703 = vpop.f32.mrb[0].mxu0
      %v704 = vadd.f32 0.0, %v703
      %v705 = vpop.f32.mrb[0].mxu0
      %v706 = vpop.f32.mrb[0].mxu0
      %v707 = vadd.f32 0.0, %v706
      %v708 = vpop.f32.mrb[0].mxu0
      %709 = vmatprep.mubr.bf16.mxu0 0
      %710 = vmatmul.mubr.bf16.gmra.mrb[0].mxu0 %v555
      %v711 = vpop.f32.mrb[0].mxu0
      %v712 = vadd.f32 0.0, %v711
      %v713 = vpop.f32.mrb[0].mxu0
      %v714 = vpop.f32.mrb[0].mxu0
      %v715 = vadd.f32 0.0, %v714
      %v716 = vpop.f32.mrb[0].mxu0
      %717 = vmatprep.mubr.bf16.mxu0 0
      %718 = vmatmul.mubr.bf16.gmra.mrb[0].mxu0 %v556
      %v719 = vpop.f32.mrb[0].mxu0
      %v720 = vadd.f32 0.0, %v719
      %v721 = vpop.f32.mrb[0].mxu0
      %v722 = vpop.f32.mrb[0].mxu0
      %v723 = vadd.f32 0.0, %v722
      %v724 = vpop.f32.mrb[0].mxu0
      %725 = vmatprep.mubr.bf16.mxu0 0
      %726 = vmatmul.mubr.bf16.gmra.mrb[0].mxu0 %v557
      %v727 = vpop.f32.mrb[0].mxu0
      %v728 = vadd.f32 0.0, %v727
      %v729 = vpop.f32.mrb[0].mxu0
      %v730 = vpop.f32.mrb[0].mxu0
      %v731 = vadd.f32 0.0, %v730
      %v732 = vpop.f32.mrb[0].mxu0
      %733 = vmatprep.mubr.bf16.mxu0 0
      %734 = vmatmul.mubr.bf16.gmra.mrb[0].mxu0 %v558
      %v735 = vpop.f32.mrb[0].mxu0
      %v736 = vadd.f32 0.0, %v735
      %v737 = vpop.f32.mrb[0].mxu0
      %v738 = vpop.f32.mrb[0].mxu0
      %v739 = vadd.f32 0.0, %v738
      %v740 = vpop.f32.mrb[0].mxu0
      %741 = vmatprep.mubr.bf16.mxu0 0
      %742 = vmatmul.mubr.bf16.gmra.mrb[0].mxu0 %v559
      %v743 = vpop.f32.mrb[0].mxu0
      %v744 = vadd.f32 0.0, %v743
      %v745 = vpop.f32.mrb[0].mxu0
      %v746 = vpop.f32.mrb[0].mxu0
      %v747 = vadd.f32 0.0, %v746
      %v748 = vpop.f32.mrb[0].mxu0
      %749 = vmatprep.mubr.bf16.mxu0 0
      %750 = vmatmul.mubr.bf16.gmra.mrb[0].mxu0 %v560
      %v751 = vpop.f32.mrb[0].mxu0
      %v752 = vadd.f32 0.0, %v751
      %v753 = vpop.f32.mrb[0].mxu0
      %v754 = vpop.f32.mrb[0].mxu0
      %v755 = vadd.f32 0.0, %v754
      %v756 = vpop.f32.mrb[0].mxu0
      %757 = vmatprep.mubr.bf16.mxu0 0
      %758 = vmatmul.mubr.bf16.gmra.mrb[0].mxu0 %v561
      %v759 = vpop.f32.mrb[0].mxu0
      %v760 = vadd.f32 0.0, %v759
      %v761 = vpop.f32.mrb[0].mxu0
      %v762 = vpop.f32.mrb[0].mxu0
      %v763 = vadd.f32 0.0, %v762
      %v764 = vpop.f32.mrb[0].mxu0
      %765 = vmatprep.mubr.bf16.mxu0 0
      %766 = vmatmul.mubr.bf16.gmra.mrb[0].mxu0 %v562
      %v767 = vpop.f32.mrb[0].mxu0
      %v768 = vadd.f32 0.0, %v767
      %v769 = vpop.f32.mrb[0].mxu0
      %v770 = vpop.f32.mrb[0].mxu0
      %v771 = vadd.f32 0.0, %v770
      %v772 = vpop.f32.mrb[0].mxu0
      %773 = vmatprep.mubr.bf16.mxu0 0
      %774 = vmatmul.mubr.bf16.gmra.mrb[0].mxu0 %v563
      %v775 = vpop.f32.mrb[0].mxu0
      %v776 = vadd.f32 0.0, %v775
      %v777 = vpop.f32.mrb[0].mxu0
      %v778 = vpop.f32.mrb[0].mxu0
      %v779 = vadd.f32 0.0, %v778
      %v780 = vpop.f32.mrb[0].mxu0
      %781 = vmatprep.mubr.bf16.mxu0 0
      %782 = vmatmul.mubr.bf16.gmra.mrb[0].mxu0 %v564
      %v783 = vpop.f32.mrb[0].mxu0
      %v784 = vadd.f32 0.0, %v783
      %v785 = vpop.f32.mrb[0].mxu0
      %v786 = vpop.f32.mrb[0].mxu0
      %v787 = vadd.f32 0.0, %v786
      %v788 = vpop.f32.mrb[0].mxu0
      %789 = vdwg.mxu0
      %v790 = vadd.f32 %v405, %v664
      %v791 = vadd.f32 %v406, %v667
      %v792 = vadd.f32 %v407, %v672
      %v793 = vadd.f32 %v408, %v675
      %v794 = vadd.f32 %v409, %v680
      %v795 = vadd.f32 %v410, %v683
      %v796 = vadd.f32 %v411, %v688
      %v797 = vadd.f32 %v412, %v691
      %v798 = vadd.f32 %v413, %v696
      %v799 = vadd.f32 %v414, %v699
      %v800 = vadd.f32 %v415, %v704
      %v801 = vadd.f32 %v416, %v707
      %v802 = vadd.f32 %v417, %v712
      %v803 = vadd.f32 %v418, %v715
      %v804 = vadd.f32 %v419, %v720
      %v805 = vadd.f32 %v420, %v723
      %v806 = vadd.f32 %v421, %v728
      %v807 = vadd.f32 %v422, %v731
      %v808 = vadd.f32 %v423, %v736
      %v809 = vadd.f32 %v424, %v739
      %v810 = vadd.f32 %v425, %v744
      %v811 = vadd.f32 %v426, %v747
      %v812 = vadd.f32 %v427, %v752
      %v813 = vadd.f32 %v428, %v755
      %v814 = vadd.f32 %v429, %v760
      %v815 = vadd.f32 %v430, %v763
      %v816 = vadd.f32 %v431, %v768
      %v817 = vadd.f32 %v432, %v771
      %v818 = vadd.f32 %v433, %v776
      %v819 = vadd.f32 %v434, %v779
      %v820 = vadd.f32 %v435, %v784
      %v821 = vadd.f32 %v436, %v787
      %822 = vst [vmem:[#allocation2] sm:$0xff] %v790
      %823 = vst [vmem:[#allocation2 + $0x8] sm:$0xff] %v791
      %824 = vst [vmem:[#allocation2 + $0x10] sm:$0xff] %v792
      %825 = vst [vmem:[#allocation2 + $0x18] sm:$0xff] %v793
      %826 = vst [vmem:[#allocation2 + $0x20] sm:$0xff] %v794
      %827 = vst [vmem:[#allocation2 + $0x28] sm:$0xff] %v795
      %828 = vst [vmem:[#allocation2 + $0x30] sm:$0xff] %v796
      %829 = vst [vmem:[#allocation2 + $0x38] sm:$0xff] %v797
      %830 = vst [vmem:[#allocation2 + $0x40] sm:$0xff] %v798
      %831 = vst [vmem:[#allocation2 + $0x48] sm:$0xff] %v799
      %832 = vst [vmem:[#allocation2 + $0x50] sm:$0xff] %v800
      %833 = vst [vmem:[#allocation2 + $0x58] sm:$0xff] %v801
      %834 = vst [vmem:[#allocation2 + $0x60] sm:$0xff] %v802
      %835 = vst [vmem:[#allocation2 + $0x68] sm:$0xff] %v803
      %836 = vst [vmem:[#allocation2 + $0x70] sm:$0xff] %v804
      %837 = vst [vmem:[#allocation2 + $0x78] sm:$0xff] %v805
      %838 = vst [vmem:[#allocation2 + $0x80] sm:$0xff] %v806
      %839 = vst [vmem:[#allocation2 + $0x88] sm:$0xff] %v807
      %840 = vst [vmem:[#allocation2 + $0x90] sm:$0xff] %v808
      %841 = vst [vmem:[#allocation2 + $0x98] sm:$0xff] %v809
      %842 = vst [vmem:[#allocation2 + $0xa0] sm:$0xff] %v810
      %843 = vst [vmem:[#allocation2 + $0xa8] sm:$0xff] %v811
      %844 = vst [vmem:[#allocation2 + $0xb0] sm:$0xff] %v812
      %845 = vst [vmem:[#allocation2 + $0xb8] sm:$0xff] %v813
      %846 = vst [vmem:[#allocation2 + $0xc0] sm:$0xff] %v814
      %847 = vst [vmem:[#allocation2 + $0xc8] sm:$0xff] %v815
      %848 = vst [vmem:[#allocation2 + $0xd0] sm:$0xff] %v816
      %849 = vst [vmem:[#allocation2 + $0xd8] sm:$0xff] %v817
      %850 = vst [vmem:[#allocation2 + $0xe0] sm:$0xff] %v818
      %851 = vst [vmem:[#allocation2 + $0xe8] sm:$0xff] %v819
      %852 = vst [vmem:[#allocation2 + $0xf0] sm:$0xff] %v820
      %853 = vst [vmem:[#allocation2 + $0xf8] sm:$0xff] %v821
      // Predicated region
      $region41: #{bottleneck_forward.7} parent=35 // pred_check
        %p854 = pneg %p369
      $region42: #{bottleneck_forward.7} parent=35 // pred_check_branch
        %856 = sbr.rel (%p854) target = $region44
      $region43: #{bottleneck_forward.7} parent=35 // pred_region
        %v857 = vld [vmem:[#allocation2] sm:$0xff]
        %v858 = vld [vmem:[#allocation2 + $0x8] sm:$0xff]
        %v859 = vld [vmem:[#allocation2 + $0x10] sm:$0xff]
        %v860 = vld [vmem:[#allocation2 + $0x18] sm:$0xff]
        %v861 = vld [vmem:[#allocation2 + $0x20] sm:$0xff]
        %v862 = vld [vmem:[#allocation2 + $0x28] sm:$0xff]
        %v863 = vld [vmem:[#allocation2 + $0x30] sm:$0xff]
        %v864 = vld [vmem:[#allocation2 + $0x38] sm:$0xff]
        %v865 = vld [vmem:[#allocation2 + $0x40] sm:$0xff]
        %v866 = vld [vmem:[#allocation2 + $0x48] sm:$0xff]
        %v867 = vld [vmem:[#allocation2 + $0x50] sm:$0xff]
        %v868 = vld [vmem:[#allocation2 + $0x58] sm:$0xff]
        %v869 = vld [vmem:[#allocation2 + $0x60] sm:$0xff]
        %v870 = vld [vmem:[#allocation2 + $0x68] sm:$0xff]
        %v871 = vld [vmem:[#allocation2 + $0x70] sm:$0xff]
        %v872 = vld [vmem:[#allocation2 + $0x78] sm:$0xff]
        %v873 = vld [vmem:[#allocation2 + $0x80] sm:$0xff]
        %v874 = vld [vmem:[#allocation2 + $0x88] sm:$0xff]
        %v875 = vld [vmem:[#allocation2 + $0x90] sm:$0xff]
        %v876 = vld [vmem:[#allocation2 + $0x98] sm:$0xff]
        %v877 = vld [vmem:[#allocation2 + $0xa0] sm:$0xff]
        %v878 = vld [vmem:[#allocation2 + $0xa8] sm:$0xff]
        %v879 = vld [vmem:[#allocation2 + $0xb0] sm:$0xff]
        %v880 = vld [vmem:[#allocation2 + $0xb8] sm:$0xff]
        %v881 = vld [vmem:[#allocation2 + $0xc0] sm:$0xff]
        %v882 = vld [vmem:[#allocation2 + $0xc8] sm:$0xff]
        %v883 = vld [vmem:[#allocation2 + $0xd0] sm:$0xff]
        %v884 = vld [vmem:[#allocation2 + $0xd8] sm:$0xff]
        %v885 = vld [vmem:[#allocation2 + $0xe0] sm:$0xff]
        %v886 = vld [vmem:[#allocation2 + $0xe8] sm:$0xff]
        %v887 = vld [vmem:[#allocation2 + $0xf0] sm:$0xff]
        %v888 = vld [vmem:[#allocation2 + $0xf8] sm:$0xff]
        %v889 = vld [vmem:[%s340] sm:$0x1]
        %v891 = vlaneseq
        %v892 = vshrl.u32 %v891, 7
        %v893 = vsub.s32 0, %v892
        %v894 = vrot.slane %v889, %v893
        %v896 = vadd.f32 %v857, %v894
        %v897 = vadd.f32 %v858, %v894
        %v898 = vadd.f32 %v859, %v894
        %v899 = vadd.f32 %v860, %v894
        %v900 = vadd.f32 %v861, %v894
        %v901 = vadd.f32 %v862, %v894
        %v902 = vadd.f32 %v863, %v894
        %v903 = vadd.f32 %v864, %v894
        %v904 = vadd.f32 %v865, %v894
        %v905 = vadd.f32 %v866, %v894
        %v906 = vadd.f32 %v867, %v894
        %v907 = vadd.f32 %v868, %v894
        %v908 = vadd.f32 %v869, %v894
        %v909 = vadd.f32 %v870, %v894
        %v910 = vadd.f32 %v871, %v894
        %v911 = vadd.f32 %v872, %v894
        %v912 = vadd.f32 %v873, %v894
        %v913 = vadd.f32 %v874, %v894
        %v914 = vadd.f32 %v875, %v894
        %v915 = vadd.f32 %v876, %v894
        %v916 = vadd.f32 %v877, %v894
        %v917 = vadd.f32 %v878, %v894
        %v918 = vadd.f32 %v879, %v894
        %v919 = vadd.f32 %v880, %v894
        %v920 = vadd.f32 %v881, %v894
        %v921 = vadd.f32 %v882, %v894
        %v922 = vadd.f32 %v883, %v894
        %v923 = vadd.f32 %v884, %v894
        %v924 = vadd.f32 %v885, %v894
        %v925 = vadd.f32 %v886, %v894
        %v926 = vadd.f32 %v887, %v894
        %v927 = vadd.f32 %v888, %v894
        %v928 = vld [vmem:[%s348] sm:$0xf]
        %v929 = vld [vmem:[%s348 + $0x4] sm:$0xf]
        %v930 = vld [vmem:[%s348 + $0x8] sm:$0xf]
        %v931 = vld [vmem:[%s348 + $0xc] sm:$0xf]
        %v932 = vld [vmem:[%s348 + $0x10] sm:$0xf]
        %v933 = vld [vmem:[%s348 + $0x14] sm:$0xf]
        %v934 = vld [vmem:[%s348 + $0x18] sm:$0xf]
        %v935 = vld [vmem:[%s348 + $0x1c] sm:$0xf]
        %v936 = vld [vmem:[%s348 + $0x20] sm:$0xf]
        %v937 = vld [vmem:[%s348 + $0x24] sm:$0xf]
        %v938 = vld [vmem:[%s348 + $0x28] sm:$0xf]
        %v939 = vld [vmem:[%s348 + $0x2c] sm:$0xf]
        %v940 = vld [vmem:[%s348 + $0x30] sm:$0xf]
        %v941 = vld [vmem:[%s348 + $0x34] sm:$0xf]
        %v942 = vld [vmem:[%s348 + $0x38] sm:$0xf]
        %v943 = vld [vmem:[%s348 + $0x3c] sm:$0xf]
        %v944 = vld [vmem:[%s348 + $0x40] sm:$0xf]
        %v945 = vld [vmem:[%s348 + $0x44] sm:$0xf]
        %v946 = vld [vmem:[%s348 + $0x48] sm:$0xf]
        %v947 = vld [vmem:[%s348 + $0x4c] sm:$0xf]
        %v948 = vld [vmem:[%s348 + $0x50] sm:$0xf]
        %v949 = vld [vmem:[%s348 + $0x54] sm:$0xf]
        %v950 = vld [vmem:[%s348 + $0x58] sm:$0xf]
        %v951 = vld [vmem:[%s348 + $0x5c] sm:$0xf]
        %v952 = vld [vmem:[%s348 + $0x60] sm:$0xf]
        %v953 = vld [vmem:[%s348 + $0x64] sm:$0xf]
        %v954 = vld [vmem:[%s348 + $0x68] sm:$0xf]
        %v955 = vld [vmem:[%s348 + $0x6c] sm:$0xf]
        %v956 = vld [vmem:[%s348 + $0x70] sm:$0xf]
        %v957 = vld [vmem:[%s348 + $0x74] sm:$0xf]
        %v958 = vld [vmem:[%s348 + $0x78] sm:$0xf]
        %v959 = vld [vmem:[%s348 + $0x7c] sm:$0xf]
        %v960 = vunpack.c.l.bf16 %v928
        %v961 = vunpack.c.l.bf16 %v929
        %v962 = vunpack.c.l.bf16 %v930
        %v963 = vunpack.c.l.bf16 %v931
        %v964 = vunpack.c.l.bf16 %v932
        %v965 = vunpack.c.l.bf16 %v933
        %v966 = vunpack.c.l.bf16 %v934
        %v967 = vunpack.c.l.bf16 %v935
        %v968 = vunpack.c.l.bf16 %v936
        %v969 = vunpack.c.l.bf16 %v937
        %v970 = vunpack.c.l.bf16 %v938
        %v971 = vunpack.c.l.bf16 %v939
        %v972 = vunpack.c.l.bf16 %v940
        %v973 = vunpack.c.l.bf16 %v941
        %v974 = vunpack.c.l.bf16 %v942
        %v975 = vunpack.c.l.bf16 %v943
        %v976 = vunpack.c.l.bf16 %v944
        %v977 = vunpack.c.l.bf16 %v945
        %v978 = vunpack.c.l.bf16 %v946
        %v979 = vunpack.c.l.bf16 %v947
        %v980 = vunpack.c.l.bf16 %v948
        %v981 = vunpack.c.l.bf16 %v949
        %v982 = vunpack.c.l.bf16 %v950
        %v983 = vunpack.c.l.bf16 %v951
        %v984 = vunpack.c.l.bf16 %v952
        %v985 = vunpack.c.l.bf16 %v953
        %v986 = vunpack.c.l.bf16 %v954
        %v987 = vunpack.c.l.bf16 %v955
        %v988 = vunpack.c.l.bf16 %v956
        %v989 = vunpack.c.l.bf16 %v957
        %v990 = vunpack.c.l.bf16 %v958
        %v991 = vunpack.c.l.bf16 %v959
        %v992 = vadd.f32 %v896, %v960
        %v993 = vadd.f32 %v897, %v961
        %v994 = vadd.f32 %v898, %v962
        %v995 = vadd.f32 %v899, %v963
        %v996 = vadd.f32 %v900, %v964
        %v997 = vadd.f32 %v901, %v965
        %v998 = vadd.f32 %v902, %v966
        %v999 = vadd.f32 %v903, %v967
        %v1000 = vadd.f32 %v904, %v968
        %v1001 = vadd.f32 %v905, %v969
        %v1002 = vadd.f32 %v906, %v970
        %v1003 = vadd.f32 %v907, %v971
        %v1004 = vadd.f32 %v908, %v972
        %v1005 = vadd.f32 %v909, %v973
        %v1006 = vadd.f32 %v910, %v974
        %v1007 = vadd.f32 %v911, %v975
        %v1008 = vadd.f32 %v912, %v976
        %v1009 = vadd.f32 %v913, %v977
        %v1010 = vadd.f32 %v914, %v978
        %v1011 = vadd.f32 %v915, %v979
        %v1012 = vadd.f32 %v916, %v980
        %v1013 = vadd.f32 %v917, %v981
        %v1014 = vadd.f32 %v918, %v982
        %v1015 = vadd.f32 %v919, %v983
        %v1016 = vadd.f32 %v920, %v984
        %v1017 = vadd.f32 %v921, %v985
        %v1018 = vadd.f32 %v922, %v986
        %v1019 = vadd.f32 %v923, %v987
        %v1020 = vadd.f32 %v924, %v988
        %v1021 = vadd.f32 %v925, %v989
        %v1022 = vadd.f32 %v926, %v990
        %v1023 = vadd.f32 %v927, %v991
        %1024 = vst [vmem:[%s357] sm:$0xff] %v992
        %1025 = vst [vmem:[%s357 + $0x8] sm:$0xff] %v993
        %1026 = vst [vmem:[%s357 + $0x10] sm:$0xff] %v994
        %1027 = vst [vmem:[%s357 + $0x18] sm:$0xff] %v995
        %1028 = vst [vmem:[%s357 + $0x20] sm:$0xff] %v996
        %1029 = vst [vmem:[%s357 + $0x28] sm:$0xff] %v997
        %1030 = vst [vmem:[%s357 + $0x30] sm:$0xff] %v998
        %1031 = vst [vmem:[%s357 + $0x38] sm:$0xff] %v999
        %1032 = vst [vmem:[%s357 + $0x40] sm:$0xff] %v1000
        %1033 = vst [vmem:[%s357 + $0x48] sm:$0xff] %v1001
        %1034 = vst [vmem:[%s357 + $0x50] sm:$0xff] %v1002
        %1035 = vst [vmem:[%s357 + $0x58] sm:$0xff] %v1003
        %1036 = vst [vmem:[%s357 + $0x60] sm:$0xff] %v1004
        %1037 = vst [vmem:[%s357 + $0x68] sm:$0xff] %v1005
        %1038 = vst [vmem:[%s357 + $0x70] sm:$0xff] %v1006
        %1039 = vst [vmem:[%s357 + $0x78] sm:$0xff] %v1007
        %1040 = vst [vmem:[%s357 + $0x80] sm:$0xff] %v1008
        %1041 = vst [vmem:[%s357 + $0x88] sm:$0xff] %v1009
        %1042 = vst [vmem:[%s357 + $0x90] sm:$0xff] %v1010
        %1043 = vst [vmem:[%s357 + $0x98] sm:$0xff] %v1011
        %1044 = vst [vmem:[%s357 + $0xa0] sm:$0xff] %v1012
        %1045 = vst [vmem:[%s357 + $0xa8] sm:$0xff] %v1013
        %1046 = vst [vmem:[%s357 + $0xb0] sm:$0xff] %v1014
        %1047 = vst [vmem:[%s357 + $0xb8] sm:$0xff] %v1015
        %1048 = vst [vmem:[%s357 + $0xc0] sm:$0xff] %v1016
        %1049 = vst [vmem:[%s357 + $0xc8] sm:$0xff] %v1017
        %1050 = vst [vmem:[%s357 + $0xd0] sm:$0xff] %v1018
        %1051 = vst [vmem:[%s357 + $0xd8] sm:$0xff] %v1019
        %1052 = vst [vmem:[%s357 + $0xe0] sm:$0xff] %v1020
        %1053 = vst [vmem:[%s357 + $0xe8] sm:$0xff] %v1021
        %1054 = vst [vmem:[%s357 + $0xf0] sm:$0xff] %v1022
        %1055 = vst [vmem:[%s357 + $0xf8] sm:$0xff] %v1023
        %v1056 = vmax.f32 %v992, 0.0
        %v1057 = vmax.f32 %v993, 0.0
        %v1058 = vmax.f32 %v994, 0.0
        %v1059 = vmax.f32 %v995, 0.0
        %v1060 = vmax.f32 %v996, 0.0
        %v1061 = vmax.f32 %v997, 0.0
        %v1062 = vmax.f32 %v998, 0.0
        %v1063 = vmax.f32 %v999, 0.0
        %v1064 = vmax.f32 %v1000, 0.0
        %v1065 = vmax.f32 %v1001, 0.0
        %v1066 = vmax.f32 %v1002, 0.0
        %v1067 = vmax.f32 %v1003, 0.0
        %v1068 = vmax.f32 %v1004, 0.0
        %v1069 = vmax.f32 %v1005, 0.0
        %v1070 = vmax.f32 %v1006, 0.0
        %v1071 = vmax.f32 %v1007, 0.0
        %v1072 = vmax.f32 %v1008, 0.0
        %v1073 = vmax.f32 %v1009, 0.0
        %v1074 = vmax.f32 %v1010, 0.0
        %v1075 = vmax.f32 %v1011, 0.0
        %v1076 = vmax.f32 %v1012, 0.0
        %v1077 = vmax.f32 %v1013, 0.0
        %v1078 = vmax.f32 %v1014, 0.0
        %v1079 = vmax.f32 %v1015, 0.0
        %v1080 = vmax.f32 %v1016, 0.0
        %v1081 = vmax.f32 %v1017, 0.0
        %v1082 = vmax.f32 %v1018, 0.0
        %v1083 = vmax.f32 %v1019, 0.0
        %v1084 = vmax.f32 %v1020, 0.0
        %v1085 = vmax.f32 %v1021, 0.0
        %v1086 = vmax.f32 %v1022, 0.0
        %v1087 = vmax.f32 %v1023, 0.0
        %v1088 = vpack.c.bf16 %v1057, %v1056
        %v1089 = vpack.c.bf16 %v1059, %v1058
        %v1090 = vpack.c.bf16 %v1061, %v1060
        %v1091 = vpack.c.bf16 %v1063, %v1062
        %v1092 = vpack.c.bf16 %v1065, %v1064
        %v1093 = vpack.c.bf16 %v1067, %v1066
        %v1094 = vpack.c.bf16 %v1069, %v1068
        %v1095 = vpack.c.bf16 %v1071, %v1070
        %v1096 = vpack.c.bf16 %v1073, %v1072
        %v1097 = vpack.c.bf16 %v1075, %v1074
        %v1098 = vpack.c.bf16 %v1077, %v1076
        %v1099 = vpack.c.bf16 %v1079, %v1078
        %v1100 = vpack.c.bf16 %v1081, %v1080
        %v1101 = vpack.c.bf16 %v1083, %v1082
        %v1102 = vpack.c.bf16 %v1085, %v1084
        %v1103 = vpack.c.bf16 %v1087, %v1086
        %v1120 = vunpack.c.l.b16 %v1088
        %v1121 = vunpack.c.h.b16 %v1088
        %v1122 = vunpack.c.l.b16 %v1089
        %v1123 = vunpack.c.h.b16 %v1089
        %v1124 = vunpack.c.l.b16 %v1090
        %v1125 = vunpack.c.h.b16 %v1090
        %v1126 = vunpack.c.l.b16 %v1091
        %v1127 = vunpack.c.h.b16 %v1091
        %v1128 = vunpack.c.l.b16 %v1092
        %v1129 = vunpack.c.h.b16 %v1092
        %v1130 = vunpack.c.l.b16 %v1093
        %v1131 = vunpack.c.h.b16 %v1093
        %v1132 = vunpack.c.l.b16 %v1094
        %v1133 = vunpack.c.h.b16 %v1094
        %v1134 = vunpack.c.l.b16 %v1095
        %v1135 = vunpack.c.h.b16 %v1095
        %v1136 = vunpack.c.l.b16 %v1096
        %v1137 = vunpack.c.h.b16 %v1096
        %v1138 = vunpack.c.l.b16 %v1097
        %v1139 = vunpack.c.h.b16 %v1097
        %v1140 = vunpack.c.l.b16 %v1098
        %v1141 = vunpack.c.h.b16 %v1098
        %v1142 = vunpack.c.l.b16 %v1099
        %v1143 = vunpack.c.h.b16 %v1099
        %v1144 = vunpack.c.l.b16 %v1100
        %v1145 = vunpack.c.h.b16 %v1100
        %v1146 = vunpack.c.l.b16 %v1101
        %v1147 = vunpack.c.h.b16 %v1101
        %v1148 = vunpack.c.l.b16 %v1102
        %v1149 = vunpack.c.h.b16 %v1102
        %v1150 = vunpack.c.l.b16 %v1103
        %v1151 = vunpack.c.h.b16 %v1103
        %v1152 = vpack.c.b16 %v1120, %v1120
        %v1153 = vpack.c.b16 %v1121, %v1121
        %v1154 = vpack.c.b16 %v1122, %v1122
        %v1155 = vpack.c.b16 %v1123, %v1123
        %v1156 = vpack.c.b16 %v1124, %v1124
        %v1157 = vpack.c.b16 %v1125, %v1125
        %v1158 = vpack.c.b16 %v1126, %v1126
        %v1159 = vpack.c.b16 %v1127, %v1127
        %v1160 = vpack.c.b16 %v1128, %v1128
        %v1161 = vpack.c.b16 %v1129, %v1129
        %v1162 = vpack.c.b16 %v1130, %v1130
        %v1163 = vpack.c.b16 %v1131, %v1131
        %v1164 = vpack.c.b16 %v1132, %v1132
        %v1165 = vpack.c.b16 %v1133, %v1133
        %v1166 = vpack.c.b16 %v1134, %v1134
        %v1167 = vpack.c.b16 %v1135, %v1135
        %v1168 = vpack.c.b16 %v1136, %v1136
        %v1169 = vpack.c.b16 %v1137, %v1137
        %v1170 = vpack.c.b16 %v1138, %v1138
        %v1171 = vpack.c.b16 %v1139, %v1139
        %v1172 = vpack.c.b16 %v1140, %v1140
        %v1173 = vpack.c.b16 %v1141, %v1141
        %v1174 = vpack.c.b16 %v1142, %v1142
        %v1175 = vpack.c.b16 %v1143, %v1143
        %v1176 = vpack.c.b16 %v1144, %v1144
        %v1177 = vpack.c.b16 %v1145, %v1145
        %v1178 = vpack.c.b16 %v1146, %v1146
        %v1179 = vpack.c.b16 %v1147, %v1147
        %v1180 = vpack.c.b16 %v1148, %v1148
        %v1181 = vpack.c.b16 %v1149, %v1149
        %v1182 = vpack.c.b16 %v1150, %v1150
        %v1183 = vpack.c.b16 %v1151, %v1151
        %1216 = vst [vmem:[%s366] sm:$0xf] %v1152
        %1217 = vst [vmem:[%s366 + $0x4] sm:$0xf] %v1153
        %1218 = vst [vmem:[%s366 + $0x8] sm:$0xf] %v1154
        %1219 = vst [vmem:[%s366 + $0xc] sm:$0xf] %v1155
        %1220 = vst [vmem:[%s366 + $0x10] sm:$0xf] %v1156
        %1221 = vst [vmem:[%s366 + $0x14] sm:$0xf] %v1157
        %1222 = vst [vmem:[%s366 + $0x18] sm:$0xf] %v1158
        %1223 = vst [vmem:[%s366 + $0x1c] sm:$0xf] %v1159
        %1224 = vst [vmem:[%s366 + $0x20] sm:$0xf] %v1160
        %1225 = vst [vmem:[%s366 + $0x24] sm:$0xf] %v1161
        %1226 = vst [vmem:[%s366 + $0x28] sm:$0xf] %v1162
        %1227 = vst [vmem:[%s366 + $0x2c] sm:$0xf] %v1163
        %1228 = vst [vmem:[%s366 + $0x30] sm:$0xf] %v1164
        %1229 = vst [vmem:[%s366 + $0x34] sm:$0xf] %v1165
        %1230 = vst [vmem:[%s366 + $0x38] sm:$0xf] %v1166
        %1231 = vst [vmem:[%s366 + $0x3c] sm:$0xf] %v1167
        %1232 = vst [vmem:[%s366 + $0x40] sm:$0xf] %v1168
        %1233 = vst [vmem:[%s366 + $0x44] sm:$0xf] %v1169
        %1234 = vst [vmem:[%s366 + $0x48] sm:$0xf] %v1170
        %1235 = vst [vmem:[%s366 + $0x4c] sm:$0xf] %v1171
        %1236 = vst [vmem:[%s366 + $0x50] sm:$0xf] %v1172
        %1237 = vst [vmem:[%s366 + $0x54] sm:$0xf] %v1173
        %1238 = vst [vmem:[%s366 + $0x58] sm:$0xf] %v1174
        %1239 = vst [vmem:[%s366 + $0x5c] sm:$0xf] %v1175
        %1240 = vst [vmem:[%s366 + $0x60] sm:$0xf] %v1176
        %1241 = vst [vmem:[%s366 + $0x64] sm:$0xf] %v1177
        %1242 = vst [vmem:[%s366 + $0x68] sm:$0xf] %v1178
        %1243 = vst [vmem:[%s366 + $0x6c] sm:$0xf] %v1179
        %1244 = vst [vmem:[%s366 + $0x70] sm:$0xf] %v1180
        %1245 = vst [vmem:[%s366 + $0x74] sm:$0xf] %v1181
        %1246 = vst [vmem:[%s366 + $0x78] sm:$0xf] %v1182
        %1247 = vst [vmem:[%s366 + $0x7c] sm:$0xf] %v1183
      $region44: #{bottleneck_forward.7} parent=35 // pred_fallthru
        _
      %s1248 = smul.u32 32, %s22
      %p1249 = scmp.lt.s32.totalorder %s1248, 63
      %s1250 = scalar_select %p1249, %s1248, 63
      %p1251 = scmp.lt.s32.totalorder %s23, 0
      %s1252 = scalar_select %p1251, %s23, 0
      %s1253 = sadd.s32 %s1252, %s1250
      %s1254 = smul.addr %s1253, 8
      %s1255 = scalar_lea.vmem %s4, %s1254
      %s1256 = smul.u32 32, %s22
      %p1257 = scmp.lt.s32.totalorder %s1256, 63
      %s1258 = scalar_select %p1257, %s1256, 63
      %p1259 = scmp.lt.s32.totalorder %s23, 0
      %s1260 = scalar_select %p1259, %s23, 0
      %s1261 = sadd.s32 %s1260, %s1258
      %s1262 = smul.addr %s1261, 4
      %s1263 = scalar_lea.vmem %s5, %s1262
      // Predicated region
      $region45: #{bottleneck_forward.7} parent=35 // pred_check
        %p1264 = pneg %p166
      $region46: #{bottleneck_forward.7} parent=35 // pred_check_branch
        %1266 = sbr.rel (%p1264) target = $region48
      $region47: #{bottleneck_forward.7} parent=35 // pred_region
        %s1267 = smul.u32 32, %s22
      $region48: #{bottleneck_forward.7} parent=35 // pred_fallthru
        _
      // Predicated region
      $region49: #{bottleneck_forward.7} parent=35 // pred_check
        %p1268 = pneg %p194
      $region50: #{bottleneck_forward.7} parent=35 // pred_check_branch
        %1270 = sbr.rel (%p1268) target = $region52
      $region51: #{bottleneck_forward.7} parent=35 // pred_region
        %s1271 = smul.u32 32, %s22
      $region52: #{bottleneck_forward.7} parent=35 // pred_fallthru
        _
    $region36: #{bottleneck_forward.7} parent=5 // pred_fallthru
      _
    %p1272 = scmp.le.s32.totalorder 2, %s12
    // Predicated region
    $region53: #{bottleneck_forward.7} parent=5 // pred_check
      %p1273 = pneg %p1272
    $region54: #{bottleneck_forward.7} parent=5 // pred_check_branch
      %1275 = sbr.rel (%p1273) target = $region56
    $region55: #{bottleneck_forward.7} parent=5 // pred_region
      %s1276 = ssub.s32 %s12, 2
      // Predicated region
      $region57: #{bottleneck_forward.7} parent=55 // pred_check
        %p1277 = pneg %p172
      $region58: #{bottleneck_forward.7} parent=55 // pred_check_branch
        %1279 = sbr.rel (%p1277) target = $region60
      $region59: #{bottleneck_forward.7} parent=55 // pred_region
        %s1280 = smul.u32 32, %s25
        %p1281 = scmp.lt.s32.totalorder %s1280, 63
        %s1282 = scalar_select %p1281, %s1280, 63
        %p1283 = scmp.lt.s32.totalorder %s26, 0
        %s1284 = scalar_select %p1283, %s26, 0
        %s1285 = sadd.s32 %s1284, %s1282
        %s1286 = smul.addr %s1285, 8
        %s1287 = scalar_lea.vmem %s4, %s1286
      $region60: #{bottleneck_forward.7} parent=55 // pred_fallthru
        _
      // Predicated region
      $region61: #{bottleneck_forward.7} parent=55 // pred_check
        %p1288 = pneg %p200
      $region62: #{bottleneck_forward.7} parent=55 // pred_check_branch
        %1290 = sbr.rel (%p1288) target = $region64
      $region63: #{bottleneck_forward.7} parent=55 // pred_region
        %s1291 = smul.u32 32, %s25
        %p1292 = scmp.lt.s32.totalorder %s1291, 63
        %s1293 = scalar_select %p1292, %s1291, 63
        %p1294 = scmp.lt.s32.totalorder %s26, 0
        %s1295 = scalar_select %p1294, %s26, 0
        %s1296 = sadd.s32 %s1295, %s1293
        %s1297 = smul.addr %s1296, 4
        %s1298 = scalar_lea.vmem %s5, %s1297
      $region64: #{bottleneck_forward.7} parent=55 // pred_fallthru
        _
    $region56: #{bottleneck_forward.7} parent=5 // pred_fallthru
      _
  $region6: #{bottleneck_forward.7} parent=0 // loop_footer
    %s16 = sadd.s32 1, %s12
  $region7: #{bottleneck_forward.7} parent=0 // loop_footer_branch
    %11 = sbr.rel target = $region3
  $region8: #{bottleneck_forward.7} parent=0 // loop_exit
    _

// kernel: bottleneck_forward.5
$region0: #{bottleneck_forward.5}
  #allocation0 [shape = 'u32[]', space=smem, size = 0x4, offset = 0x4, fixed_abs, tag = 'smem constant byte address 0x4 - core index']
  #allocation1 [shape = 'u32[144,128]{1,0:T(1,128)}', space=vmem, size = 0x12000, scoped, tag = 'internal scratch']
  %s0 = inlined_call_operand.vmem [shape: bf16[2,18,24,128], index: 0, kind: input, shape index: {}]
  %s1 = inlined_call_operand.vmem [shape: bf16[1152,128], index: 1, kind: input, shape index: {}]
  %s2 = inlined_call_operand.vmem [shape: f32[1,128], index: 2, kind: input, shape index: {}]
  %s3 = inlined_call_operand.vmem [shape: bf16[2,256,128], index: 3, kind: output, shape index: {}]
  %s4 = sld [smem:[#allocation0]]
  $region45: #{bottleneck_forward.5} parent=0
    _
  %s6 = ssub.s32 1, %s4
  %s7 = scalar_select 0, %s6, %s4
  loop: start=0, step=1, limit=6
  $region2: #{bottleneck_forward.5} parent=0 // loop_pre_header
    _
  $region3: #{bottleneck_forward.5} parent=0 // loop_header
    %s9 = sphi 0, %s13
    %p10 = scmp.ge.s32.totalorder %s9, 6
    %s16 = sphi 0, %s28
    %s17 = sphi 0, %s24
    %s18 = sphi 0, %s16
    %s19 = sphi 0, %s17
    %s20 = sphi 0, %s18
    %s21 = sphi 0, %s19
    %s31 = sphi 0, %s33
    %s34 = sphi 0, %s31
    %s35 = sphi 0, %s34
    %s51 = sphi 0, %s35
    %s55 = sphi 0, %s55
    %s57 = sphi 0, %s55
    %s58 = sphi 0, %s57
    %s72 = sphi 0, %s58
    %s76 = sphi 0, %s76
    %s78 = sphi 0, %s76
    %s79 = sphi 0, %s78
    %s93 = sphi 0, %s79
    %s101 = sphi 0, %s103
    %s104 = sphi 0, %s101
    %s105 = sphi 0, %s104
    %s121 = sphi 0, %s105
  $region4: #{bottleneck_forward.5} parent=0 // loop_header_branch
    %12 = sbr.rel (%p10) target = $region8
  $region5: #{bottleneck_forward.5} parent=0 // loop_body
    %s14 = ssub.s32 %s9, 1
    %s15 = ssub.s32 %s9, 2
    %s22 = sadd.s32 1, %s17
    %p23 = scmp.ge.s32.totalorder %s22, 2
    %s24 = scalar_select %p23, 0, %s22
    %s25 = sadd.s32 1, %s16
    %s26 = scalar_select %p23, %s25, %s16
    %p27 = scmp.ge.s32.totalorder %s26, 2
    %s28 = scalar_select %p27, 0, %s26
    %s29 = ssub.s32 %s16, %s28
    %p30 = scmp.eq.s32.totalorder %s29, 0
    %s32 = sadd.s32 %s31, 1
    %s33 = scalar_select %p30, %s31, %s32
    %p36 = pneg %p30
    %p37 = scmp.eq.s32.totalorder %s9, 3
    %p38 = por %p36, %p37
    %p39 = scmp.ne.s32.totalorder %s31, %s34
    %p40 = scmp.eq.s32.totalorder %s9, 0
    %p41 = por %p39, %p40
    %p42 = scmp.ne.s32.totalorder %s31, %s34
    %p43 = scmp.eq.s32.totalorder %s14, 3
    %p44 = por %p42, %p43
    %p45 = scmp.ne.s32.totalorder %s34, %s35
    %p46 = scmp.eq.s32.totalorder %s14, 0
    %p47 = por %p45, %p46
    %p48 = scmp.ne.s32.totalorder %s34, %s35
    %p49 = scmp.eq.s32.totalorder %s15, 3
    %p50 = por %p48, %p49
    %p52 = scmp.ne.s32.totalorder %s35, %s51
    %p53 = scmp.eq.s32.totalorder %s15, 0
    %p54 = por %p52, %p53
    %s56 = sadd.s32 %s55, 1
    %p59 = scmp.eq.s32.totalorder %s9, 3
    %p60 = scmp.ne.s32.totalorder %s55, %s57
    %p61 = scmp.eq.s32.totalorder %s9, 0
    %p62 = por %p60, %p61
    %p63 = scmp.ne.s32.totalorder %s55, %s57
    %p64 = scmp.eq.s32.totalorder %s14, 3
    %p65 = por %p63, %p64
    %p66 = scmp.ne.s32.totalorder %s57, %s58
    %p67 = scmp.eq.s32.totalorder %s14, 0
    %p68 = por %p66, %p67
    %p69 = scmp.ne.s32.totalorder %s57, %s58
    %p70 = scmp.eq.s32.totalorder %s15, 3
    %p71 = por %p69, %p70
    %p73 = scmp.ne.s32.totalorder %s58, %s72
    %p74 = scmp.eq.s32.totalorder %s15, 0
    %p75 = por %p73, %p74
    %s77 = sadd.s32 %s76, 1
    %p80 = scmp.eq.s32.totalorder %s9, 3
    %p81 = scmp.ne.s32.totalorder %s76, %s78
    %p82 = scmp.eq.s32.totalorder %s9, 0
    %p83 = por %p81, %p82
    %p84 = scmp.ne.s32.totalorder %s76, %s78
    %p85 = scmp.eq.s32.totalorder %s14, 3
    %p86 = por %p84, %p85
    %p87 = scmp.ne.s32.totalorder %s78, %s79
    %p88 = scmp.eq.s32.totalorder %s14, 0
    %p89 = por %p87, %p88
    %p90 = scmp.ne.s32.totalorder %s78, %s79
    %p91 = scmp.eq.s32.totalorder %s15, 3
    %p92 = por %p90, %p91
    %p94 = scmp.ne.s32.totalorder %s79, %s93
    %p95 = scmp.eq.s32.totalorder %s15, 0
    %p96 = por %p94, %p95
    %s97 = ssub.s32 %s16, %s28
    %s98 = ssub.s32 %s17, %s24
    %s99 = sor.u32 %s97, %s98
    %p100 = scmp.eq.s32.totalorder %s99, 0
    %s102 = sadd.s32 %s101, 1
    %s103 = scalar_select %p100, %s101, %s102
    %p106 = pneg %p100
    %p107 = scmp.eq.s32.totalorder %s9, 3
    %p108 = por %p106, %p107
    %p109 = scmp.ne.s32.totalorder %s101, %s104
    %p110 = scmp.eq.s32.totalorder %s9, 0
    %p111 = por %p109, %p110
    %p112 = scmp.ne.s32.totalorder %s101, %s104
    %p113 = scmp.eq.s32.totalorder %s14, 3
    %p114 = por %p112, %p113
    %p115 = scmp.ne.s32.totalorder %s104, %s105
    %p116 = scmp.eq.s32.totalorder %s14, 0
    %p117 = por %p115, %p116
    %p118 = scmp.ne.s32.totalorder %s104, %s105
    %p119 = scmp.eq.s32.totalorder %s15, 3
    %p120 = por %p118, %p119
    %p122 = scmp.ne.s32.totalorder %s105, %s121
    %p123 = scmp.eq.s32.totalorder %s15, 0
    %p124 = por %p122, %p123
    %p125 = scmp.le.s32.totalorder 1, %s9
    %p126 = scmp.lt.s32.totalorder %s9, 5
    %p127 = pnand %p125, %p126
    %p128 = pneg %p127
    // Predicated region
    $region9: #{bottleneck_forward.5} parent=5 // pred_check
      _
    $region10: #{bottleneck_forward.5} parent=5 // pred_check_branch
      %130 = sbr.rel (%p127) target = $region12
    $region11: #{bottleneck_forward.5} parent=5 // pred_region
      %s131 = ssub.s32 %s9, 1
      // Predicated region
      $region13: #{bottleneck_forward.5} parent=11 // pred_check
        %p132 = pneg %p68
      $region14: #{bottleneck_forward.5} parent=11 // pred_check_branch
        %134 = sbr.rel (%p132) target = $region16
      $region15: #{bottleneck_forward.5} parent=11 // pred_region
        _
      $region16: #{bottleneck_forward.5} parent=11 // pred_fallthru
        _
      // Predicated region
      $region17: #{bottleneck_forward.5} parent=11 // pred_check
        %p135 = pneg %p89
      $region18: #{bottleneck_forward.5} parent=11 // pred_check_branch
        %137 = sbr.rel (%p135) target = $region20
      $region19: #{bottleneck_forward.5} parent=11 // pred_region
        _
      $region20: #{bottleneck_forward.5} parent=11 // pred_fallthru
        _
    $region12: #{bottleneck_forward.5} parent=5 // pred_fallthru
      _
    %p138 = scmp.lt.s32.totalorder %s9, 4
    // Predicated region
    $region21: #{bottleneck_forward.5} parent=5 // pred_check
      %p139 = pneg %p138
    $region22: #{bottleneck_forward.5} parent=5 // pred_check_branch
      %141 = sbr.rel (%p139) target = $region24
    $region23: #{bottleneck_forward.5} parent=5 // pred_region
      // Predicated region
      $region25: #{bottleneck_forward.5} parent=23 // pred_check
        %p142 = pneg %p41
      $region26: #{bottleneck_forward.5} parent=23 // pred_check_branch
        %144 = sbr.rel (%p142) target = $region28
      $region27: #{bottleneck_forward.5} parent=23 // pred_region
        %p145 = scmp.lt.s32.totalorder %s16, 1
        %s146 = scalar_select %p145, %s16, 1
        %s147 = smul.addr %s146, 54
        %s148 = smul.addr %s147, 4
        %s149 = scalar_lea.vmem %s0, %s148
      $region28: #{bottleneck_forward.5} parent=23 // pred_fallthru
        _
    $region24: #{bottleneck_forward.5} parent=5 // pred_fallthru
      _
    %p150 = scmp.le.s32.totalorder 1, %s9
    %p151 = scmp.lt.s32.totalorder %s9, 5
    %p152 = pnand %p150, %p151
    %p153 = pneg %p152
    // Predicated region
    $region29: #{bottleneck_forward.5} parent=5 // pred_check
      _
    $region30: #{bottleneck_forward.5} parent=5 // pred_check_branch
      %155 = sbr.rel (%p152) target = $region32
    $region31: #{bottleneck_forward.5} parent=5 // pred_region
      %s156 = ssub.s32 %s9, 1
      %p157 = scmp.lt.s32.totalorder %s18, 1
      %s158 = scalar_select %p157, %s18, 1
      %s159 = smul.addr %s158, 54
      %s160 = smul.addr %s159, 4
      %s161 = scalar_lea.vmem %s0, %s160
      %p162 = pneg %p47
      %p163 = pneg %p44
      %p164 = pneg %p68
      %p165 = pneg %p65
      %p166 = pneg %p89
      %p167 = pneg %p86
      %p168 = pneg %p117
      %p169 = pneg %p114
      %s170 = smul.u32 16, %s19
      %p171 = scmp.lt.s32.totalorder %s18, 1
      %s172 = scalar_select %p171, %s18, 1
      %p173 = scmp.lt.s32.totalorder %s170, 31
      %s174 = scalar_select %p173, %s170, 31
      %s175 = smul.addr %s172, 32
      %s176 = sadd.s32 %s174, %s175
      %s177 = smul.addr %s176, 4
      %s178 = scalar_lea.vmem %s3, %s177
      %p179 = scmp.lt.s32.totalorder %s18, 1
      %s180 = scalar_select %p179, %s18, 1
      %s181 = smul.addr %s180, 54
      %s182 = smul.addr %s181, 4
      %s183 = scalar_lea.vmem %s0, %s182
      %s184 = smul.u32 16, %s19
      %p185 = scmp.lt.s32.totalorder %s18, 1
      %s186 = scalar_select %p185, %s18, 1
      %p187 = scmp.lt.s32.totalorder %s184, 31
      %s188 = scalar_select %p187, %s184, 31
      %s189 = smul.addr %s186, 32
      %s190 = sadd.s32 %s188, %s189
      %s191 = smul.addr %s190, 4
      %s192 = scalar_lea.vmem %s3, %s191
      %s193 = smul.u32 16, %s19
      %s195 = smul.u32 %s19, 8
      %s196 = smul.u32 %s195, 3
      %s197 = smul.addr %s196, 4
      %s198 = scalar_lea.vmem %s183, %s197
      %v199 = vld [vmem:[%s198] sm:$0xf]
      %v200 = vld [vmem:[%s198 + $0x4] sm:$0xf]
      %v201 = vld [vmem:[%s198 + $0xc] sm:$0xf]
      %v202 = vld [vmem:[%s198 + $0x10] sm:$0xf]
      %v203 = vld [vmem:[%s198 + $0x18] sm:$0xf]
      %v204 = vld [vmem:[%s198 + $0x1c] sm:$0xf]
      %v205 = vld [vmem:[%s198 + $0x24] sm:$0xf]
      %v206 = vld [vmem:[%s198 + $0x28] sm:$0xf]
      %v207 = vld [vmem:[%s198 + $0x30] sm:$0xf]
      %v208 = vld [vmem:[%s198 + $0x34] sm:$0xf]
      %v209 = vld [vmem:[%s198 + $0x3c] sm:$0xf]
      %v210 = vld [vmem:[%s198 + $0x40] sm:$0xf]
      %v211 = vld [vmem:[%s198 + $0x48] sm:$0xf]
      %v212 = vld [vmem:[%s198 + $0x4c] sm:$0xf]
      %v213 = vld [vmem:[%s198 + $0x54] sm:$0xf]
      %v214 = vld [vmem:[%s198 + $0x58] sm:$0xf]
      %v215 = vld [vmem:[%s198 + $0x8] sm:$0x1]
      %v216 = vld [vmem:[%s198 + $0x14] sm:$0x1]
      %v217 = vld [vmem:[%s198 + $0x20] sm:$0x1]
      %v218 = vld [vmem:[%s198 + $0x2c] sm:$0x1]
      %v219 = vld [vmem:[%s198 + $0x38] sm:$0x1]
      %v220 = vld [vmem:[%s198 + $0x44] sm:$0x1]
      %v221 = vld [vmem:[%s198 + $0x50] sm:$0x1]
      %v222 = vld [vmem:[%s198 + $0x5c] sm:$0x1]
      %v223 = vld [vmem:[%s198] sm:$0xe]
      %v224 = vld [vmem:[%s198 + $0xc] sm:$0xe]
      %v225 = vld [vmem:[%s198 + $0x18] sm:$0xe]
      %v226 = vld [vmem:[%s198 + $0x24] sm:$0xe]
      %v227 = vld [vmem:[%s198 + $0x30] sm:$0xe]
      %v228 = vld [vmem:[%s198 + $0x3c] sm:$0xe]
      %v229 = vld [vmem:[%s198 + $0x48] sm:$0xe]
      %v230 = vld [vmem:[%s198 + $0x54] sm:$0xe]
      %s231 = sadd.s32 %s195, 1
      %s232 = smul.u32 %s231, 3
      %s233 = smul.addr %s232, 4
      %s234 = scalar_lea.vmem %s183, %s233
      %v235 = vld [vmem:[%s234] sm:$0xf]
      %v236 = vld [vmem:[%s234 + $0x4] sm:$0xf]
      %v237 = vld [vmem:[%s234 + $0xc] sm:$0xf]
      %v238 = vld [vmem:[%s234 + $0x10] sm:$0xf]
      %v239 = vld [vmem:[%s234 + $0x18] sm:$0xf]
      %v240 = vld [vmem:[%s234 + $0x1c] sm:$0xf]
      %v241 = vld [vmem:[%s234 + $0x24] sm:$0xf]
      %v242 = vld [vmem:[%s234 + $0x28] sm:$0xf]
      %v243 = vld [vmem:[%s234 + $0x30] sm:$0xf]
      %v244 = vld [vmem:[%s234 + $0x34] sm:$0xf]
      %v245 = vld [vmem:[%s234 + $0x3c] sm:$0xf]
      %v246 = vld [vmem:[%s234 + $0x40] sm:$0xf]
      %v247 = vld [vmem:[%s234 + $0x48] sm:$0xf]
      %v248 = vld [vmem:[%s234 + $0x4c] sm:$0xf]
      %v249 = vld [vmem:[%s234 + $0x54] sm:$0xf]
      %v250 = vld [vmem:[%s234 + $0x58] sm:$0xf]
      %v251 = vld [vmem:[%s234 + $0x8] sm:$0x1]
      %v252 = vld [vmem:[%s234 + $0x14] sm:$0x1]
      %v253 = vld [vmem:[%s234 + $0x20] sm:$0x1]
      %v254 = vld [vmem:[%s234 + $0x2c] sm:$0x1]
      %v255 = vld [vmem:[%s234 + $0x38] sm:$0x1]
      %v256 = vld [vmem:[%s234 + $0x44] sm:$0x1]
      %v257 = vld [vmem:[%s234 + $0x50] sm:$0x1]
      %v258 = vld [vmem:[%s234 + $0x5c] sm:$0x1]
      %v259 = vld [vmem:[%s234] sm:$0xe]
      %v260 = vld [vmem:[%s234 + $0xc] sm:$0xe]
      %v261 = vld [vmem:[%s234 + $0x18] sm:$0xe]
      %v262 = vld [vmem:[%s234 + $0x24] sm:$0xe]
      %v263 = vld [vmem:[%s234 + $0x30] sm:$0xe]
      %v264 = vld [vmem:[%s234 + $0x3c] sm:$0xe]
      %v265 = vld [vmem:[%s234 + $0x48] sm:$0xe]
      %v266 = vld [vmem:[%s234 + $0x54] sm:$0xe]
      %s267 = sadd.s32 %s195, 2
      %s268 = smul.u32 %s267, 3
      %s269 = smul.addr %s268, 4
      %s270 = scalar_lea.vmem %s183, %s269
      %v271 = vld [vmem:[%s270] sm:$0xf]
      %v272 = vld [vmem:[%s270 + $0x4] sm:$0xf]
      %v273 = vld [vmem:[%s270 + $0xc] sm:$0xf]
      %v274 = vld [vmem:[%s270 + $0x10] sm:$0xf]
      %v275 = vld [vmem:[%s270 + $0x18] sm:$0xf]
      %v276 = vld [vmem:[%s270 + $0x1c] sm:$0xf]
      %v277 = vld [vmem:[%s270 + $0x24] sm:$0xf]
      %v278 = vld [vmem:[%s270 + $0x28] sm:$0xf]
      %v279 = vld [vmem:[%s270 + $0x30] sm:$0xf]
      %v280 = vld [vmem:[%s270 + $0x34] sm:$0xf]
      %v281 = vld [vmem:[%s270 + $0x3c] sm:$0xf]
      %v282 = vld [vmem:[%s270 + $0x40] sm:$0xf]
      %v283 = vld [vmem:[%s270 + $0x48] sm:$0xf]
      %v284 = vld [vmem:[%s270 + $0x4c] sm:$0xf]
      %v285 = vld [vmem:[%s270 + $0x54] sm:$0xf]
      %v286 = vld [vmem:[%s270 + $0x58] sm:$0xf]
      %v287 = vld [vmem:[%s270 + $0x8] sm:$0x1]
      %v288 = vld [vmem:[%s270 + $0x14] sm:$0x1]
      %v289 = vld [vmem:[%s270 + $0x20] sm:$0x1]
      %v290 = vld [vmem:[%s270 + $0x2c] sm:$0x1]
      %v291 = vld [vmem:[%s270 + $0x38] sm:$0x1]
      %v292 = vld [vmem:[%s270 + $0x44] sm:$0x1]
      %v293 = vld [vmem:[%s270 + $0x50] sm:$0x1]
      %v294 = vld [vmem:[%s270 + $0x5c] sm:$0x1]
      %v295 = vld [vmem:[%s270] sm:$0xe]
      %v296 = vld [vmem:[%s270 + $0xc] sm:$0xe]
      %v297 = vld [vmem:[%s270 + $0x18] sm:$0xe]
      %v298 = vld [vmem:[%s270 + $0x24] sm:$0xe]
      %v299 = vld [vmem:[%s270 + $0x30] sm:$0xe]
      %v300 = vld [vmem:[%s270 + $0x3c] sm:$0xe]
      %v301 = vld [vmem:[%s270 + $0x48] sm:$0xe]
      %v302 = vld [vmem:[%s270 + $0x54] sm:$0xe]
      %v319 = vunpack.c.l.b16 %v199
      %v320 = vunpack.c.l.b16 %v200
      %v321 = vunpack.c.l.b16 %v201
      %v322 = vunpack.c.l.b16 %v202
      %v323 = vunpack.c.l.b16 %v203
      %v324 = vunpack.c.l.b16 %v204
      %v325 = vunpack.c.l.b16 %v205
      %v326 = vunpack.c.l.b16 %v206
      %v327 = vunpack.c.l.b16 %v207
      %v328 = vunpack.c.l.b16 %v208
      %v329 = vunpack.c.l.b16 %v209
      %v330 = vunpack.c.l.b16 %v210
      %v331 = vunpack.c.l.b16 %v211
      %v332 = vunpack.c.l.b16 %v212
      %v333 = vunpack.c.l.b16 %v213
      %v334 = vunpack.c.l.b16 %v214
      %v335 = vpack.c.b16 %v320, %v319
      %v336 = vpack.c.b16 %v322, %v321
      %v337 = vpack.c.b16 %v324, %v323
      %v338 = vpack.c.b16 %v326, %v325
      %v339 = vpack.c.b16 %v328, %v327
      %v340 = vpack.c.b16 %v330, %v329
      %v341 = vpack.c.b16 %v332, %v331
      %v342 = vpack.c.b16 %v334, %v333
      %v359 = vunpack.c.l.b16 %v215
      %v360 = vunpack.c.l.b16 %v216
      %v361 = vunpack.c.l.b16 %v217
      %v362 = vunpack.c.l.b16 %v218
      %v363 = vunpack.c.l.b16 %v219
      %v364 = vunpack.c.l.b16 %v220
      %v365 = vunpack.c.l.b16 %v221
      %v366 = vunpack.c.l.b16 %v222
      %v367 = vpack.c.b16 %v359, %v359
      %v368 = vpack.c.b16 %v360, %v360
      %v369 = vpack.c.b16 %v361, %v361
      %v370 = vpack.c.b16 %v362, %v362
      %v371 = vpack.c.b16 %v363, %v363
      %v372 = vpack.c.b16 %v364, %v364
      %v373 = vpack.c.b16 %v365, %v365
      %v374 = vpack.c.b16 %v366, %v366
      %vm375 = vsmask.f32 7424
      %v377 = vshrl.u32 %v335, 16
      %v379 = vshll.u32 %v335, 16
      %v381 = vrot.slane %v379, 1
      %v382 = vor.u32 %v377, %v381
      %v384 = vshll.u32 %v367, 16
      %v386 = vrot.slane %v384, 1
      %v387 = vsel %vm375, %v382, %v386
      %v389 = vshrl.u32 %v336, 16
      %v391 = vshll.u32 %v336, 16
      %v393 = vrot.slane %v391, 1
      %v394 = vor.u32 %v389, %v393
      %v396 = vshll.u32 %v368, 16
      %v398 = vrot.slane %v396, 1
      %v399 = vsel %vm375, %v394, %v398
      %v401 = vshrl.u32 %v337, 16
      %v403 = vshll.u32 %v337, 16
      %v405 = vrot.slane %v403, 1
      %v406 = vor.u32 %v401, %v405
      %v408 = vshll.u32 %v369, 16
      %v410 = vrot.slane %v408, 1
      %v411 = vsel %vm375, %v406, %v410
      %v413 = vshrl.u32 %v338, 16
      %v415 = vshll.u32 %v338, 16
      %v417 = vrot.slane %v415, 1
      %v418 = vor.u32 %v413, %v417
      %v420 = vshll.u32 %v370, 16
      %v422 = vrot.slane %v420, 1
      %v423 = vsel %vm375, %v418, %v422
      %v425 = vshrl.u32 %v339, 16
      %v427 = vshll.u32 %v339, 16
      %v429 = vrot.slane %v427, 1
      %v430 = vor.u32 %v425, %v429
      %v432 = vshll.u32 %v371, 16
      %v434 = vrot.slane %v432, 1
      %v435 = vsel %vm375, %v430, %v434
      %v437 = vshrl.u32 %v340, 16
      %v439 = vshll.u32 %v340, 16
      %v441 = vrot.slane %v439, 1
      %v442 = vor.u32 %v437, %v441
      %v444 = vshll.u32 %v372, 16
      %v446 = vrot.slane %v444, 1
      %v447 = vsel %vm375, %v442, %v446
      %v449 = vshrl.u32 %v341, 16
      %v451 = vshll.u32 %v341, 16
      %v453 = vrot.slane %v451, 1
      %v454 = vor.u32 %v449, %v453
      %v456 = vshll.u32 %v373, 16
      %v458 = vrot.slane %v456, 1
      %v459 = vsel %vm375, %v454, %v458
      %v461 = vshrl.u32 %v342, 16
      %v463 = vshll.u32 %v342, 16
      %v465 = vrot.slane %v463, 1
      %v466 = vor.u32 %v461, %v465
      %v468 = vshll.u32 %v374, 16
      %v470 = vrot.slane %v468, 1
      %v471 = vsel %vm375, %v466, %v470
      %v488 = vunpack.c.l.b16 %v223
      %v489 = vunpack.c.l.b16 %v224
      %v490 = vunpack.c.l.b16 %v225
      %v491 = vunpack.c.l.b16 %v226
      %v492 = vunpack.c.l.b16 %v227
      %v493 = vunpack.c.l.b16 %v228
      %v494 = vunpack.c.l.b16 %v229
      %v495 = vunpack.c.l.b16 %v230
      %v496 = vpack.c.b16 %v320, %v488
      %v497 = vpack.c.b16 %v322, %v489
      %v498 = vpack.c.b16 %v324, %v490
      %v499 = vpack.c.b16 %v326, %v491
      %v500 = vpack.c.b16 %v328, %v492
      %v501 = vpack.c.b16 %v330, %v493
      %v502 = vpack.c.b16 %v332, %v494
      %v503 = vpack.c.b16 %v334, %v495
      %vm504 = vcmask 1046528
      %v505 = vrot.slane %v496, 1
      %v506 = vrot.slane %v367, 1
      %v507 = vsel %vm504, %v505, %v506
      %v508 = vrot.slane %v497, 1
      %v509 = vrot.slane %v368, 1
      %v510 = vsel %vm504, %v508, %v509
      %v511 = vrot.slane %v498, 1
      %v512 = vrot.slane %v369, 1
      %v513 = vsel %vm504, %v511, %v512
      %v514 = vrot.slane %v499, 1
      %v515 = vrot.slane %v370, 1
      %v516 = vsel %vm504, %v514, %v515
      %v517 = vrot.slane %v500, 1
      %v518 = vrot.slane %v371, 1
      %v519 = vsel %vm504, %v517, %v518
      %v520 = vrot.slane %v501, 1
      %v521 = vrot.slane %v372, 1
      %v522 = vsel %vm504, %v520, %v521
      %v523 = vrot.slane %v502, 1
      %v524 = vrot.slane %v373, 1
      %v525 = vsel %vm504, %v523, %v524
      %v526 = vrot.slane %v503, 1
      %v527 = vrot.slane %v374, 1
      %v528 = vsel %vm504, %v526, %v527
      %v553 = vunpack.c.l.b16 %v235
      %v554 = vunpack.c.l.b16 %v236
      %v555 = vunpack.c.l.b16 %v237
      %v556 = vunpack.c.l.b16 %v238
      %v557 = vunpack.c.l.b16 %v239
      %v558 = vunpack.c.l.b16 %v240
      %v559 = vunpack.c.l.b16 %v241
      %v560 = vunpack.c.l.b16 %v242
      %v561 = vunpack.c.l.b16 %v243
      %v562 = vunpack.c.l.b16 %v244
      %v563 = vunpack.c.l.b16 %v245
      %v564 = vunpack.c.l.b16 %v246
      %v565 = vunpack.c.l.b16 %v247
      %v566 = vunpack.c.l.b16 %v248
      %v567 = vunpack.c.l.b16 %v249
      %v568 = vunpack.c.l.b16 %v250
      %v569 = vpack.c.b16 %v554, %v553
      %v570 = vpack.c.b16 %v556, %v555
      %v571 = vpack.c.b16 %v558, %v557
      %v572 = vpack.c.b16 %v560, %v559
      %v573 = vpack.c.b16 %v562, %v561
      %v574 = vpack.c.b16 %v564, %v563
      %v575 = vpack.c.b16 %v566, %v565
      %v576 = vpack.c.b16 %v568, %v567
      %v593 = vunpack.c.l.b16 %v251
      %v594 = vunpack.c.l.b16 %v252
      %v595 = vunpack.c.l.b16 %v253
      %v596 = vunpack.c.l.b16 %v254
      %v597 = vunpack.c.l.b16 %v255
      %v598 = vunpack.c.l.b16 %v256
      %v599 = vunpack.c.l.b16 %v257
      %v600 = vunpack.c.l.b16 %v258
      %v601 = vpack.c.b16 %v593, %v593
      %v602 = vpack.c.b16 %v594, %v594
      %v603 = vpack.c.b16 %v595, %v595
      %v604 = vpack.c.b16 %v596, %v596
      %v605 = vpack.c.b16 %v597, %v597
      %v606 = vpack.c.b16 %v598, %v598
      %v607 = vpack.c.b16 %v599, %v599
      %v608 = vpack.c.b16 %v600, %v600
      %v610 = vshrl.u32 %v569, 16
      %v612 = vshll.u32 %v569, 16
      %v614 = vrot.slane %v612, 1
      %v615 = vor.u32 %v610, %v614
      %v617 = vshll.u32 %v601, 16
      %v619 = vrot.slane %v617, 1
      %v620 = vsel %vm375, %v615, %v619
      %v622 = vshrl.u32 %v570, 16
      %v624 = vshll.u32 %v570, 16
      %v626 = vrot.slane %v624, 1
      %v627 = vor.u32 %v622, %v626
      %v629 = vshll.u32 %v602, 16
      %v631 = vrot.slane %v629, 1
      %v632 = vsel %vm375, %v627, %v631
      %v634 = vshrl.u32 %v571, 16
      %v636 = vshll.u32 %v571, 16
      %v638 = vrot.slane %v636, 1
      %v639 = vor.u32 %v634, %v638
      %v641 = vshll.u32 %v603, 16
      %v643 = vrot.slane %v641, 1
      %v644 = vsel %vm375, %v639, %v643
      %v646 = vshrl.u32 %v572, 16
      %v648 = vshll.u32 %v572, 16
      %v650 = vrot.slane %v648, 1
      %v651 = vor.u32 %v646, %v650
      %v653 = vshll.u32 %v604, 16
      %v655 = vrot.slane %v653, 1
      %v656 = vsel %vm375, %v651, %v655
      %v658 = vshrl.u32 %v573, 16
      %v660 = vshll.u32 %v573, 16
      %v662 = vrot.slane %v660, 1
      %v663 = vor.u32 %v658, %v662
      %v665 = vshll.u32 %v605, 16
      %v667 = vrot.slane %v665, 1
      %v668 = vsel %vm375, %v663, %v667
      %v670 = vshrl.u32 %v574, 16
      %v672 = vshll.u32 %v574, 16
      %v674 = vrot.slane %v672, 1
      %v675 = vor.u32 %v670, %v674
      %v677 = vshll.u32 %v606, 16
      %v679 = vrot.slane %v677, 1
      %v680 = vsel %vm375, %v675, %v679
      %v682 = vshrl.u32 %v575, 16
      %v684 = vshll.u32 %v575, 16
      %v686 = vrot.slane %v684, 1
      %v687 = vor.u32 %v682, %v686
      %v689 = vshll.u32 %v607, 16
      %v691 = vrot.slane %v689, 1
      %v692 = vsel %vm375, %v687, %v691
      %v694 = vshrl.u32 %v576, 16
      %v696 = vshll.u32 %v576, 16
      %v698 = vrot.slane %v696, 1
      %v699 = vor.u32 %v694, %v698
      %v701 = vshll.u32 %v608, 16
      %v703 = vrot.slane %v701, 1
      %v704 = vsel %vm375, %v699, %v703
      %v721 = vunpack.c.l.b16 %v259
      %v722 = vunpack.c.l.b16 %v260
      %v723 = vunpack.c.l.b16 %v261
      %v724 = vunpack.c.l.b16 %v262
      %v725 = vunpack.c.l.b16 %v263
      %v726 = vunpack.c.l.b16 %v264
      %v727 = vunpack.c.l.b16 %v265
      %v728 = vunpack.c.l.b16 %v266
      %v729 = vpack.c.b16 %v554, %v721
      %v730 = vpack.c.b16 %v556, %v722
      %v731 = vpack.c.b16 %v558, %v723
      %v732 = vpack.c.b16 %v560, %v724
      %v733 = vpack.c.b16 %v562, %v725
      %v734 = vpack.c.b16 %v564, %v726
      %v735 = vpack.c.b16 %v566, %v727
      %v736 = vpack.c.b16 %v568, %v728
      %v737 = vrot.slane %v729, 1
      %v738 = vrot.slane %v601, 1
      %v739 = vsel %vm504, %v737, %v738
      %v740 = vrot.slane %v730, 1
      %v741 = vrot.slane %v602, 1
      %v742 = vsel %vm504, %v740, %v741
      %v743 = vrot.slane %v731, 1
      %v744 = vrot.slane %v603, 1
      %v745 = vsel %vm504, %v743, %v744
      %v746 = vrot.slane %v732, 1
      %v747 = vrot.slane %v604, 1
      %v748 = vsel %vm504, %v746, %v747
      %v749 = vrot.slane %v733, 1
      %v750 = vrot.slane %v605, 1
      %v751 = vsel %vm504, %v749, %v750
      %v752 = vrot.slane %v734, 1
      %v753 = vrot.slane %v606, 1
      %v754 = vsel %vm504, %v752, %v753
      %v755 = vrot.slane %v735, 1
      %v756 = vrot.slane %v607, 1
      %v757 = vsel %vm504, %v755, %v756
      %v758 = vrot.slane %v736, 1
      %v759 = vrot.slane %v608, 1
      %v760 = vsel %vm504, %v758, %v759
      %v785 = vunpack.c.l.b16 %v271
      %v786 = vunpack.c.l.b16 %v272
      %v787 = vunpack.c.l.b16 %v273
      %v788 = vunpack.c.l.b16 %v274
      %v789 = vunpack.c.l.b16 %v275
      %v790 = vunpack.c.l.b16 %v276
      %v791 = vunpack.c.l.b16 %v277
      %v792 = vunpack.c.l.b16 %v278
      %v793 = vunpack.c.l.b16 %v279
      %v794 = vunpack.c.l.b16 %v280
      %v795 = vunpack.c.l.b16 %v281
      %v796 = vunpack.c.l.b16 %v282
      %v797 = vunpack.c.l.b16 %v283
      %v798 = vunpack.c.l.b16 %v284
      %v799 = vunpack.c.l.b16 %v285
      %v800 = vunpack.c.l.b16 %v286
      %v801 = vpack.c.b16 %v786, %v785
      %v802 = vpack.c.b16 %v788, %v787
      %v803 = vpack.c.b16 %v790, %v789
      %v804 = vpack.c.b16 %v792, %v791
      %v805 = vpack.c.b16 %v794, %v793
      %v806 = vpack.c.b16 %v796, %v795
      %v807 = vpack.c.b16 %v798, %v797
      %v808 = vpack.c.b16 %v800, %v799
      %v825 = vunpack.c.l.b16 %v287
      %v826 = vunpack.c.l.b16 %v288
      %v827 = vunpack.c.l.b16 %v289
      %v828 = vunpack.c.l.b16 %v290
      %v829 = vunpack.c.l.b16 %v291
      %v830 = vunpack.c.l.b16 %v292
      %v831 = vunpack.c.l.b16 %v293
      %v832 = vunpack.c.l.b16 %v294
      %v833 = vpack.c.b16 %v825, %v825
      %v834 = vpack.c.b16 %v826, %v826
      %v835 = vpack.c.b16 %v827, %v827
      %v836 = vpack.c.b16 %v828, %v828
      %v837 = vpack.c.b16 %v829, %v829
      %v838 = vpack.c.b16 %v830, %v830
      %v839 = vpack.c.b16 %v831, %v831
      %v840 = vpack.c.b16 %v832, %v832
      %v842 = vshrl.u32 %v801, 16
      %v844 = vshll.u32 %v801, 16
      %v846 = vrot.slane %v844, 1
      %v847 = vor.u32 %v842, %v846
      %v849 = vshll.u32 %v833, 16
      %v851 = vrot.slane %v849, 1
      %v852 = vsel %vm375, %v847, %v851
      %v854 = vshrl.u32 %v802, 16
      %v856 = vshll.u32 %v802, 16
      %v858 = vrot.slane %v856, 1
      %v859 = vor.u32 %v854, %v858
      %v861 = vshll.u32 %v834, 16
      %v863 = vrot.slane %v861, 1
      %v864 = vsel %vm375, %v859, %v863
      %v866 = vshrl.u32 %v803, 16
      %v868 = vshll.u32 %v803, 16
      %v870 = vrot.slane %v868, 1
      %v871 = vor.u32 %v866, %v870
      %v873 = vshll.u32 %v835, 16
      %v875 = vrot.slane %v873, 1
      %v876 = vsel %vm375, %v871, %v875
      %v878 = vshrl.u32 %v804, 16
      %v880 = vshll.u32 %v804, 16
      %v882 = vrot.slane %v880, 1
      %v883 = vor.u32 %v878, %v882
      %v885 = vshll.u32 %v836, 16
      %v887 = vrot.slane %v885, 1
      %v888 = vsel %vm375, %v883, %v887
      %v890 = vshrl.u32 %v805, 16
      %v892 = vshll.u32 %v805, 16
      %v894 = vrot.slane %v892, 1
      %v895 = vor.u32 %v890, %v894
      %v897 = vshll.u32 %v837, 16
      %v899 = vrot.slane %v897, 1
      %v900 = vsel %vm375, %v895, %v899
      %v902 = vshrl.u32 %v806, 16
      %v904 = vshll.u32 %v806, 16
      %v906 = vrot.slane %v904, 1
      %v907 = vor.u32 %v902, %v906
      %v909 = vshll.u32 %v838, 16
      %v911 = vrot.slane %v909, 1
      %v912 = vsel %vm375, %v907, %v911
      %v914 = vshrl.u32 %v807, 16
      %v916 = vshll.u32 %v807, 16
      %v918 = vrot.slane %v916, 1
      %v919 = vor.u32 %v914, %v918
      %v921 = vshll.u32 %v839, 16
      %v923 = vrot.slane %v921, 1
      %v924 = vsel %vm375, %v919, %v923
      %v926 = vshrl.u32 %v808, 16
      %v928 = vshll.u32 %v808, 16
      %v930 = vrot.slane %v928, 1
      %v931 = vor.u32 %v926, %v930
      %v933 = vshll.u32 %v840, 16
      %v935 = vrot.slane %v933, 1
      %v936 = vsel %vm375, %v931, %v935
      %v953 = vunpack.c.l.b16 %v295
      %v954 = vunpack.c.l.b16 %v296
      %v955 = vunpack.c.l.b16 %v297
      %v956 = vunpack.c.l.b16 %v298
      %v957 = vunpack.c.l.b16 %v299
      %v958 = vunpack.c.l.b16 %v300
      %v959 = vunpack.c.l.b16 %v301
      %v960 = vunpack.c.l.b16 %v302
      %v961 = vpack.c.b16 %v786, %v953
      %v962 = vpack.c.b16 %v788, %v954
      %v963 = vpack.c.b16 %v790, %v955
      %v964 = vpack.c.b16 %v792, %v956
      %v965 = vpack.c.b16 %v794, %v957
      %v966 = vpack.c.b16 %v796, %v958
      %v967 = vpack.c.b16 %v798, %v959
      %v968 = vpack.c.b16 %v800, %v960
      %v969 = vrot.slane %v961, 1
      %v970 = vrot.slane %v833, 1
      %v971 = vsel %vm504, %v969, %v970
      %v972 = vrot.slane %v962, 1
      %v973 = vrot.slane %v834, 1
      %v974 = vsel %vm504, %v972, %v973
      %v975 = vrot.slane %v963, 1
      %v976 = vrot.slane %v835, 1
      %v977 = vsel %vm504, %v975, %v976
      %v978 = vrot.slane %v964, 1
      %v979 = vrot.slane %v836, 1
      %v980 = vsel %vm504, %v978, %v979
      %v981 = vrot.slane %v965, 1
      %v982 = vrot.slane %v837, 1
      %v983 = vsel %vm504, %v981, %v982
      %v984 = vrot.slane %v966, 1
      %v985 = vrot.slane %v838, 1
      %v986 = vsel %vm504, %v984, %v985
      %v987 = vrot.slane %v967, 1
      %v988 = vrot.slane %v839, 1
      %v989 = vsel %vm504, %v987, %v988
      %v990 = vrot.slane %v968, 1
      %v991 = vrot.slane %v840, 1
      %v992 = vsel %vm504, %v990, %v991
      %v1001 = vld [vmem:[%s1] sm:$0xf]
      %v1002 = vld [vmem:[%s1 + $0x4] sm:$0xf]
      %v1003 = vld [vmem:[%s1 + $0x8] sm:$0xf]
      %v1004 = vld [vmem:[%s1 + $0xc] sm:$0xf]
      %v1005 = vld [vmem:[%s1 + $0x10] sm:$0xf]
      %v1006 = vld [vmem:[%s1 + $0x14] sm:$0xf]
      %v1007 = vld [vmem:[%s1 + $0x18] sm:$0xf]
      %v1008 = vld [vmem:[%s1 + $0x1c] sm:$0xf]
      %v1009 = vld [vmem:[%s1 + $0x20] sm:$0xf]
      %v1010 = vld [vmem:[%s1 + $0x24] sm:$0xf]
      %v1011 = vld [vmem:[%s1 + $0x28] sm:$0xf]
      %v1012 = vld [vmem:[%s1 + $0x2c] sm:$0xf]
      %v1013 = vld [vmem:[%s1 + $0x30] sm:$0xf]
      %v1014 = vld [vmem:[%s1 + $0x34] sm:$0xf]
      %v1015 = vld [vmem:[%s1 + $0x38] sm:$0xf]
      %v1016 = vld [vmem:[%s1 + $0x3c] sm:$0xf]
      %v1017 = vld [vmem:[%s1 + $0x40] sm:$0xf]
      %v1018 = vld [vmem:[%s1 + $0x44] sm:$0xf]
      %v1019 = vld [vmem:[%s1 + $0x48] sm:$0xf]
      %v1020 = vld [vmem:[%s1 + $0x4c] sm:$0xf]
      %v1021 = vld [vmem:[%s1 + $0x50] sm:$0xf]
      %v1022 = vld [vmem:[%s1 + $0x54] sm:$0xf]
      %v1023 = vld [vmem:[%s1 + $0x58] sm:$0xf]
      %v1024 = vld [vmem:[%s1 + $0x5c] sm:$0xf]
      %v1025 = vld [vmem:[%s1 + $0x60] sm:$0xf]
      %v1026 = vld [vmem:[%s1 + $0x64] sm:$0xf]
      %v1027 = vld [vmem:[%s1 + $0x68] sm:$0xf]
      %v1028 = vld [vmem:[%s1 + $0x6c] sm:$0xf]
      %v1029 = vld [vmem:[%s1 + $0x70] sm:$0xf]
      %v1030 = vld [vmem:[%s1 + $0x74] sm:$0xf]
      %v1031 = vld [vmem:[%s1 + $0x78] sm:$0xf]
      %v1032 = vld [vmem:[%s1 + $0x7c] sm:$0xf]
      %v1033 = vld [vmem:[%s1 + $0x80] sm:$0xf]
      %v1034 = vld [vmem:[%s1 + $0x84] sm:$0xf]
      %v1035 = vld [vmem:[%s1 + $0x88] sm:$0xf]
      %v1036 = vld [vmem:[%s1 + $0x8c] sm:$0xf]
      %v1037 = vld [vmem:[%s1 + $0x90] sm:$0xf]
      %v1038 = vld [vmem:[%s1 + $0x94] sm:$0xf]
      %v1039 = vld [vmem:[%s1 + $0x98] sm:$0xf]
      %v1040 = vld [vmem:[%s1 + $0x9c] sm:$0xf]
      %v1041 = vld [vmem:[%s1 + $0xa0] sm:$0xf]
      %v1042 = vld [vmem:[%s1 + $0xa4] sm:$0xf]
      %v1043 = vld [vmem:[%s1 + $0xa8] sm:$0xf]
      %v1044 = vld [vmem:[%s1 + $0xac] sm:$0xf]
      %v1045 = vld [vmem:[%s1 + $0xb0] sm:$0xf]
      %v1046 = vld [vmem:[%s1 + $0xb4] sm:$0xf]
      %v1047 = vld [vmem:[%s1 + $0xb8] sm:$0xf]
      %v1048 = vld [vmem:[%s1 + $0xbc] sm:$0xf]
      %v1049 = vld [vmem:[%s1 + $0xc0] sm:$0xf]
      %v1050 = vld [vmem:[%s1 + $0xc4] sm:$0xf]
      %v1051 = vld [vmem:[%s1 + $0xc8] sm:$0xf]
      %v1052 = vld [vmem:[%s1 + $0xcc] sm:$0xf]
      %v1053 = vld [vmem:[%s1 + $0xd0] sm:$0xf]
      %v1054 = vld [vmem:[%s1 + $0xd4] sm:$0xf]
      %v1055 = vld [vmem:[%s1 + $0xd8] sm:$0xf]
      %v1056 = vld [vmem:[%s1 + $0xdc] sm:$0xf]
      %v1057 = vld [vmem:[%s1 + $0xe0] sm:$0xf]
      %v1058 = vld [vmem:[%s1 + $0xe4] sm:$0xf]
      %v1059 = vld [vmem:[%s1 + $0xe8] sm:$0xf]
      %v1060 = vld [vmem:[%s1 + $0xec] sm:$0xf]
      %v1061 = vld [vmem:[%s1 + $0xf0] sm:$0xf]
      %v1062 = vld [vmem:[%s1 + $0xf4] sm:$0xf]
      %v1063 = vld [vmem:[%s1 + $0xf8] sm:$0xf]
      %v1064 = vld [vmem:[%s1 + $0xfc] sm:$0xf]
      %v1065 = vld [vmem:[%s1 + $0x100] sm:$0xf]
      %v1066 = vld [vmem:[%s1 + $0x104] sm:$0xf]
      %v1067 = vld [vmem:[%s1 + $0x108] sm:$0xf]
      %v1068 = vld [vmem:[%s1 + $0x10c] sm:$0xf]
      %v1069 = vld [vmem:[%s1 + $0x110] sm:$0xf]
      %v1070 = vld [vmem:[%s1 + $0x114] sm:$0xf]
      %v1071 = vld [vmem:[%s1 + $0x118] sm:$0xf]
      %v1072 = vld [vmem:[%s1 + $0x11c] sm:$0xf]
      %v1073 = vld [vmem:[%s1 + $0x120] sm:$0xf]
      %v1074 = vld [vmem:[%s1 + $0x124] sm:$0xf]
      %v1075 = vld [vmem:[%s1 + $0x128] sm:$0xf]
      %v1076 = vld [vmem:[%s1 + $0x12c] sm:$0xf]
      %v1077 = vld [vmem:[%s1 + $0x130] sm:$0xf]
      %v1078 = vld [vmem:[%s1 + $0x134] sm:$0xf]
      %v1079 = vld [vmem:[%s1 + $0x138] sm:$0xf]
      %v1080 = vld [vmem:[%s1 + $0x13c] sm:$0xf]
      %v1081 = vld [vmem:[%s1 + $0x140] sm:$0xf]
      %v1082 = vld [vmem:[%s1 + $0x144] sm:$0xf]
      %v1083 = vld [vmem:[%s1 + $0x148] sm:$0xf]
      %v1084 = vld [vmem:[%s1 + $0x14c] sm:$0xf]
      %v1085 = vld [vmem:[%s1 + $0x150] sm:$0xf]
      %v1086 = vld [vmem:[%s1 + $0x154] sm:$0xf]
      %v1087 = vld [vmem:[%s1 + $0x158] sm:$0xf]
      %v1088 = vld [vmem:[%s1 + $0x15c] sm:$0xf]
      %v1089 = vld [vmem:[%s1 + $0x160] sm:$0xf]
      %v1090 = vld [vmem:[%s1 + $0x164] sm:$0xf]
      %v1091 = vld [vmem:[%s1 + $0x168] sm:$0xf]
      %v1092 = vld [vmem:[%s1 + $0x16c] sm:$0xf]
      %v1093 = vld [vmem:[%s1 + $0x170] sm:$0xf]
      %v1094 = vld [vmem:[%s1 + $0x174] sm:$0xf]
      %v1095 = vld [vmem:[%s1 + $0x178] sm:$0xf]
      %v1096 = vld [vmem:[%s1 + $0x17c] sm:$0xf]
      %v1097 = vld [vmem:[%s1 + $0x180] sm:$0xf]
      %v1098 = vld [vmem:[%s1 + $0x184] sm:$0xf]
      %v1099 = vld [vmem:[%s1 + $0x188] sm:$0xf]
      %v1100 = vld [vmem:[%s1 + $0x18c] sm:$0xf]
      %v1101 = vld [vmem:[%s1 + $0x190] sm:$0xf]
      %v1102 = vld [vmem:[%s1 + $0x194] sm:$0xf]
      %v1103 = vld [vmem:[%s1 + $0x198] sm:$0xf]
      %v1104 = vld [vmem:[%s1 + $0x19c] sm:$0xf]
      %v1105 = vld [vmem:[%s1 + $0x1a0] sm:$0xf]
      %v1106 = vld [vmem:[%s1 + $0x1a4] sm:$0xf]
      %v1107 = vld [vmem:[%s1 + $0x1a8] sm:$0xf]
      %v1108 = vld [vmem:[%s1 + $0x1ac] sm:$0xf]
      %v1109 = vld [vmem:[%s1 + $0x1b0] sm:$0xf]
      %v1110 = vld [vmem:[%s1 + $0x1b4] sm:$0xf]
      %v1111 = vld [vmem:[%s1 + $0x1b8] sm:$0xf]
      %v1112 = vld [vmem:[%s1 + $0x1bc] sm:$0xf]
      %v1113 = vld [vmem:[%s1 + $0x1c0] sm:$0xf]
      %v1114 = vld [vmem:[%s1 + $0x1c4] sm:$0xf]
      %v1115 = vld [vmem:[%s1 + $0x1c8] sm:$0xf]
      %v1116 = vld [vmem:[%s1 + $0x1cc] sm:$0xf]
      %v1117 = vld [vmem:[%s1 + $0x1d0] sm:$0xf]
      %v1118 = vld [vmem:[%s1 + $0x1d4] sm:$0xf]
      %v1119 = vld [vmem:[%s1 + $0x1d8] sm:$0xf]
      %v1120 = vld [vmem:[%s1 + $0x1dc] sm:$0xf]
      %v1121 = vld [vmem:[%s1 + $0x1e0] sm:$0xf]
      %v1122 = vld [vmem:[%s1 + $0x1e4] sm:$0xf]
      %v1123 = vld [vmem:[%s1 + $0x1e8] sm:$0xf]
      %v1124 = vld [vmem:[%s1 + $0x1ec] sm:$0xf]
      %v1125 = vld [vmem:[%s1 + $0x1f0] sm:$0xf]
      %v1126 = vld [vmem:[%s1 + $0x1f4] sm:$0xf]
      %v1127 = vld [vmem:[%s1 + $0x1f8] sm:$0xf]
      %v1128 = vld [vmem:[%s1 + $0x1fc] sm:$0xf]
      %v1129 = vld [vmem:[%s1 + $0x200] sm:$0xf]
      %v1130 = vld [vmem:[%s1 + $0x204] sm:$0xf]
      %v1131 = vld [vmem:[%s1 + $0x208] sm:$0xf]
      %v1132 = vld [vmem:[%s1 + $0x20c] sm:$0xf]
      %v1133 = vld [vmem:[%s1 + $0x210] sm:$0xf]
      %v1134 = vld [vmem:[%s1 + $0x214] sm:$0xf]
      %v1135 = vld [vmem:[%s1 + $0x218] sm:$0xf]
      %v1136 = vld [vmem:[%s1 + $0x21c] sm:$0xf]
      %v1137 = vld [vmem:[%s1 + $0x220] sm:$0xf]
      %v1138 = vld [vmem:[%s1 + $0x224] sm:$0xf]
      %v1139 = vld [vmem:[%s1 + $0x228] sm:$0xf]
      %v1140 = vld [vmem:[%s1 + $0x22c] sm:$0xf]
      %v1141 = vld [vmem:[%s1 + $0x230] sm:$0xf]
      %v1142 = vld [vmem:[%s1 + $0x234] sm:$0xf]
      %v1143 = vld [vmem:[%s1 + $0x238] sm:$0xf]
      %v1144 = vld [vmem:[%s1 + $0x23c] sm:$0xf]
      %v1145 = vld [vmem:[%s2] sm:$0x1]
      %v1147 = vlaneseq
      %v1148 = vshrl.u32 %v1147, 7
      %v1149 = vsub.s32 0, %v1148
      %v1150 = vrot.slane %v1145, %v1149
      %v1296 = vunpack.c.l.b16 %v1001
      %v1297 = vunpack.c.l.b16 %v1002
      %v1298 = vunpack.c.l.b16 %v1003
      %v1299 = vunpack.c.l.b16 %v1004
      %v1300 = vunpack.c.l.b16 %v1005
      %v1301 = vunpack.c.l.b16 %v1006
      %v1302 = vunpack.c.l.b16 %v1007
      %v1303 = vunpack.c.l.b16 %v1008
      %v1304 = vunpack.c.l.b16 %v1009
      %v1305 = vunpack.c.l.b16 %v1010
      %v1306 = vunpack.c.l.b16 %v1011
      %v1307 = vunpack.c.l.b16 %v1012
      %v1308 = vunpack.c.l.b16 %v1013
      %v1309 = vunpack.c.l.b16 %v1014
      %v1310 = vunpack.c.l.b16 %v1015
      %v1311 = vunpack.c.l.b16 %v1016
      %v1312 = vunpack.c.l.b16 %v1017
      %v1313 = vunpack.c.l.b16 %v1018
      %v1314 = vunpack.c.l.b16 %v1019
      %v1315 = vunpack.c.l.b16 %v1020
      %v1316 = vunpack.c.l.b16 %v1021
      %v1317 = vunpack.c.l.b16 %v1022
      %v1318 = vunpack.c.l.b16 %v1023
      %v1319 = vunpack.c.l.b16 %v1024
      %v1320 = vunpack.c.l.b16 %v1025
      %v1321 = vunpack.c.l.b16 %v1026
      %v1322 = vunpack.c.l.b16 %v1027
      %v1323 = vunpack.c.l.b16 %v1028
      %v1324 = vunpack.c.l.b16 %v1029
      %v1325 = vunpack.c.l.b16 %v1030
      %v1326 = vunpack.c.l.b16 %v1031
      %v1327 = vunpack.c.l.b16 %v1032
      %v1328 = vunpack.c.l.b16 %v1033
      %v1329 = vunpack.c.l.b16 %v1034
      %v1330 = vunpack.c.l.b16 %v1035
      %v1331 = vunpack.c.l.b16 %v1036
      %v1332 = vunpack.c.l.b16 %v1037
      %v1333 = vunpack.c.l.b16 %v1038
      %v1334 = vunpack.c.l.b16 %v1039
      %v1335 = vunpack.c.l.b16 %v1040
      %v1336 = vunpack.c.l.b16 %v1041
      %v1337 = vunpack.c.l.b16 %v1042
      %v1338 = vunpack.c.l.b16 %v1043
      %v1339 = vunpack.c.l.b16 %v1044
      %v1340 = vunpack.c.l.b16 %v1045
      %v1341 = vunpack.c.l.b16 %v1046
      %v1342 = vunpack.c.l.b16 %v1047
      %v1343 = vunpack.c.l.b16 %v1048
      %v1344 = vunpack.c.l.b16 %v1049
      %v1345 = vunpack.c.l.b16 %v1050
      %v1346 = vunpack.c.l.b16 %v1051
      %v1347 = vunpack.c.l.b16 %v1052
      %v1348 = vunpack.c.l.b16 %v1053
      %v1349 = vunpack.c.l.b16 %v1054
      %v1350 = vunpack.c.l.b16 %v1055
      %v1351 = vunpack.c.l.b16 %v1056
      %v1352 = vunpack.c.l.b16 %v1057
      %v1353 = vunpack.c.l.b16 %v1058
      %v1354 = vunpack.c.l.b16 %v1059
      %v1355 = vunpack.c.l.b16 %v1060
      %v1356 = vunpack.c.l.b16 %v1061
      %v1357 = vunpack.c.l.b16 %v1062
      %v1358 = vunpack.c.l.b16 %v1063
      %v1359 = vunpack.c.l.b16 %v1064
      %v1360 = vunpack.c.l.b16 %v1065
      %v1361 = vunpack.c.l.b16 %v1066
      %v1362 = vunpack.c.l.b16 %v1067
      %v1363 = vunpack.c.l.b16 %v1068
      %v1364 = vunpack.c.l.b16 %v1069
      %v1365 = vunpack.c.l.b16 %v1070
      %v1366 = vunpack.c.l.b16 %v1071
      %v1367 = vunpack.c.l.b16 %v1072
      %v1368 = vunpack.c.l.b16 %v1073
      %v1369 = vunpack.c.l.b16 %v1074
      %v1370 = vunpack.c.l.b16 %v1075
      %v1371 = vunpack.c.l.b16 %v1076
      %v1372 = vunpack.c.l.b16 %v1077
      %v1373 = vunpack.c.l.b16 %v1078
      %v1374 = vunpack.c.l.b16 %v1079
      %v1375 = vunpack.c.l.b16 %v1080
      %v1376 = vunpack.c.l.b16 %v1081
      %v1377 = vunpack.c.l.b16 %v1082
      %v1378 = vunpack.c.l.b16 %v1083
      %v1379 = vunpack.c.l.b16 %v1084
      %v1380 = vunpack.c.l.b16 %v1085
      %v1381 = vunpack.c.l.b16 %v1086
      %v1382 = vunpack.c.l.b16 %v1087
      %v1383 = vunpack.c.l.b16 %v1088
      %v1384 = vunpack.c.l.b16 %v1089
      %v1385 = vunpack.c.l.b16 %v1090
      %v1386 = vunpack.c.l.b16 %v1091
      %v1387 = vunpack.c.l.b16 %v1092
      %v1388 = vunpack.c.l.b16 %v1093
      %v1389 = vunpack.c.l.b16 %v1094
      %v1390 = vunpack.c.l.b16 %v1095
      %v1391 = vunpack.c.l.b16 %v1096
      %v1392 = vunpack.c.l.b16 %v1097
      %v1393 = vunpack.c.l.b16 %v1098
      %v1394 = vunpack.c.l.b16 %v1099
      %v1395 = vunpack.c.l.b16 %v1100
      %v1396 = vunpack.c.l.b16 %v1101
      %v1397 = vunpack.c.l.b16 %v1102
      %v1398 = vunpack.c.l.b16 %v1103
      %v1399 = vunpack.c.l.b16 %v1104
      %v1400 = vunpack.c.l.b16 %v1105
      %v1401 = vunpack.c.l.b16 %v1106
      %v1402 = vunpack.c.l.b16 %v1107
      %v1403 = vunpack.c.l.b16 %v1108
      %v1404 = vunpack.c.l.b16 %v1109
      %v1405 = vunpack.c.l.b16 %v1110
      %v1406 = vunpack.c.l.b16 %v1111
      %v1407 = vunpack.c.l.b16 %v1112
      %v1408 = vunpack.c.l.b16 %v1113
      %v1409 = vunpack.c.l.b16 %v1114
      %v1410 = vunpack.c.l.b16 %v1115
      %v1411 = vunpack.c.l.b16 %v1116
      %v1412 = vunpack.c.l.b16 %v1117
      %v1413 = vunpack.c.l.b16 %v1118
      %v1414 = vunpack.c.l.b16 %v1119
      %v1415 = vunpack.c.l.b16 %v1120
      %v1416 = vunpack.c.l.b16 %v1121
      %v1417 = vunpack.c.l.b16 %v1122
      %v1418 = vunpack.c.l.b16 %v1123
      %v1419 = vunpack.c.l.b16 %v1124
      %v1420 = vunpack.c.l.b16 %v1125
      %v1421 = vunpack.c.l.b16 %v1126
      %v1422 = vunpack.c.l.b16 %v1127
      %v1423 = vunpack.c.l.b16 %v1128
      %v1424 = vunpack.c.l.b16 %v1129
      %v1425 = vunpack.c.l.b16 %v1130
      %v1426 = vunpack.c.l.b16 %v1131
      %v1427 = vunpack.c.l.b16 %v1132
      %v1428 = vunpack.c.l.b16 %v1133
      %v1429 = vunpack.c.l.b16 %v1134
      %v1430 = vunpack.c.l.b16 %v1135
      %v1431 = vunpack.c.l.b16 %v1136
      %v1432 = vunpack.c.l.b16 %v1137
      %v1433 = vunpack.c.l.b16 %v1138
      %v1434 = vunpack.c.l.b16 %v1139
      %v1435 = vunpack.c.l.b16 %v1140
      %v1436 = vunpack.c.l.b16 %v1141
      %v1437 = vunpack.c.l.b16 %v1142
      %v1438 = vunpack.c.l.b16 %v1143
      %v1439 = vunpack.c.l.b16 %v1144
      %v1440 = vpack.c.b16 %v1297, %v1296
      %v1441 = vpack.c.b16 %v1299, %v1298
      %v1442 = vpack.c.b16 %v1301, %v1300
      %v1443 = vpack.c.b16 %v1303, %v1302
      %v1444 = vpack.c.b16 %v1305, %v1304
      %v1445 = vpack.c.b16 %v1307, %v1306
      %v1446 = vpack.c.b16 %v1309, %v1308
      %v1447 = vpack.c.b16 %v1311, %v1310
      %v1448 = vpack.c.b16 %v1313, %v1312
      %v1449 = vpack.c.b16 %v1315, %v1314
      %v1450 = vpack.c.b16 %v1317, %v1316
      %v1451 = vpack.c.b16 %v1319, %v1318
      %v1452 = vpack.c.b16 %v1321, %v1320
      %v1453 = vpack.c.b16 %v1323, %v1322
      %v1454 = vpack.c.b16 %v1325, %v1324
      %v1455 = vpack.c.b16 %v1327, %v1326
      %v1456 = vpack.c.b16 %v1329, %v1328
      %v1457 = vpack.c.b16 %v1331, %v1330
      %v1458 = vpack.c.b16 %v1333, %v1332
      %v1459 = vpack.c.b16 %v1335, %v1334
      %v1460 = vpack.c.b16 %v1337, %v1336
      %v1461 = vpack.c.b16 %v1339, %v1338
      %v1462 = vpack.c.b16 %v1341, %v1340
      %v1463 = vpack.c.b16 %v1343, %v1342
      %v1464 = vpack.c.b16 %v1345, %v1344
      %v1465 = vpack.c.b16 %v1347, %v1346
      %v1466 = vpack.c.b16 %v1349, %v1348
      %v1467 = vpack.c.b16 %v1351, %v1350
      %v1468 = vpack.c.b16 %v1353, %v1352
      %v1469 = vpack.c.b16 %v1355, %v1354
      %v1470 = vpack.c.b16 %v1357, %v1356
      %v1471 = vpack.c.b16 %v1359, %v1358
      %v1472 = vpack.c.b16 %v1361, %v1360
      %v1473 = vpack.c.b16 %v1363, %v1362
      %v1474 = vpack.c.b16 %v1365, %v1364
      %v1475 = vpack.c.b16 %v1367, %v1366
      %v1476 = vpack.c.b16 %v1369, %v1368
      %v1477 = vpack.c.b16 %v1371, %v1370
      %v1478 = vpack.c.b16 %v1373, %v1372
      %v1479 = vpack.c.b16 %v1375, %v1374
      %v1480 = vpack.c.b16 %v1377, %v1376
      %v1481 = vpack.c.b16 %v1379, %v1378
      %v1482 = vpack.c.b16 %v1381, %v1380
      %v1483 = vpack.c.b16 %v1383, %v1382
      %v1484 = vpack.c.b16 %v1385, %v1384
      %v1485 = vpack.c.b16 %v1387, %v1386
      %v1486 = vpack.c.b16 %v1389, %v1388
      %v1487 = vpack.c.b16 %v1391, %v1390
      %v1488 = vpack.c.b16 %v1393, %v1392
      %v1489 = vpack.c.b16 %v1395, %v1394
      %v1490 = vpack.c.b16 %v1397, %v1396
      %v1491 = vpack.c.b16 %v1399, %v1398
      %v1492 = vpack.c.b16 %v1401, %v1400
      %v1493 = vpack.c.b16 %v1403, %v1402
      %v1494 = vpack.c.b16 %v1405, %v1404
      %v1495 = vpack.c.b16 %v1407, %v1406
      %v1496 = vpack.c.b16 %v1409, %v1408
      %v1497 = vpack.c.b16 %v1411, %v1410
      %v1498 = vpack.c.b16 %v1413, %v1412
      %v1499 = vpack.c.b16 %v1415, %v1414
      %v1500 = vpack.c.b16 %v1417, %v1416
      %v1501 = vpack.c.b16 %v1419, %v1418
      %v1502 = vpack.c.b16 %v1421, %v1420
      %v1503 = vpack.c.b16 %v1423, %v1422
      %v1504 = vpack.c.b16 %v1425, %v1424
      %v1505 = vpack.c.b16 %v1427, %v1426
      %v1506 = vpack.c.b16 %v1429, %v1428
      %v1507 = vpack.c.b16 %v1431, %v1430
      %v1508 = vpack.c.b16 %v1433, %v1432
      %v1509 = vpack.c.b16 %v1435, %v1434
      %v1510 = vpack.c.b16 %v1437, %v1436
      %v1511 = vpack.c.b16 %v1439, %v1438
      %1584 = vmatprep.subr.bf16.mxu0 0
      %1585 = vmatpush1.bf16.msra.mxu0 %v1440
      %1586 = vmatprep.subr.bf16.mxu0 0
      %1587 = vmatpush1.bf16.msra.mxu0 %v1441
      %1588 = vmatprep.subr.bf16.mxu0 0
      %1589 = vmatpush1.bf16.msra.mxu0 %v1442
      %1590 = vmatprep.subr.bf16.mxu0 0
      %1591 = vmatpush1.bf16.msra.mxu0 %v1443
      %1592 = vmatprep.subr.bf16.mxu0 0
      %1593 = vmatpush1.bf16.msra.mxu0 %v1444
      %1594 = vmatprep.subr.bf16.mxu0 0
      %1595 = vmatpush1.bf16.msra.mxu0 %v1445
      %1596 = vmatprep.subr.bf16.mxu0 0
      %1597 = vmatpush1.bf16.msra.mxu0 %v1446
      %1598 = vmatprep.subr.bf16.mxu0 0
      %1599 = vmatpush1.bf16.msra.mxu0 %v1447
      %1600 = vmatprep.subr.bf16.mxu0 0
      %1601 = vmatpush1.bf16.msra.mxu0 %v1448
      %1602 = vmatprep.subr.bf16.mxu0 0
      %1603 = vmatpush1.bf16.msra.mxu0 %v1449
      %1604 = vmatprep.subr.bf16.mxu0 0
      %1605 = vmatpush1.bf16.msra.mxu0 %v1450
      %1606 = vmatprep.subr.bf16.mxu0 0
      %1607 = vmatpush1.bf16.msra.mxu0 %v1451
      %1608 = vmatprep.subr.bf16.mxu0 0
      %1609 = vmatpush1.bf16.msra.mxu0 %v1452
      %1610 = vmatprep.subr.bf16.mxu0 0
      %1611 = vmatpush1.bf16.msra.mxu0 %v1453
      %1612 = vmatprep.subr.bf16.mxu0 0
      %1613 = vmatpush1.bf16.msra.mxu0 %v1454
      %1614 = vmatprep.subr.bf16.mxu0 0
      %1615 = vmatpush1.bf16.msra.mxu0 %v1455
      %1616 = vmatprep.mubr.bf16.mxu0 %v387
      %1617 = vmatmul.mubr.bf16.gmra.mrb[0].mxu0 %v335
      %v1618 = vpop.f32.mrb[0].mxu0
      %v1619 = vadd.f32 %v1150, %v1618
      %v1620 = vpop.f32.mrb[0].mxu0
      %v1621 = vpop.f32.mrb[0].mxu0
      %v1622 = vadd.f32 %v1150, %v1621
      %v1623 = vpop.f32.mrb[0].mxu0
      %1624 = vmatprep.mubr.bf16.mxu0 %v399
      %1625 = vmatmul.mubr.bf16.gmra.mrb[0].mxu0 %v336
      %v1626 = vpop.f32.mrb[0].mxu0
      %v1627 = vadd.f32 %v1150, %v1626
      %v1628 = vpop.f32.mrb[0].mxu0
      %v1629 = vpop.f32.mrb[0].mxu0
      %v1630 = vadd.f32 %v1150, %v1629
      %v1631 = vpop.f32.mrb[0].mxu0
      %1632 = vmatprep.mubr.bf16.mxu0 %v411
      %1633 = vmatmul.mubr.bf16.gmra.mrb[0].mxu0 %v337
      %v1634 = vpop.f32.mrb[0].mxu0
      %v1635 = vadd.f32 %v1150, %v1634
      %v1636 = vpop.f32.mrb[0].mxu0
      %v1637 = vpop.f32.mrb[0].mxu0
      %v1638 = vadd.f32 %v1150, %v1637
      %v1639 = vpop.f32.mrb[0].mxu0
      %1640 = vmatprep.mubr.bf16.mxu0 %v423
      %1641 = vmatmul.mubr.bf16.gmra.mrb[0].mxu0 %v338
      %v1642 = vpop.f32.mrb[0].mxu0
      %v1643 = vadd.f32 %v1150, %v1642
      %v1644 = vpop.f32.mrb[0].mxu0
      %v1645 = vpop.f32.mrb[0].mxu0
      %v1646 = vadd.f32 %v1150, %v1645
      %v1647 = vpop.f32.mrb[0].mxu0
      %1648 = vmatprep.mubr.bf16.mxu0 %v435
      %1649 = vmatmul.mubr.bf16.gmra.mrb[0].mxu0 %v339
      %v1650 = vpop.f32.mrb[0].mxu0
      %v1651 = vadd.f32 %v1150, %v1650
      %v1652 = vpop.f32.mrb[0].mxu0
      %v1653 = vpop.f32.mrb[0].mxu0
      %v1654 = vadd.f32 %v1150, %v1653
      %v1655 = vpop.f32.mrb[0].mxu0
      %1656 = vmatprep.mubr.bf16.mxu0 %v447
      %1657 = vmatmul.mubr.bf16.gmra.mrb[0].mxu0 %v340
      %v1658 = vpop.f32.mrb[0].mxu0
      %v1659 = vadd.f32 %v1150, %v1658
      %v1660 = vpop.f32.mrb[0].mxu0
      %v1661 = vpop.f32.mrb[0].mxu0
      %v1662 = vadd.f32 %v1150, %v1661
      %v1663 = vpop.f32.mrb[0].mxu0
      %1664 = vmatprep.mubr.bf16.mxu0 %v459
      %1665 = vmatmul.mubr.bf16.gmra.mrb[0].mxu0 %v341
      %v1666 = vpop.f32.mrb[0].mxu0
      %v1667 = vadd.f32 %v1150, %v1666
      %v1668 = vpop.f32.mrb[0].mxu0
      %v1669 = vpop.f32.mrb[0].mxu0
      %v1670 = vadd.f32 %v1150, %v1669
      %v1671 = vpop.f32.mrb[0].mxu0
      %1672 = vmatprep.mubr.bf16.mxu0 %v471
      %1673 = vmatmul.mubr.bf16.gmra.mrb[0].mxu0 %v342
      %v1674 = vpop.f32.mrb[0].mxu0
      %v1675 = vadd.f32 %v1150, %v1674
      %v1676 = vpop.f32.mrb[0].mxu0
      %v1677 = vpop.f32.mrb[0].mxu0
      %v1678 = vadd.f32 %v1150, %v1677
      %v1679 = vpop.f32.mrb[0].mxu0
      %1680 = vdwg.mxu0
      %1681 = vmatprep.subr.bf16.mxu0 0
      %1682 = vmatpush1.bf16.msra.mxu0 %v1456
      %1683 = vmatprep.subr.bf16.mxu0 0
      %1684 = vmatpush1.bf16.msra.mxu0 %v1457
      %1685 = vmatprep.subr.bf16.mxu0 0
      %1686 = vmatpush1.bf16.msra.mxu0 %v1458
      %1687 = vmatprep.subr.bf16.mxu0 0
      %1688 = vmatpush1.bf16.msra.mxu0 %v1459
      %1689 = vmatprep.subr.bf16.mxu0 0
      %1690 = vmatpush1.bf16.msra.mxu0 %v1460
      %1691 = vmatprep.subr.bf16.mxu0 0
      %1692 = vmatpush1.bf16.msra.mxu0 %v1461
      %1693 = vmatprep.subr.bf16.mxu0 0
      %1694 = vmatpush1.bf16.msra.mxu0 %v1462
      %1695 = vmatprep.subr.bf16.mxu0 0
      %1696 = vmatpush1.bf16.msra.mxu0 %v1463
      %1697 = vmatprep.subr.bf16.mxu0 0
      %1698 = vmatpush1.bf16.msra.mxu0 %v1464
      %1699 = vmatprep.subr.bf16.mxu0 0
      %1700 = vmatpush1.bf16.msra.mxu0 %v1465
      %1701 = vmatprep.subr.bf16.mxu0 0
      %1702 = vmatpush1.bf16.msra.mxu0 %v1466
      %1703 = vmatprep.subr.bf16.mxu0 0
      %1704 = vmatpush1.bf16.msra.mxu0 %v1467
      %1705 = vmatprep.subr.bf16.mxu0 0
      %1706 = vmatpush1.bf16.msra.mxu0 %v1468
      %1707 = vmatprep.subr.bf16.mxu0 0
      %1708 = vmatpush1.bf16.msra.mxu0 %v1469
      %1709 = vmatprep.subr.bf16.mxu0 0
      %1710 = vmatpush1.bf16.msra.mxu0 %v1470
      %1711 = vmatprep.subr.bf16.mxu0 0
      %1712 = vmatpush1.bf16.msra.mxu0 %v1471
      %1713 = vmatprep.mubr.bf16.mxu0 %v569
      %1714 = vmatmul.mubr.bf16.gmra.mrb[0].mxu0 %v507
      %v1715 = vpop.f32.mrb[0].mxu0
      %v1716 = vadd.f32 %v1619, %v1715
      %v1717 = vpop.f32.mrb[0].mxu0
      %v1718 = vpop.f32.mrb[0].mxu0
      %v1719 = vadd.f32 %v1622, %v1718
      %v1720 = vpop.f32.mrb[0].mxu0
      %1721 = vmatprep.mubr.bf16.mxu0 %v570
      %1722 = vmatmul.mubr.bf16.gmra.mrb[0].mxu0 %v510
      %v1723 = vpop.f32.mrb[0].mxu0
      %v1724 = vadd.f32 %v1627, %v1723
      %v1725 = vpop.f32.mrb[0].mxu0
      %v1726 = vpop.f32.mrb[0].mxu0
      %v1727 = vadd.f32 %v1630, %v1726
      %v1728 = vpop.f32.mrb[0].mxu0
      %1729 = vmatprep.mubr.bf16.mxu0 %v571
      %1730 = vmatmul.mubr.bf16.gmra.mrb[0].mxu0 %v513
      %v1731 = vpop.f32.mrb[0].mxu0
      %v1732 = vadd.f32 %v1635, %v1731
      %v1733 = vpop.f32.mrb[0].mxu0
      %v1734 = vpop.f32.mrb[0].mxu0
      %v1735 = vadd.f32 %v1638, %v1734
      %v1736 = vpop.f32.mrb[0].mxu0
      %1737 = vmatprep.mubr.bf16.mxu0 %v572
      %1738 = vmatmul.mubr.bf16.gmra.mrb[0].mxu0 %v516
      %v1739 = vpop.f32.mrb[0].mxu0
      %v1740 = vadd.f32 %v1643, %v1739
      %v1741 = vpop.f32.mrb[0].mxu0
      %v1742 = vpop.f32.mrb[0].mxu0
      %v1743 = vadd.f32 %v1646, %v1742
      %v1744 = vpop.f32.mrb[0].mxu0
      %1745 = vmatprep.mubr.bf16.mxu0 %v573
      %1746 = vmatmul.mubr.bf16.gmra.mrb[0].mxu0 %v519
      %v1747 = vpop.f32.mrb[0].mxu0
      %v1748 = vadd.f32 %v1651, %v1747
      %v1749 = vpop.f32.mrb[0].mxu0
      %v1750 = vpop.f32.mrb[0].mxu0
      %v1751 = vadd.f32 %v1654, %v1750
      %v1752 = vpop.f32.mrb[0].mxu0
      %1753 = vmatprep.mubr.bf16.mxu0 %v574
      %1754 = vmatmul.mubr.bf16.gmra.mrb[0].mxu0 %v522
      %v1755 = vpop.f32.mrb[0].mxu0
      %v1756 = vadd.f32 %v1659, %v1755
      %v1757 = vpop.f32.mrb[0].mxu0
      %v1758 = vpop.f32.mrb[0].mxu0
      %v1759 = vadd.f32 %v1662, %v1758
      %v1760 = vpop.f32.mrb[0].mxu0
      %1761 = vmatprep.mubr.bf16.mxu0 %v575
      %1762 = vmatmul.mubr.bf16.gmra.mrb[0].mxu0 %v525
      %v1763 = vpop.f32.mrb[0].mxu0
      %v1764 = vadd.f32 %v1667, %v1763
      %v1765 = vpop.f32.mrb[0].mxu0
      %v1766 = vpop.f32.mrb[0].mxu0
      %v1767 = vadd.f32 %v1670, %v1766
      %v1768 = vpop.f32.mrb[0].mxu0
      %1769 = vmatprep.mubr.bf16.mxu0 %v576
      %1770 = vmatmul.mubr.bf16.gmra.mrb[0].mxu0 %v528
      %v1771 = vpop.f32.mrb[0].mxu0
      %v1772 = vadd.f32 %v1675, %v1771
      %v1773 = vpop.f32.mrb[0].mxu0
      %v1774 = vpop.f32.mrb[0].mxu0
      %v1775 = vadd.f32 %v1678, %v1774
      %v1776 = vpop.f32.mrb[0].mxu0
      %1777 = vdwg.mxu0
      %1778 = vmatprep.subr.bf16.mxu0 0
      %1779 = vmatpush1.bf16.msra.mxu0 %v1472
      %1780 = vmatprep.subr.bf16.mxu0 0
      %1781 = vmatpush1.bf16.msra.mxu0 %v1473
      %1782 = vmatprep.subr.bf16.mxu0 0
      %1783 = vmatpush1.bf16.msra.mxu0 %v1474
      %1784 = vmatprep.subr.bf16.mxu0 0
      %1785 = vmatpush1.bf16.msra.mxu0 %v1475
      %1786 = vmatprep.subr.bf16.mxu0 0
      %1787 = vmatpush1.bf16.msra.mxu0 %v1476
      %1788 = vmatprep.subr.bf16.mxu0 0
      %1789 = vmatpush1.bf16.msra.mxu0 %v1477
      %1790 = vmatprep.subr.bf16.mxu0 0
      %1791 = vmatpush1.bf16.msra.mxu0 %v1478
      %1792 = vmatprep.subr.bf16.mxu0 0
      %1793 = vmatpush1.bf16.msra.mxu0 %v1479
      %1794 = vmatprep.subr.bf16.mxu0 0
      %1795 = vmatpush1.bf16.msra.mxu0 %v1480
      %1796 = vmatprep.subr.bf16.mxu0 0
      %1797 = vmatpush1.bf16.msra.mxu0 %v1481
      %1798 = vmatprep.subr.bf16.mxu0 0
      %1799 = vmatpush1.bf16.msra.mxu0 %v1482
      %1800 = vmatprep.subr.bf16.mxu0 0
      %1801 = vmatpush1.bf16.msra.mxu0 %v1483
      %1802 = vmatprep.subr.bf16.mxu0 0
      %1803 = vmatpush1.bf16.msra.mxu0 %v1484
      %1804 = vmatprep.subr.bf16.mxu0 0
      %1805 = vmatpush1.bf16.msra.mxu0 %v1485
      %1806 = vmatprep.subr.bf16.mxu0 0
      %1807 = vmatpush1.bf16.msra.mxu0 %v1486
      %1808 = vmatprep.subr.bf16.mxu0 0
      %1809 = vmatpush1.bf16.msra.mxu0 %v1487
      %1810 = vmatprep.mubr.bf16.mxu0 %v739
      %1811 = vmatmul.mubr.bf16.gmra.mrb[0].mxu0 %v620
      %v1812 = vpop.f32.mrb[0].mxu0
      %v1813 = vadd.f32 %v1716, %v1812
      %v1814 = vpop.f32.mrb[0].mxu0
      %v1815 = vpop.f32.mrb[0].mxu0
      %v1816 = vadd.f32 %v1719, %v1815
      %v1817 = vpop.f32.mrb[0].mxu0
      %1818 = vmatprep.mubr.bf16.mxu0 %v742
      %1819 = vmatmul.mubr.bf16.gmra.mrb[0].mxu0 %v632
      %v1820 = vpop.f32.mrb[0].mxu0
      %v1821 = vadd.f32 %v1724, %v1820
      %v1822 = vpop.f32.mrb[0].mxu0
      %v1823 = vpop.f32.mrb[0].mxu0
      %v1824 = vadd.f32 %v1727, %v1823
      %v1825 = vpop.f32.mrb[0].mxu0
      %1826 = vmatprep.mubr.bf16.mxu0 %v745
      %1827 = vmatmul.mubr.bf16.gmra.mrb[0].mxu0 %v644
      %v1828 = vpop.f32.mrb[0].mxu0
      %v1829 = vadd.f32 %v1732, %v1828
      %v1830 = vpop.f32.mrb[0].mxu0
      %v1831 = vpop.f32.mrb[0].mxu0
      %v1832 = vadd.f32 %v1735, %v1831
      %v1833 = vpop.f32.mrb[0].mxu0
      %1834 = vmatprep.mubr.bf16.mxu0 %v748
      %1835 = vmatmul.mubr.bf16.gmra.mrb[0].mxu0 %v656
      %v1836 = vpop.f32.mrb[0].mxu0
      %v1837 = vadd.f32 %v1740, %v1836
      %v1838 = vpop.f32.mrb[0].mxu0
      %v1839 = vpop.f32.mrb[0].mxu0
      %v1840 = vadd.f32 %v1743, %v1839
      %v1841 = vpop.f32.mrb[0].mxu0
      %1842 = vmatprep.mubr.bf16.mxu0 %v751
      %1843 = vmatmul.mubr.bf16.gmra.mrb[0].mxu0 %v668
      %v1844 = vpop.f32.mrb[0].mxu0
      %v1845 = vadd.f32 %v1748, %v1844
      %v1846 = vpop.f32.mrb[0].mxu0
      %v1847 = vpop.f32.mrb[0].mxu0
      %v1848 = vadd.f32 %v1751, %v1847
      %v1849 = vpop.f32.mrb[0].mxu0
      %1850 = vmatprep.mubr.bf16.mxu0 %v754
      %1851 = vmatmul.mubr.bf16.gmra.mrb[0].mxu0 %v680
      %v1852 = vpop.f32.mrb[0].mxu0
      %v1853 = vadd.f32 %v1756, %v1852
      %v1854 = vpop.f32.mrb[0].mxu0
      %v1855 = vpop.f32.mrb[0].mxu0
      %v1856 = vadd.f32 %v1759, %v1855
      %v1857 = vpop.f32.mrb[0].mxu0
      %1858 = vmatprep.mubr.bf16.mxu0 %v757
      %1859 = vmatmul.mubr.bf16.gmra.mrb[0].mxu0 %v692
      %v1860 = vpop.f32.mrb[0].mxu0
      %v1861 = vadd.f32 %v1764, %v1860
      %v1862 = vpop.f32.mrb[0].mxu0
      %v1863 = vpop.f32.mrb[0].mxu0
      %v1864 = vadd.f32 %v1767, %v1863
      %v1865 = vpop.f32.mrb[0].mxu0
      %1866 = vmatprep.mubr.bf16.mxu0 %v760
      %1867 = vmatmul.mubr.bf16.gmra.mrb[0].mxu0 %v704
      %v1868 = vpop.f32.mrb[0].mxu0
      %v1869 = vadd.f32 %v1772, %v1868
      %v1870 = vpop.f32.mrb[0].mxu0
      %v1871 = vpop.f32.mrb[0].mxu0
      %v1872 = vadd.f32 %v1775, %v1871
      %v1873 = vpop.f32.mrb[0].mxu0
      %1874 = vdwg.mxu0
      %1875 = vmatprep.subr.bf16.mxu0 0
      %1876 = vmatpush1.bf16.msra.mxu0 %v1488
      %1877 = vmatprep.subr.bf16.mxu0 0
      %1878 = vmatpush1.bf16.msra.mxu0 %v1489
      %1879 = vmatprep.subr.bf16.mxu0 0
      %1880 = vmatpush1.bf16.msra.mxu0 %v1490
      %1881 = vmatprep.subr.bf16.mxu0 0
      %1882 = vmatpush1.bf16.msra.mxu0 %v1491
      %1883 = vmatprep.subr.bf16.mxu0 0
      %1884 = vmatpush1.bf16.msra.mxu0 %v1492
      %1885 = vmatprep.subr.bf16.mxu0 0
      %1886 = vmatpush1.bf16.msra.mxu0 %v1493
      %1887 = vmatprep.subr.bf16.mxu0 0
      %1888 = vmatpush1.bf16.msra.mxu0 %v1494
      %1889 = vmatprep.subr.bf16.mxu0 0
      %1890 = vmatpush1.bf16.msra.mxu0 %v1495
      %1891 = vmatprep.subr.bf16.mxu0 0
      %1892 = vmatpush1.bf16.msra.mxu0 %v1496
      %1893 = vmatprep.subr.bf16.mxu0 0
      %1894 = vmatpush1.bf16.msra.mxu0 %v1497
      %1895 = vmatprep.subr.bf16.mxu0 0
      %1896 = vmatpush1.bf16.msra.mxu0 %v1498
      %1897 = vmatprep.subr.bf16.mxu0 0
      %1898 = vmatpush1.bf16.msra.mxu0 %v1499
      %1899 = vmatprep.subr.bf16.mxu0 0
      %1900 = vmatpush1.bf16.msra.mxu0 %v1500
      %1901 = vmatprep.subr.bf16.mxu0 0
      %1902 = vmatpush1.bf16.msra.mxu0 %v1501
      %1903 = vmatprep.subr.bf16.mxu0 0
      %1904 = vmatpush1.bf16.msra.mxu0 %v1502
      %1905 = vmatprep.subr.bf16.mxu0 0
      %1906 = vmatpush1.bf16.msra.mxu0 %v1503
      %1907 = vmatprep.mubr.bf16.mxu0 %v852
      %1908 = vmatmul.mubr.bf16.gmra.mrb[0].mxu0 %v801
      %v1909 = vpop.f32.mrb[0].mxu0
      %v1910 = vadd.f32 %v1813, %v1909
      %v1911 = vpop.f32.mrb[0].mxu0
      %v1912 = vpop.f32.mrb[0].mxu0
      %v1913 = vadd.f32 %v1816, %v1912
      %v1914 = vpop.f32.mrb[0].mxu0
      %1915 = vmatprep.mubr.bf16.mxu0 %v864
      %1916 = vmatmul.mubr.bf16.gmra.mrb[0].mxu0 %v802
      %v1917 = vpop.f32.mrb[0].mxu0
      %v1918 = vadd.f32 %v1821, %v1917
      %v1919 = vpop.f32.mrb[0].mxu0
      %v1920 = vpop.f32.mrb[0].mxu0
      %v1921 = vadd.f32 %v1824, %v1920
      %v1922 = vpop.f32.mrb[0].mxu0
      %1923 = vmatprep.mubr.bf16.mxu0 %v876
      %1924 = vmatmul.mubr.bf16.gmra.mrb[0].mxu0 %v803
      %v1925 = vpop.f32.mrb[0].mxu0
      %v1926 = vadd.f32 %v1829, %v1925
      %v1927 = vpop.f32.mrb[0].mxu0
      %v1928 = vpop.f32.mrb[0].mxu0
      %v1929 = vadd.f32 %v1832, %v1928
      %v1930 = vpop.f32.mrb[0].mxu0
      %1931 = vmatprep.mubr.bf16.mxu0 %v888
      %1932 = vmatmul.mubr.bf16.gmra.mrb[0].mxu0 %v804
      %v1933 = vpop.f32.mrb[0].mxu0
      %v1934 = vadd.f32 %v1837, %v1933
      %v1935 = vpop.f32.mrb[0].mxu0
      %v1936 = vpop.f32.mrb[0].mxu0
      %v1937 = vadd.f32 %v1840, %v1936
      %v1938 = vpop.f32.mrb[0].mxu0
      %1939 = vmatprep.mubr.bf16.mxu0 %v900
      %1940 = vmatmul.mubr.bf16.gmra.mrb[0].mxu0 %v805
      %v1941 = vpop.f32.mrb[0].mxu0
      %v1942 = vadd.f32 %v1845, %v1941
      %v1943 = vpop.f32.mrb[0].mxu0
      %v1944 = vpop.f32.mrb[0].mxu0
      %v1945 = vadd.f32 %v1848, %v1944
      %v1946 = vpop.f32.mrb[0].mxu0
      %1947 = vmatprep.mubr.bf16.mxu0 %v912
      %1948 = vmatmul.mubr.bf16.gmra.mrb[0].mxu0 %v806
      %v1949 = vpop.f32.mrb[0].mxu0
      %v1950 = vadd.f32 %v1853, %v1949
      %v1951 = vpop.f32.mrb[0].mxu0
      %v1952 = vpop.f32.mrb[0].mxu0
      %v1953 = vadd.f32 %v1856, %v1952
      %v1954 = vpop.f32.mrb[0].mxu0
      %1955 = vmatprep.mubr.bf16.mxu0 %v924
      %1956 = vmatmul.mubr.bf16.gmra.mrb[0].mxu0 %v807
      %v1957 = vpop.f32.mrb[0].mxu0
      %v1958 = vadd.f32 %v1861, %v1957
      %v1959 = vpop.f32.mrb[0].mxu0
      %v1960 = vpop.f32.mrb[0].mxu0
      %v1961 = vadd.f32 %v1864, %v1960
      %v1962 = vpop.f32.mrb[0].mxu0
      %1963 = vmatprep.mubr.bf16.mxu0 %v936
      %1964 = vmatmul.mubr.bf16.gmra.mrb[0].mxu0 %v808
      %v1965 = vpop.f32.mrb[0].mxu0
      %v1966 = vadd.f32 %v1869, %v1965
      %v1967 = vpop.f32.mrb[0].mxu0
      %v1968 = vpop.f32.mrb[0].mxu0
      %v1969 = vadd.f32 %v1872, %v1968
      %v1970 = vpop.f32.mrb[0].mxu0
      %1971 = vdwg.mxu0
      %1972 = vmatprep.subr.bf16.mxu0 0
      %1973 = vmatpush1.bf16.msra.mxu0 %v1504
      %1974 = vmatprep.subr.bf16.mxu0 0
      %1975 = vmatpush1.bf16.msra.mxu0 %v1505
      %1976 = vmatprep.subr.bf16.mxu0 0
      %1977 = vmatpush1.bf16.msra.mxu0 %v1506
      %1978 = vmatprep.subr.bf16.mxu0 0
      %1979 = vmatpush1.bf16.msra.mxu0 %v1507
      %1980 = vmatprep.subr.bf16.mxu0 0
      %1981 = vmatpush1.bf16.msra.mxu0 %v1508
      %1982 = vmatprep.subr.bf16.mxu0 0
      %1983 = vmatpush1.bf16.msra.mxu0 %v1509
      %1984 = vmatprep.subr.bf16.mxu0 0
      %1985 = vmatpush1.bf16.msra.mxu0 %v1510
      %1986 = vmatprep.subr.bf16.mxu0 0
      %1987 = vmatpush1.bf16.msra.mxu0 %v1511
      %1988 = vmatprep.subr.bf16.mxu0 0
      %1989 = vmatpush1.bf16.msra.mxu0 0
      %1990 = vmatprep.subr.bf16.mxu0 0
      %1991 = vmatpush1.bf16.msra.mxu0 0
      %1992 = vmatprep.subr.bf16.mxu0 0
      %1993 = vmatpush1.bf16.msra.mxu0 0
      %1994 = vmatprep.subr.bf16.mxu0 0
      %1995 = vmatpush1.bf16.msra.mxu0 0
      %1996 = vmatprep.subr.bf16.mxu0 0
      %1997 = vmatpush1.bf16.msra.mxu0 0
      %1998 = vmatprep.subr.bf16.mxu0 0
      %1999 = vmatpush1.bf16.msra.mxu0 0
      %2000 = vmatprep.subr.bf16.mxu0 0
      %2001 = vmatpush1.bf16.msra.mxu0 0
      %2002 = vmatprep.subr.bf16.mxu0 0
      %2003 = vmatpush1.bf16.msra.mxu0 0
      %2004 = vmatprep.mubr.bf16.mxu0 0
      %2005 = vmatmul.mubr.bf16.gmra.mrb[0].mxu0 %v971
      %v2006 = vpop.f32.mrb[0].mxu0
      %v2007 = vadd.f32 %v1910, %v2006
      %v2008 = vpop.f32.mrb[0].mxu0
      %v2009 = vpop.f32.mrb[0].mxu0
      %v2010 = vadd.f32 %v1913, %v2009
      %v2011 = vpop.f32.mrb[0].mxu0
      %2012 = vmatprep.mubr.bf16.mxu0 0
      %2013 = vmatmul.mubr.bf16.gmra.mrb[0].mxu0 %v974
      %v2014 = vpop.f32.mrb[0].mxu0
      %v2015 = vadd.f32 %v1918, %v2014
      %v2016 = vpop.f32.mrb[0].mxu0
      %v2017 = vpop.f32.mrb[0].mxu0
      %v2018 = vadd.f32 %v1921, %v2017
      %v2019 = vpop.f32.mrb[0].mxu0
      %2020 = vmatprep.mubr.bf16.mxu0 0
      %2021 = vmatmul.mubr.bf16.gmra.mrb[0].mxu0 %v977
      %v2022 = vpop.f32.mrb[0].mxu0
      %v2023 = vadd.f32 %v1926, %v2022
      %v2024 = vpop.f32.mrb[0].mxu0
      %v2025 = vpop.f32.mrb[0].mxu0
      %v2026 = vadd.f32 %v1929, %v2025
      %v2027 = vpop.f32.mrb[0].mxu0
      %2028 = vmatprep.mubr.bf16.mxu0 0
      %2029 = vmatmul.mubr.bf16.gmra.mrb[0].mxu0 %v980
      %v2030 = vpop.f32.mrb[0].mxu0
      %v2031 = vadd.f32 %v1934, %v2030
      %v2032 = vpop.f32.mrb[0].mxu0
      %v2033 = vpop.f32.mrb[0].mxu0
      %v2034 = vadd.f32 %v1937, %v2033
      %v2035 = vpop.f32.mrb[0].mxu0
      %2036 = vmatprep.mubr.bf16.mxu0 0
      %2037 = vmatmul.mubr.bf16.gmra.mrb[0].mxu0 %v983
      %v2038 = vpop.f32.mrb[0].mxu0
      %v2039 = vadd.f32 %v1942, %v2038
      %v2040 = vpop.f32.mrb[0].mxu0
      %v2041 = vpop.f32.mrb[0].mxu0
      %v2042 = vadd.f32 %v1945, %v2041
      %v2043 = vpop.f32.mrb[0].mxu0
      %2044 = vmatprep.mubr.bf16.mxu0 0
      %2045 = vmatmul.mubr.bf16.gmra.mrb[0].mxu0 %v986
      %v2046 = vpop.f32.mrb[0].mxu0
      %v2047 = vadd.f32 %v1950, %v2046
      %v2048 = vpop.f32.mrb[0].mxu0
      %v2049 = vpop.f32.mrb[0].mxu0
      %v2050 = vadd.f32 %v1953, %v2049
      %v2051 = vpop.f32.mrb[0].mxu0
      %2052 = vmatprep.mubr.bf16.mxu0 0
      %2053 = vmatmul.mubr.bf16.gmra.mrb[0].mxu0 %v989
      %v2054 = vpop.f32.mrb[0].mxu0
      %v2055 = vadd.f32 %v1958, %v2054
      %v2056 = vpop.f32.mrb[0].mxu0
      %v2057 = vpop.f32.mrb[0].mxu0
      %v2058 = vadd.f32 %v1961, %v2057
      %v2059 = vpop.f32.mrb[0].mxu0
      %2060 = vmatprep.mubr.bf16.mxu0 0
      %2061 = vmatmul.mubr.bf16.gmra.mrb[0].mxu0 %v992
      %v2062 = vpop.f32.mrb[0].mxu0
      %v2063 = vadd.f32 %v1966, %v2062
      %v2064 = vpop.f32.mrb[0].mxu0
      %v2065 = vpop.f32.mrb[0].mxu0
      %v2066 = vadd.f32 %v1969, %v2065
      %v2067 = vpop.f32.mrb[0].mxu0
      %2068 = vdwg.mxu0
      %v2069 = vmax.f32 %v2007, 0.0
      %v2070 = vmax.f32 %v2010, 0.0
      %v2071 = vmax.f32 %v2015, 0.0
      %v2072 = vmax.f32 %v2018, 0.0
      %v2073 = vmax.f32 %v2023, 0.0
      %v2074 = vmax.f32 %v2026, 0.0
      %v2075 = vmax.f32 %v2031, 0.0
      %v2076 = vmax.f32 %v2034, 0.0
      %v2077 = vmax.f32 %v2039, 0.0
      %v2078 = vmax.f32 %v2042, 0.0
      %v2079 = vmax.f32 %v2047, 0.0
      %v2080 = vmax.f32 %v2050, 0.0
      %v2081 = vmax.f32 %v2055, 0.0
      %v2082 = vmax.f32 %v2058, 0.0
      %v2083 = vmax.f32 %v2063, 0.0
      %v2084 = vmax.f32 %v2066, 0.0
      %v2085 = vpack.c.bf16 %v2070, %v2069
      %v2086 = vpack.c.bf16 %v2072, %v2071
      %v2087 = vpack.c.bf16 %v2074, %v2073
      %v2088 = vpack.c.bf16 %v2076, %v2075
      %v2089 = vpack.c.bf16 %v2078, %v2077
      %v2090 = vpack.c.bf16 %v2080, %v2079
      %v2091 = vpack.c.bf16 %v2082, %v2081
      %v2092 = vpack.c.bf16 %v2084, %v2083
      %v2101 = vunpack.c.l.b16 %v2085
      %v2102 = vunpack.c.h.b16 %v2085
      %v2103 = vunpack.c.l.b16 %v2086
      %v2104 = vunpack.c.h.b16 %v2086
      %v2105 = vunpack.c.l.b16 %v2087
      %v2106 = vunpack.c.h.b16 %v2087
      %v2107 = vunpack.c.l.b16 %v2088
      %v2108 = vunpack.c.h.b16 %v2088
      %v2109 = vunpack.c.l.b16 %v2089
      %v2110 = vunpack.c.h.b16 %v2089
      %v2111 = vunpack.c.l.b16 %v2090
      %v2112 = vunpack.c.h.b16 %v2090
      %v2113 = vunpack.c.l.b16 %v2091
      %v2114 = vunpack.c.h.b16 %v2091
      %v2115 = vunpack.c.l.b16 %v2092
      %v2116 = vunpack.c.h.b16 %v2092
      %v2117 = vpack.c.b16 %v2101, %v2101
      %v2118 = vpack.c.b16 %v2102, %v2102
      %v2119 = vpack.c.b16 %v2103, %v2103
      %v2120 = vpack.c.b16 %v2104, %v2104
      %v2121 = vpack.c.b16 %v2105, %v2105
      %v2122 = vpack.c.b16 %v2106, %v2106
      %v2123 = vpack.c.b16 %v2107, %v2107
      %v2124 = vpack.c.b16 %v2108, %v2108
      %v2125 = vpack.c.b16 %v2109, %v2109
      %v2126 = vpack.c.b16 %v2110, %v2110
      %v2127 = vpack.c.b16 %v2111, %v2111
      %v2128 = vpack.c.b16 %v2112, %v2112
      %v2129 = vpack.c.b16 %v2113, %v2113
      %v2130 = vpack.c.b16 %v2114, %v2114
      %v2131 = vpack.c.b16 %v2115, %v2115
      %v2132 = vpack.c.b16 %v2116, %v2116
      %2149 = vst [vmem:[%s192] sm:$0xf] %v2117
      %2150 = vst [vmem:[%s192 + $0x4] sm:$0xf] %v2118
      %2151 = vst [vmem:[%s192 + $0x8] sm:$0xf] %v2119
      %2152 = vst [vmem:[%s192 + $0xc] sm:$0xf] %v2120
      %2153 = vst [vmem:[%s192 + $0x10] sm:$0xf] %v2121
      %2154 = vst [vmem:[%s192 + $0x14] sm:$0xf] %v2122
      %2155 = vst [vmem:[%s192 + $0x18] sm:$0xf] %v2123
      %2156 = vst [vmem:[%s192 + $0x1c] sm:$0xf] %v2124
      %2157 = vst [vmem:[%s192 + $0x20] sm:$0xf] %v2125
      %2158 = vst [vmem:[%s192 + $0x24] sm:$0xf] %v2126
      %2159 = vst [vmem:[%s192 + $0x28] sm:$0xf] %v2127
      %2160 = vst [vmem:[%s192 + $0x2c] sm:$0xf] %v2128
      %2161 = vst [vmem:[%s192 + $0x30] sm:$0xf] %v2129
      %2162 = vst [vmem:[%s192 + $0x34] sm:$0xf] %v2130
      %2163 = vst [vmem:[%s192 + $0x38] sm:$0xf] %v2131
      %2164 = vst [vmem:[%s192 + $0x3c] sm:$0xf] %v2132
      %s2165 = smul.u32 16, %s19
      %p2166 = scmp.lt.s32.totalorder %s18, 1
      %s2167 = scalar_select %p2166, %s18, 1
      %p2168 = scmp.lt.s32.totalorder %s2165, 31
      %s2169 = scalar_select %p2168, %s2165, 31
      %s2170 = smul.addr %s2167, 32
      %s2171 = sadd.s32 %s2169, %s2170
      %s2172 = smul.addr %s2171, 4
      %s2173 = scalar_lea.vmem %s3, %s2172
      // Predicated region
      $region33: #{bottleneck_forward.5} parent=31 // pred_check
        %p2174 = pneg %p114
      $region34: #{bottleneck_forward.5} parent=31 // pred_check_branch
        %2176 = sbr.rel (%p2174) target = $region36
      $region35: #{bottleneck_forward.5} parent=31 // pred_region
        %s2177 = smul.u32 16, %s19
      $region36: #{bottleneck_forward.5} parent=31 // pred_fallthru
        _
    $region32: #{bottleneck_forward.5} parent=5 // pred_fallthru
      _
    %p2178 = scmp.le.s32.totalorder 2, %s9
    // Predicated region
    $region37: #{bottleneck_forward.5} parent=5 // pred_check
      %p2179 = pneg %p2178
    $region38: #{bottleneck_forward.5} parent=5 // pred_check_branch
      %2181 = sbr.rel (%p2179) target = $region40
    $region39: #{bottleneck_forward.5} parent=5 // pred_region
      %s2182 = ssub.s32 %s9, 2
      // Predicated region
      $region41: #{bottleneck_forward.5} parent=39 // pred_check
        %p2183 = pneg %p120
      $region42: #{bottleneck_forward.5} parent=39 // pred_check_branch
        %2185 = sbr.rel (%p2183) target = $region44
      $region43: #{bottleneck_forward.5} parent=39 // pred_region
        %s2186 = smul.u32 16, %s21
        %p2187 = scmp.lt.s32.totalorder %s20, 1
        %s2188 = scalar_select %p2187, %s20, 1
        %p2189 = scmp.lt.s32.totalorder %s2186, 31
        %s2190 = scalar_select %p2189, %s2186, 31
        %s2191 = smul.addr %s2188, 32
        %s2192 = sadd.s32 %s2190, %s2191
        %s2193 = smul.addr %s2192, 4
        %s2194 = scalar_lea.vmem %s3, %s2193
      $region44: #{bottleneck_forward.5} parent=39 // pred_fallthru
        _
    $region40: #{bottleneck_forward.5} parent=5 // pred_fallthru
      _
  $region6: #{bottleneck_forward.5} parent=0 // loop_footer
    %s13 = sadd.s32 1, %s9
  $region7: #{bottleneck_forward.5} parent=0 // loop_footer_branch
    %8 = sbr.rel target = $region3
  $region8: #{bottleneck_forward.5} parent=0 // loop_exit
    _

</llo_original>
